<compile_context>
chip_gen: v7x
topology: tpu7x:2x2x1
jax: 0.10.0
libtpu: 0.0.40
codegen_flags: <defaults>
</compile_context>

<pallas_src>
import functools
import math

import jax
import jax.numpy as jnp
from jax.experimental import pallas as pl
from jax.experimental.pallas import tpu as pltpu

LANE = 128  # classifier output padded to this many lanes for a lane-dense store


# --------------------------- in-kernel helpers --------------------------------

def _layer_norm(x, g, b, eps):
    mu = jnp.mean(x, axis=-1, keepdims=True)
    xc = x - mu
    var = jnp.mean(xc * xc, axis=-1, keepdims=True)
    return xc * jax.lax.rsqrt(var + eps) * g + b


def _gelu(y):
    # TODO(synk): HF BERT uses exact erf-GELU; tanh approximation used here (EUP path).
    c = 0.7978845608028654  # sqrt(2/pi)
    return 0.5 * y * (1.0 + jnp.tanh(c * (y + 0.044715 * y * y * y)))


# --------------------------- fused forward kernel ------------------------------

def _bert_forward_kernel(
        # inputs (one batch element per grid step)
        emb_ref, mask_ref, eg_ref, eb_ref,
        wqkv_ref, bqkv_ref, wo_ref, bo_ref,
        ln1g_ref, ln1b_ref, wi_ref, bi_ref, wp_ref, bp_ref, ln2g_ref, ln2b_ref,
        pw_ref, pb_ref, cw_ref, cb_ref,
        # outputs
        hidden_ref, logits_ref,
        *, H, NH, L, eps):
    f32 = jnp.float32
    bf16 = jnp.bfloat16
    Dh = H // NH
    scale = 1.0 / math.sqrt(Dh)

    # --- embedding LayerNorm (no residual: nothing zero-materialized) ---
    x = _layer_norm(emb_ref[...].astype(f32), eg_ref[...], eb_ref[...], eps)     # (S, H)

    # --- additive attention mask row, computed once (f32; kept f32 through softmax) ---
    neg_mask = (1.0 - mask_ref[0]) * (-1e9)                                       # (1, S)

    for l in range(L):                       # static unroll (toy L=2)
        # ---------------- multi-head self-attention ----------------
        # Single fused QKV projection: one big MXU matmul per layer.
        qkv = jnp.dot(x.astype(bf16), wqkv_ref[l],
                      preferred_element_type=f32) + bqkv_ref[l]                   # (S, 3H)
        q = qkv[:, 0:H] * scale              # scale folded into Q (S*Dh-sized vmul)
        k = qkv[:, H:2 * H]
        v = qkv[:, 2 * H:3 * H]

        # Per-head scores / context (static lane slices; inherently (S,Dh)-shaped).
        ctx_heads = []
        for h in range(NH):
            qh = q[:, h * Dh:(h + 1) * Dh]
            kh = k[:, h * Dh:(h + 1) * Dh]
            vh = v[:, h * Dh:(h + 1) * Dh]
            s = jnp.einsum("qd,kd->qk", qh.astype(bf16), kh.astype(bf16),
                           preferred_element_type=f32)                            # (S, S) f32
            s = s + neg_mask                                                       # mask in f32
            mx = jnp.max(s, axis=-1, keepdims=True)
            p = jnp.exp(s - mx)
            p = p * pl.reciprocal(jnp.sum(p, axis=-1, keepdims=True), approx=True)
            ctx_heads.append(jnp.dot(p.astype(bf16), vh.astype(bf16),
                                     preferred_element_type=f32))                 # (S, Dh)

        # One contiguous (S, H) context buffer, one full-Wo matmul.
        ctx = jnp.concatenate(ctx_heads, axis=-1)                                  # (S, H)
        attn = jnp.dot(ctx.astype(bf16), wo_ref[l],
                       preferred_element_type=f32) + bo_ref[l]
        x = _layer_norm(attn + x, ln1g_ref[l], ln1b_ref[l], eps)

        # ---------------- feed-forward ----------------
        hff = jnp.dot(x.astype(bf16), wi_ref[l], preferred_element_type=f32) + bi_ref[l]
        hff = _gelu(hff)
        ffn = jnp.dot(hff.astype(bf16), wp_ref[l], preferred_element_type=f32) + bp_ref[l]
        x = _layer_norm(ffn + x, ln2g_ref[l], ln2b_ref[l], eps)

    hidden_ref[...] = x.astype(hidden_ref.dtype)

    # ---------------- pooler + classifier ----------------
    cls = x[0:1, :]                                         # CLS row: static slice (per-batch grid)
    pooled = jnp.tanh(jnp.dot(cls.astype(bf16), pw_ref[...],
                              preferred_element_type=f32) + pb_ref[...])
    # dropout(p=0.3) is identity in the eval/inference forward pass.
    logits = jnp.dot(pooled.astype(bf16), cw_ref[...],
                     preferred_element_type=f32) + cb_ref[...]                     # (1, 128)
    logits_ref[0] = logits.astype(logits_ref.dtype)          # lane-dense (128-wide) store


# --------------------------- parameter setup -----------------------------------

CFG = dict(
    vocab_size=100,
    hidden=32,
    num_layers=2,
    num_heads=4,
    intermediate=64,
    max_pos=16,
    type_vocab=2,
    num_labels=6,
)


def init_params(key, cfg):
    H, I = cfg["hidden"], cfg["intermediate"]
    L, NL = cfg["num_layers"], cfg["num_labels"]
    bf16 = jnp.bfloat16

    def nrm(k, shape):
        return (0.02 * jax.random.normal(k, shape)).astype(jnp.float32)

    keys = iter(jax.random.split(key, 6 * L + 8))

    wqkv, wo, wi, wp = [], [], [], []
    for _ in range(L):
        wq = nrm(next(keys), (H, H))
        wk = nrm(next(keys), (H, H))
        wv = nrm(next(keys), (H, H))
        wqkv.append(jnp.concatenate([wq, wk, wv], axis=1))   # (H, 3H) fused projection
        wo.append(nrm(next(keys), (H, H)))
        wi.append(nrm(next(keys), (H, I)))
        wp.append(nrm(next(keys), (I, H)))

    npad = ((NL + LANE - 1) // LANE) * LANE
    cls_w = nrm(next(keys), (H, NL))

    p = {
        # embedding tables stay f32 (token gather runs in XLA glue)
        "word_emb": nrm(next(keys), (cfg["vocab_size"], H)),
        "pos_emb": nrm(next(keys), (cfg["max_pos"], H)),
        "type_emb": nrm(next(keys), (cfg["type_vocab"], H)),
        "emb_ln_g": jnp.ones((1, H), jnp.float32),
        "emb_ln_b": jnp.zeros((1, H), jnp.float32),
        # matmul weights stored bf16 (MXU operands); biases / LN params f32
        "wqkv": jnp.stack(wqkv).astype(bf16),                # (L, H, 3H)
        "bqkv": jnp.zeros((L, 1, 3 * H), jnp.float32),
        "wo": jnp.stack(wo).astype(bf16),                    # (L, H, H)
        "bo": jnp.zeros((L, 1, H), jnp.float32),
        "ln1_g": jnp.ones((L, 1, H), jnp.float32),
        "ln1_b": jnp.zeros((L, 1, H), jnp.float32),
        "wi": jnp.stack(wi).astype(bf16),                    # (L, H, I)
        "bi": jnp.zeros((L, 1, I), jnp.float32),
        "wp": jnp.stack(wp).astype(bf16),                    # (L, I, H)
        "bp": jnp.zeros((L, 1, H), jnp.float32),
        "ln2_g": jnp.ones((L, 1, H), jnp.float32),
        "ln2_b": jnp.zeros((L, 1, H), jnp.float32),
        "pooler_w": nrm(next(keys), (H, H)).astype(bf16),
        "pooler_b": jnp.zeros((1, H), jnp.float32),
        # classifier zero-padded to a full 128-lane tile (lane-dense store); sliced in wrapper
        "cls_w_pad": jnp.pad(cls_w, ((0, 0), (0, npad - NL))).astype(bf16),
        "cls_b_pad": jnp.zeros((1, npad), jnp.float32),
    }
    return p


# --------------------------- forward pass ---------------------------------------

def _full_spec(shape):
    nd = len(shape)
    return pl.BlockSpec(shape, lambda *_: (0,) * nd)


def multilabel_bert_forward(params, input_ids, attention_mask, cfg):
    B, S = input_ids.shape
    H, NH = cfg["hidden"], cfg["num_heads"]
    L, NL = cfg["num_layers"], cfg["num_labels"]
    npad = params["cls_w_pad"].shape[1]

    # --- embeddings (token-id gather stays in XLA glue) ---
    emb = (jnp.take(params["word_emb"], input_ids, axis=0)
           + params["pos_emb"][:S][None, :, :]
           + params["type_emb"][0][None, None, :])          # token_type_ids == 0
    emb = emb.reshape(B * S, H).astype(jnp.float32)
    mask_f = attention_mask.astype(jnp.float32).reshape(B, 1, S)

    weight_args = (
        params["emb_ln_g"], params["emb_ln_b"],
        params["wqkv"], params["bqkv"], params["wo"], params["bo"],
        params["ln1_g"], params["ln1_b"],
        params["wi"], params["bi"], params["wp"], params["bp"],
        params["ln2_g"], params["ln2_b"],
        params["pooler_w"], params["pooler_b"],
        params["cls_w_pad"], params["cls_b_pad"],
    )

    kernel = functools.partial(_bert_forward_kernel, H=H, NH=NH, L=L, eps=1e-12)

    hidden, logits_pad = pl.pallas_call(
        kernel,
        grid=(B,),
        out_shape=(jax.ShapeDtypeStruct((B * S, H), jnp.float32),
                   jax.ShapeDtypeStruct((B, 1, npad), jnp.float32)),
        in_specs=[
            pl.BlockSpec((S, H), lambda b: (b, 0)),          # one sequence of rows per step
            pl.BlockSpec((1, 1, S), lambda b: (b, 0, 0)),    # this batch's mask row
        ] + [_full_spec(w.shape) for w in weight_args],      # weights resident (toy sizes)
        out_specs=(
            pl.BlockSpec((S, H), lambda b: (b, 0)),
            pl.BlockSpec((1, 1, npad), lambda b: (b, 0, 0)),
        ),
        compiler_params=pltpu.CompilerParams(
            dimension_semantics=("parallel",)),              # batch axis -> both v7x TCs
    )(emb, mask_f, *weight_args)

    return {"logits": logits_pad.reshape(B, npad)[:, :NL],
            "hidden_states": hidden.reshape(B, S, H)}


# ------------------------------- main --------------------------------------------

if __name__ == "__main__":
    key = jax.random.PRNGKey(0)
    k_param, k_ids = jax.random.split(key)

    cfg = CFG
    B, S = 2, 8
    params = init_params(k_param, cfg)

    input_ids = jax.random.randint(k_ids, (B, S), 0, cfg["vocab_size"], dtype=jnp.int32)
    # mask out the last two tokens of the second example to exercise the attention mask
    attention_mask = jnp.array([[1, 1, 1, 1, 1, 1, 1, 1],
                                [1, 1, 1, 1, 1, 1, 0, 0]], dtype=jnp.int32)

    out = multilabel_bert_forward(params, input_ids, attention_mask, cfg)
    jax.block_until_ready(out)

    assert out["logits"].shape == (B, cfg["num_labels"])
    assert out["hidden_states"].shape == (B, S, cfg["hidden"])
    assert bool(jnp.all(jnp.isfinite(out["logits"])))
    assert bool(jnp.all(jnp.isfinite(out["hidden_states"])))

    print("KERNEL_OK")
</pallas_src>

<mosaic_0001>
module attributes {stable_mosaic.version = 11 : i64} {
  func.func @_bert_forward_kernel(%arg0: i32, %arg1: memref<8x32xf32, #tpu.memory_space<vmem>>, %arg2: memref<1x1x8xf32, #tpu.memory_space<vmem>>, %arg3: memref<1x32xf32, #tpu.memory_space<vmem>>, %arg4: memref<1x32xf32, #tpu.memory_space<vmem>>, %arg5: memref<2x32x96xbf16, #tpu.memory_space<vmem>>, %arg6: memref<2x1x96xf32, #tpu.memory_space<vmem>>, %arg7: memref<2x32x32xbf16, #tpu.memory_space<vmem>>, %arg8: memref<2x1x32xf32, #tpu.memory_space<vmem>>, %arg9: memref<2x1x32xf32, #tpu.memory_space<vmem>>, %arg10: memref<2x1x32xf32, #tpu.memory_space<vmem>>, %arg11: memref<2x32x64xbf16, #tpu.memory_space<vmem>>, %arg12: memref<2x1x64xf32, #tpu.memory_space<vmem>>, %arg13: memref<2x64x32xbf16, #tpu.memory_space<vmem>>, %arg14: memref<2x1x32xf32, #tpu.memory_space<vmem>>, %arg15: memref<2x1x32xf32, #tpu.memory_space<vmem>>, %arg16: memref<2x1x32xf32, #tpu.memory_space<vmem>>, %arg17: memref<32x32xbf16, #tpu.memory_space<vmem>>, %arg18: memref<1x32xf32, #tpu.memory_space<vmem>>, %arg19: memref<32x128xbf16, #tpu.memory_space<vmem>>, %arg20: memref<1x128xf32, #tpu.memory_space<vmem>>, %arg21: memref<8x32xf32, #tpu.memory_space<vmem>>, %arg22: memref<1x1x128xf32, #tpu.memory_space<vmem>>) attributes {dimension_semantics = [#tpu.dimension_semantics<parallel>], iteration_bounds = array<i64: 2>, scalar_prefetch = 0 : i64, scratch_operands = 0 : i64, tpu.core_type = #tpu.core_type<tc>, window_params = [{transform_indices = @transform_0, window_bounds = array<i64: 8, 32>}, {transform_indices = @transform_1, window_bounds = array<i64: 1, 1, 8>}, {pipeline_mode = #tpu.pipeline_mode<synchronous>, transform_indices = @transform_2, window_bounds = array<i64: 1, 32>}, {pipeline_mode = #tpu.pipeline_mode<synchronous>, transform_indices = @transform_3, window_bounds = array<i64: 1, 32>}, {pipeline_mode = #tpu.pipeline_mode<synchronous>, transform_indices = @transform_4, window_bounds = array<i64: 2, 32, 96>}, {pipeline_mode = #tpu.pipeline_mode<synchronous>, transform_indices = @transform_5, window_bounds = array<i64: 2, 1, 96>}, {pipeline_mode = #tpu.pipeline_mode<synchronous>, transform_indices = @transform_6, window_bounds = array<i64: 2, 32, 32>}, {pipeline_mode = #tpu.pipeline_mode<synchronous>, transform_indices = @transform_7, window_bounds = array<i64: 2, 1, 32>}, {pipeline_mode = #tpu.pipeline_mode<synchronous>, transform_indices = @transform_8, window_bounds = array<i64: 2, 1, 32>}, {pipeline_mode = #tpu.pipeline_mode<synchronous>, transform_indices = @transform_9, window_bounds = array<i64: 2, 1, 32>}, {pipeline_mode = #tpu.pipeline_mode<synchronous>, transform_indices = @transform_10, window_bounds = array<i64: 2, 32, 64>}, {pipeline_mode = #tpu.pipeline_mode<synchronous>, transform_indices = @transform_11, window_bounds = array<i64: 2, 1, 64>}, {pipeline_mode = #tpu.pipeline_mode<synchronous>, transform_indices = @transform_12, window_bounds = array<i64: 2, 64, 32>}, {pipeline_mode = #tpu.pipeline_mode<synchronous>, transform_indices = @transform_13, window_bounds = array<i64: 2, 1, 32>}, {pipeline_mode = #tpu.pipeline_mode<synchronous>, transform_indices = @transform_14, window_bounds = array<i64: 2, 1, 32>}, {pipeline_mode = #tpu.pipeline_mode<synchronous>, transform_indices = @transform_15, window_bounds = array<i64: 2, 1, 32>}, {pipeline_mode = #tpu.pipeline_mode<synchronous>, transform_indices = @transform_16, window_bounds = array<i64: 32, 32>}, {pipeline_mode = #tpu.pipeline_mode<synchronous>, transform_indices = @transform_17, window_bounds = array<i64: 1, 32>}, {pipeline_mode = #tpu.pipeline_mode<synchronous>, transform_indices = @transform_18, window_bounds = array<i64: 32, 128>}, {pipeline_mode = #tpu.pipeline_mode<synchronous>, transform_indices = @transform_19, window_bounds = array<i64: 1, 128>}, {transform_indices = @transform_20, window_bounds = array<i64: 8, 32>}, {transform_indices = @transform_21, window_bounds = array<i64: 1, 1, 128>}]} {
    %c0 = arith.constant 0 : index
    %c0_0 = arith.constant 0 : index
    %0 = vector.load %arg1[%c0, %c0_0] : memref<8x32xf32, #tpu.memory_space<vmem>>, vector<8x32xf32>
    %c0_1 = arith.constant 0 : index
    %c0_2 = arith.constant 0 : index
    %1 = vector.load %arg3[%c0_1, %c0_2] : memref<1x32xf32, #tpu.memory_space<vmem>>, vector<1x32xf32>
    %c0_3 = arith.constant 0 : index
    %c0_4 = arith.constant 0 : index
    %2 = vector.load %arg4[%c0_3, %c0_4] : memref<1x32xf32, #tpu.memory_space<vmem>>, vector<1x32xf32>
    %cst = arith.constant dense<0.000000e+00> : vector<8xf32>
    %3 = vector.multi_reduction <add>, %0, %cst [1] : vector<8x32xf32> to vector<8xf32>
    %4 = vector.shape_cast %3 : vector<8xf32> to vector<8x1xf32>
    %cst_5 = arith.constant 3.200000e+01 : f32
    %5 = vector.broadcast %cst_5 : f32 to vector<8x1xf32>
    %6 = arith.divf %4, %5 : vector<8x1xf32>
    %7 = vector.broadcast %6 : vector<8x1xf32> to vector<8x32xf32>
    %8 = arith.subf %0, %7 : vector<8x32xf32>
    %9 = arith.mulf %8, %8 : vector<8x32xf32>
    %cst_6 = arith.constant dense<0.000000e+00> : vector<8xf32>
    %10 = vector.multi_reduction <add>, %9, %cst_6 [1] : vector<8x32xf32> to vector<8xf32>
    %11 = vector.shape_cast %10 : vector<8xf32> to vector<8x1xf32>
    %cst_7 = arith.constant 3.200000e+01 : f32
    %12 = vector.broadcast %cst_7 : f32 to vector<8x1xf32>
    %13 = arith.divf %11, %12 : vector<8x1xf32>
    %cst_8 = arith.constant 9.99999996E-13 : f32
    %14 = vector.broadcast %cst_8 : f32 to vector<8x1xf32>
    %15 = arith.addf %13, %14 : vector<8x1xf32>
    %16 = math.rsqrt %15 : vector<8x1xf32>
    %17 = vector.broadcast %16 : vector<8x1xf32> to vector<8x32xf32>
    %18 = arith.mulf %8, %17 : vector<8x32xf32>
    %19 = vector.broadcast %1 : vector<1x32xf32> to vector<8x32xf32>
    %20 = arith.mulf %18, %19 : vector<8x32xf32>
    %21 = vector.broadcast %2 : vector<1x32xf32> to vector<8x32xf32>
    %22 = arith.addf %20, %21 : vector<8x32xf32>
    %c0_9 = arith.constant 0 : index
    %c0_10 = arith.constant 0 : index
    %c0_11 = arith.constant 0 : index
    %23 = vector.load %arg2[%c0_9, %c0_10, %c0_11] : memref<1x1x8xf32, #tpu.memory_space<vmem>>, vector<1x1x8xf32>
    %24 = vector.shape_cast %23 : vector<1x1x8xf32> to vector<1x8xf32>
    %cst_12 = arith.constant 1.000000e+00 : f32
    %25 = vector.broadcast %cst_12 : f32 to vector<1x8xf32>
    %26 = arith.subf %25, %24 : vector<1x8xf32>
    %cst_13 = arith.constant -1.000000e+09 : f32
    %27 = vector.broadcast %cst_13 : f32 to vector<1x8xf32>
    %28 = arith.mulf %26, %27 : vector<1x8xf32>
    %29 = arith.truncf %22 : vector<8x32xf32> to vector<8x32xbf16>
    %c0_14 = arith.constant 0 : index
    %c0_15 = arith.constant 0 : index
    %c0_16 = arith.constant 0 : index
    %30 = vector.load %arg5[%c0_14, %c0_15, %c0_16] : memref<2x32x96xbf16, #tpu.memory_space<vmem>>, vector<1x32x96xbf16>
    %31 = vector.shape_cast %30 : vector<1x32x96xbf16> to vector<32x96xbf16>
    %cst_17 = arith.constant dense<0.000000e+00> : vector<8x96xf32>
    %32 = tpu.matmul %29, %31, %cst_17 {dimension_numbers = #tpu.dot_dimension_numbers<[1], [0], [0], [1], [0, 0, 1, 1], [], []>} : vector<8x32xbf16>, vector<32x96xbf16>, vector<8x96xf32> -> vector<8x96xf32>
    %c0_18 = arith.constant 0 : index
    %c0_19 = arith.constant 0 : index
    %c0_20 = arith.constant 0 : index
    %33 = vector.load %arg6[%c0_18, %c0_19, %c0_20] : memref<2x1x96xf32, #tpu.memory_space<vmem>>, vector<1x1x96xf32>
    %34 = vector.shape_cast %33 : vector<1x1x96xf32> to vector<1x96xf32>
    %35 = vector.broadcast %34 : vector<1x96xf32> to vector<8x96xf32>
    %36 = arith.addf %32, %35 : vector<8x96xf32>
    %37 = vector.extract_strided_slice %36 {offsets = [0, 0], sizes = [8, 32], strides = [1, 1]} : vector<8x96xf32> to vector<8x32xf32>
    %cst_21 = arith.constant 0.353553385 : f32
    %38 = vector.broadcast %cst_21 : f32 to vector<8x32xf32>
    %39 = arith.mulf %37, %38 : vector<8x32xf32>
    %40 = vector.extract_strided_slice %36 {offsets = [0, 32], sizes = [8, 32], strides = [1, 1]} : vector<8x96xf32> to vector<8x32xf32>
    %41 = vector.extract_strided_slice %36 {offsets = [0, 64], sizes = [8, 32], strides = [1, 1]} : vector<8x96xf32> to vector<8x32xf32>
    %42 = vector.extract_strided_slice %39 {offsets = [0, 0], sizes = [8, 8], strides = [1, 1]} : vector<8x32xf32> to vector<8x8xf32>
    %43 = vector.extract_strided_slice %40 {offsets = [0, 0], sizes = [8, 8], strides = [1, 1]} : vector<8x32xf32> to vector<8x8xf32>
    %44 = vector.extract_strided_slice %41 {offsets = [0, 0], sizes = [8, 8], strides = [1, 1]} : vector<8x32xf32> to vector<8x8xf32>
    %45 = arith.truncf %42 : vector<8x8xf32> to vector<8x8xbf16>
    %46 = arith.truncf %43 : vector<8x8xf32> to vector<8x8xbf16>
    "tpu.trace_start"() <{level = 10 : i32, message = "qd,kd->qk"}> : () -> ()
    %cst_22 = arith.constant dense<0.000000e+00> : vector<8x8xf32>
    %47 = tpu.matmul %45, %46, %cst_22 {dimension_numbers = #tpu.dot_dimension_numbers<[1], [1], [0], [0], [0, 0, 1, 0], [], []>} : vector<8x8xbf16>, vector<8x8xbf16>, vector<8x8xf32> -> vector<8x8xf32>
    "tpu.trace_stop"() : () -> ()
    %48 = vector.broadcast %28 : vector<1x8xf32> to vector<8x8xf32>
    %49 = arith.addf %47, %48 : vector<8x8xf32>
    %cst_23 = arith.constant dense<0xFF800000> : vector<8xf32>
    %50 = vector.multi_reduction <maximumf>, %49, %cst_23 [1] : vector<8x8xf32> to vector<8xf32>
    %51 = vector.shape_cast %50 : vector<8xf32> to vector<8x1xf32>
    %52 = vector.broadcast %51 : vector<8x1xf32> to vector<8x8xf32>
    %53 = arith.subf %49, %52 : vector<8x8xf32>
    %54 = math.exp %53 : vector<8x8xf32>
    %cst_24 = arith.constant dense<0.000000e+00> : vector<8xf32>
    %55 = vector.multi_reduction <add>, %54, %cst_24 [1] : vector<8x8xf32> to vector<8xf32>
    %56 = vector.shape_cast %55 : vector<8xf32> to vector<8x1xf32>
    %57 = tpu.reciprocal %56 {approx = true} : vector<8x1xf32> -> vector<8x1xf32>
    %58 = vector.broadcast %57 : vector<8x1xf32> to vector<8x8xf32>
    %59 = arith.mulf %54, %58 : vector<8x8xf32>
    %60 = arith.truncf %59 : vector<8x8xf32> to vector<8x8xbf16>
    %61 = arith.truncf %44 : vector<8x8xf32> to vector<8x8xbf16>
    %cst_25 = arith.constant dense<0.000000e+00> : vector<8x8xf32>
    %62 = tpu.matmul %60, %61, %cst_25 {dimension_numbers = #tpu.dot_dimension_numbers<[1], [0], [0], [1], [0, 0, 1, 1], [], []>} : vector<8x8xbf16>, vector<8x8xbf16>, vector<8x8xf32> -> vector<8x8xf32>
    %63 = vector.extract_strided_slice %39 {offsets = [0, 8], sizes = [8, 8], strides = [1, 1]} : vector<8x32xf32> to vector<8x8xf32>
    %64 = vector.extract_strided_slice %40 {offsets = [0, 8], sizes = [8, 8], strides = [1, 1]} : vector<8x32xf32> to vector<8x8xf32>
    %65 = vector.extract_strided_slice %41 {offsets = [0, 8], sizes = [8, 8], strides = [1, 1]} : vector<8x32xf32> to vector<8x8xf32>
    %66 = arith.truncf %63 : vector<8x8xf32> to vector<8x8xbf16>
    %67 = arith.truncf %64 : vector<8x8xf32> to vector<8x8xbf16>
    "tpu.trace_start"() <{level = 10 : i32, message = "qd,kd->qk"}> : () -> ()
    %cst_26 = arith.constant dense<0.000000e+00> : vector<8x8xf32>
    %68 = tpu.matmul %66, %67, %cst_26 {dimension_numbers = #tpu.dot_dimension_numbers<[1], [1], [0], [0], [0, 0, 1, 0], [], []>} : vector<8x8xbf16>, vector<8x8xbf16>, vector<8x8xf32> -> vector<8x8xf32>
    "tpu.trace_stop"() : () -> ()
    %69 = vector.broadcast %28 : vector<1x8xf32> to vector<8x8xf32>
    %70 = arith.addf %68, %69 : vector<8x8xf32>
    %cst_27 = arith.constant dense<0xFF800000> : vector<8xf32>
    %71 = vector.multi_reduction <maximumf>, %70, %cst_27 [1] : vector<8x8xf32> to vector<8xf32>
    %72 = vector.shape_cast %71 : vector<8xf32> to vector<8x1xf32>
    %73 = vector.broadcast %72 : vector<8x1xf32> to vector<8x8xf32>
    %74 = arith.subf %70, %73 : vector<8x8xf32>
    %75 = math.exp %74 : vector<8x8xf32>
    %cst_28 = arith.constant dense<0.000000e+00> : vector<8xf32>
    %76 = vector.multi_reduction <add>, %75, %cst_28 [1] : vector<8x8xf32> to vector<8xf32>
    %77 = vector.shape_cast %76 : vector<8xf32> to vector<8x1xf32>
    %78 = tpu.reciprocal %77 {approx = true} : vector<8x1xf32> -> vector<8x1xf32>
    %79 = vector.broadcast %78 : vector<8x1xf32> to vector<8x8xf32>
    %80 = arith.mulf %75, %79 : vector<8x8xf32>
    %81 = arith.truncf %80 : vector<8x8xf32> to vector<8x8xbf16>
    %82 = arith.truncf %65 : vector<8x8xf32> to vector<8x8xbf16>
    %cst_29 = arith.constant dense<0.000000e+00> : vector<8x8xf32>
    %83 = tpu.matmul %81, %82, %cst_29 {dimension_numbers = #tpu.dot_dimension_numbers<[1], [0], [0], [1], [0, 0, 1, 1], [], []>} : vector<8x8xbf16>, vector<8x8xbf16>, vector<8x8xf32> -> vector<8x8xf32>
    %84 = vector.extract_strided_slice %39 {offsets = [0, 16], sizes = [8, 8], strides = [1, 1]} : vector<8x32xf32> to vector<8x8xf32>
    %85 = vector.extract_strided_slice %40 {offsets = [0, 16], sizes = [8, 8], strides = [1, 1]} : vector<8x32xf32> to vector<8x8xf32>
    %86 = vector.extract_strided_slice %41 {offsets = [0, 16], sizes = [8, 8], strides = [1, 1]} : vector<8x32xf32> to vector<8x8xf32>
    %87 = arith.truncf %84 : vector<8x8xf32> to vector<8x8xbf16>
    %88 = arith.truncf %85 : vector<8x8xf32> to vector<8x8xbf16>
    "tpu.trace_start"() <{level = 10 : i32, message = "qd,kd->qk"}> : () -> ()
    %cst_30 = arith.constant dense<0.000000e+00> : vector<8x8xf32>
    %89 = tpu.matmul %87, %88, %cst_30 {dimension_numbers = #tpu.dot_dimension_numbers<[1], [1], [0], [0], [0, 0, 1, 0], [], []>} : vector<8x8xbf16>, vector<8x8xbf16>, vector<8x8xf32> -> vector<8x8xf32>
    "tpu.trace_stop"() : () -> ()
    %90 = vector.broadcast %28 : vector<1x8xf32> to vector<8x8xf32>
    %91 = arith.addf %89, %90 : vector<8x8xf32>
    %cst_31 = arith.constant dense<0xFF800000> : vector<8xf32>
    %92 = vector.multi_reduction <maximumf>, %91, %cst_31 [1] : vector<8x8xf32> to vector<8xf32>
    %93 = vector.shape_cast %92 : vector<8xf32> to vector<8x1xf32>
    %94 = vector.broadcast %93 : vector<8x1xf32> to vector<8x8xf32>
    %95 = arith.subf %91, %94 : vector<8x8xf32>
    %96 = math.exp %95 : vector<8x8xf32>
    %cst_32 = arith.constant dense<0.000000e+00> : vector<8xf32>
    %97 = vector.multi_reduction <add>, %96, %cst_32 [1] : vector<8x8xf32> to vector<8xf32>
    %98 = vector.shape_cast %97 : vector<8xf32> to vector<8x1xf32>
    %99 = tpu.reciprocal %98 {approx = true} : vector<8x1xf32> -> vector<8x1xf32>
    %100 = vector.broadcast %99 : vector<8x1xf32> to vector<8x8xf32>
    %101 = arith.mulf %96, %100 : vector<8x8xf32>
    %102 = arith.truncf %101 : vector<8x8xf32> to vector<8x8xbf16>
    %103 = arith.truncf %86 : vector<8x8xf32> to vector<8x8xbf16>
    %cst_33 = arith.constant dense<0.000000e+00> : vector<8x8xf32>
    %104 = tpu.matmul %102, %103, %cst_33 {dimension_numbers = #tpu.dot_dimension_numbers<[1], [0], [0], [1], [0, 0, 1, 1], [], []>} : vector<8x8xbf16>, vector<8x8xbf16>, vector<8x8xf32> -> vector<8x8xf32>
    %105 = vector.extract_strided_slice %39 {offsets = [0, 24], sizes = [8, 8], strides = [1, 1]} : vector<8x32xf32> to vector<8x8xf32>
    %106 = vector.extract_strided_slice %40 {offsets = [0, 24], sizes = [8, 8], strides = [1, 1]} : vector<8x32xf32> to vector<8x8xf32>
    %107 = vector.extract_strided_slice %41 {offsets = [0, 24], sizes = [8, 8], strides = [1, 1]} : vector<8x32xf32> to vector<8x8xf32>
    %108 = arith.truncf %105 : vector<8x8xf32> to vector<8x8xbf16>
    %109 = arith.truncf %106 : vector<8x8xf32> to vector<8x8xbf16>
    "tpu.trace_start"() <{level = 10 : i32, message = "qd,kd->qk"}> : () -> ()
    %cst_34 = arith.constant dense<0.000000e+00> : vector<8x8xf32>
    %110 = tpu.matmul %108, %109, %cst_34 {dimension_numbers = #tpu.dot_dimension_numbers<[1], [1], [0], [0], [0, 0, 1, 0], [], []>} : vector<8x8xbf16>, vector<8x8xbf16>, vector<8x8xf32> -> vector<8x8xf32>
    "tpu.trace_stop"() : () -> ()
    %111 = vector.broadcast %28 : vector<1x8xf32> to vector<8x8xf32>
    %112 = arith.addf %110, %111 : vector<8x8xf32>
    %cst_35 = arith.constant dense<0xFF800000> : vector<8xf32>
    %113 = vector.multi_reduction <maximumf>, %112, %cst_35 [1] : vector<8x8xf32> to vector<8xf32>
    %114 = vector.shape_cast %113 : vector<8xf32> to vector<8x1xf32>
    %115 = vector.broadcast %114 : vector<8x1xf32> to vector<8x8xf32>
    %116 = arith.subf %112, %115 : vector<8x8xf32>
    %117 = math.exp %116 : vector<8x8xf32>
    %cst_36 = arith.constant dense<0.000000e+00> : vector<8xf32>
    %118 = vector.multi_reduction <add>, %117, %cst_36 [1] : vector<8x8xf32> to vector<8xf32>
    %119 = vector.shape_cast %118 : vector<8xf32> to vector<8x1xf32>
    %120 = tpu.reciprocal %119 {approx = true} : vector<8x1xf32> -> vector<8x1xf32>
    %121 = vector.broadcast %120 : vector<8x1xf32> to vector<8x8xf32>
    %122 = arith.mulf %117, %121 : vector<8x8xf32>
    %123 = arith.truncf %122 : vector<8x8xf32> to vector<8x8xbf16>
    %124 = arith.truncf %107 : vector<8x8xf32> to vector<8x8xbf16>
    %cst_37 = arith.constant dense<0.000000e+00> : vector<8x8xf32>
    %125 = tpu.matmul %123, %124, %cst_37 {dimension_numbers = #tpu.dot_dimension_numbers<[1], [0], [0], [1], [0, 0, 1, 1], [], []>} : vector<8x8xbf16>, vector<8x8xbf16>, vector<8x8xf32> -> vector<8x8xf32>
    %126 = tpu.concatenate %62, %83, %104, %125 in 1 : vector<8x8xf32>, vector<8x8xf32>, vector<8x8xf32>, vector<8x8xf32> -> vector<8x32xf32>
    %127 = arith.truncf %126 : vector<8x32xf32> to vector<8x32xbf16>
    %c0_38 = arith.constant 0 : index
    %c0_39 = arith.constant 0 : index
    %c0_40 = arith.constant 0 : index
    %128 = vector.load %arg7[%c0_38, %c0_39, %c0_40] : memref<2x32x32xbf16, #tpu.memory_space<vmem>>, vector<1x32x32xbf16>
    %129 = vector.shape_cast %128 : vector<1x32x32xbf16> to vector<32x32xbf16>
    %cst_41 = arith.constant dense<0.000000e+00> : vector<8x32xf32>
    %130 = tpu.matmul %127, %129, %cst_41 {dimension_numbers = #tpu.dot_dimension_numbers<[1], [0], [0], [1], [0, 0, 1, 1], [], []>} : vector<8x32xbf16>, vector<32x32xbf16>, vector<8x32xf32> -> vector<8x32xf32>
    %c0_42 = arith.constant 0 : index
    %c0_43 = arith.constant 0 : index
    %c0_44 = arith.constant 0 : index
    %131 = vector.load %arg8[%c0_42, %c0_43, %c0_44] : memref<2x1x32xf32, #tpu.memory_space<vmem>>, vector<1x1x32xf32>
    %132 = vector.shape_cast %131 : vector<1x1x32xf32> to vector<1x32xf32>
    %133 = vector.broadcast %132 : vector<1x32xf32> to vector<8x32xf32>
    %134 = arith.addf %130, %133 : vector<8x32xf32>
    %135 = arith.addf %134, %22 : vector<8x32xf32>
    %c0_45 = arith.constant 0 : index
    %c0_46 = arith.constant 0 : index
    %c0_47 = arith.constant 0 : index
    %136 = vector.load %arg9[%c0_45, %c0_46, %c0_47] : memref<2x1x32xf32, #tpu.memory_space<vmem>>, vector<1x1x32xf32>
    %137 = vector.shape_cast %136 : vector<1x1x32xf32> to vector<1x32xf32>
    %c0_48 = arith.constant 0 : index
    %c0_49 = arith.constant 0 : index
    %c0_50 = arith.constant 0 : index
    %138 = vector.load %arg10[%c0_48, %c0_49, %c0_50] : memref<2x1x32xf32, #tpu.memory_space<vmem>>, vector<1x1x32xf32>
    %139 = vector.shape_cast %138 : vector<1x1x32xf32> to vector<1x32xf32>
    %cst_51 = arith.constant dense<0.000000e+00> : vector<8xf32>
    %140 = vector.multi_reduction <add>, %135, %cst_51 [1] : vector<8x32xf32> to vector<8xf32>
    %141 = vector.shape_cast %140 : vector<8xf32> to vector<8x1xf32>
    %cst_52 = arith.constant 3.200000e+01 : f32
    %142 = vector.broadcast %cst_52 : f32 to vector<8x1xf32>
    %143 = arith.divf %141, %142 : vector<8x1xf32>
    %144 = vector.broadcast %143 : vector<8x1xf32> to vector<8x32xf32>
    %145 = arith.subf %135, %144 : vector<8x32xf32>
    %146 = arith.mulf %145, %145 : vector<8x32xf32>
    %cst_53 = arith.constant dense<0.000000e+00> : vector<8xf32>
    %147 = vector.multi_reduction <add>, %146, %cst_53 [1] : vector<8x32xf32> to vector<8xf32>
    %148 = vector.shape_cast %147 : vector<8xf32> to vector<8x1xf32>
    %cst_54 = arith.constant 3.200000e+01 : f32
    %149 = vector.broadcast %cst_54 : f32 to vector<8x1xf32>
    %150 = arith.divf %148, %149 : vector<8x1xf32>
    %cst_55 = arith.constant 9.99999996E-13 : f32
    %151 = vector.broadcast %cst_55 : f32 to vector<8x1xf32>
    %152 = arith.addf %150, %151 : vector<8x1xf32>
    %153 = math.rsqrt %152 : vector<8x1xf32>
    %154 = vector.broadcast %153 : vector<8x1xf32> to vector<8x32xf32>
    %155 = arith.mulf %145, %154 : vector<8x32xf32>
    %156 = vector.broadcast %137 : vector<1x32xf32> to vector<8x32xf32>
    %157 = arith.mulf %155, %156 : vector<8x32xf32>
    %158 = vector.broadcast %139 : vector<1x32xf32> to vector<8x32xf32>
    %159 = arith.addf %157, %158 : vector<8x32xf32>
    %160 = arith.truncf %159 : vector<8x32xf32> to vector<8x32xbf16>
    %c0_56 = arith.constant 0 : index
    %c0_57 = arith.constant 0 : index
    %c0_58 = arith.constant 0 : index
    %161 = vector.load %arg11[%c0_56, %c0_57, %c0_58] : memref<2x32x64xbf16, #tpu.memory_space<vmem>>, vector<1x32x64xbf16>
    %162 = vector.shape_cast %161 : vector<1x32x64xbf16> to vector<32x64xbf16>
    %cst_59 = arith.constant dense<0.000000e+00> : vector<8x64xf32>
    %163 = tpu.matmul %160, %162, %cst_59 {dimension_numbers = #tpu.dot_dimension_numbers<[1], [0], [0], [1], [0, 0, 1, 1], [], []>} : vector<8x32xbf16>, vector<32x64xbf16>, vector<8x64xf32> -> vector<8x64xf32>
    %c0_60 = arith.constant 0 : index
    %c0_61 = arith.constant 0 : index
    %c0_62 = arith.constant 0 : index
    %164 = vector.load %arg12[%c0_60, %c0_61, %c0_62] : memref<2x1x64xf32, #tpu.memory_space<vmem>>, vector<1x1x64xf32>
    %165 = vector.shape_cast %164 : vector<1x1x64xf32> to vector<1x64xf32>
    %166 = vector.broadcast %165 : vector<1x64xf32> to vector<8x64xf32>
    %167 = arith.addf %163, %166 : vector<8x64xf32>
    %cst_63 = arith.constant 5.000000e-01 : f32
    %168 = vector.broadcast %cst_63 : f32 to vector<8x64xf32>
    %169 = arith.mulf %168, %167 : vector<8x64xf32>
    %cst_64 = arith.constant 4.471500e-02 : f32
    %170 = vector.broadcast %cst_64 : f32 to vector<8x64xf32>
    %171 = arith.mulf %170, %167 : vector<8x64xf32>
    %172 = arith.mulf %171, %167 : vector<8x64xf32>
    %173 = arith.mulf %172, %167 : vector<8x64xf32>
    %174 = arith.addf %167, %173 : vector<8x64xf32>
    %cst_65 = arith.constant 0.797884583 : f32
    %175 = vector.broadcast %cst_65 : f32 to vector<8x64xf32>
    %176 = arith.mulf %175, %174 : vector<8x64xf32>
    %177 = math.tanh %176 : vector<8x64xf32>
    %cst_66 = arith.constant 1.000000e+00 : f32
    %178 = vector.broadcast %cst_66 : f32 to vector<8x64xf32>
    %179 = arith.addf %178, %177 : vector<8x64xf32>
    %180 = arith.mulf %169, %179 : vector<8x64xf32>
    %181 = arith.truncf %180 : vector<8x64xf32> to vector<8x64xbf16>
    %c0_67 = arith.constant 0 : index
    %c0_68 = arith.constant 0 : index
    %c0_69 = arith.constant 0 : index
    %182 = vector.load %arg13[%c0_67, %c0_68, %c0_69] : memref<2x64x32xbf16, #tpu.memory_space<vmem>>, vector<1x64x32xbf16>
    %183 = vector.shape_cast %182 : vector<1x64x32xbf16> to vector<64x32xbf16>
    %cst_70 = arith.constant dense<0.000000e+00> : vector<8x32xf32>
    %184 = tpu.matmul %181, %183, %cst_70 {dimension_numbers = #tpu.dot_dimension_numbers<[1], [0], [0], [1], [0, 0, 1, 1], [], []>} : vector<8x64xbf16>, vector<64x32xbf16>, vector<8x32xf32> -> vector<8x32xf32>
    %c0_71 = arith.constant 0 : index
    %c0_72 = arith.constant 0 : index
    %c0_73 = arith.constant 0 : index
    %185 = vector.load %arg14[%c0_71, %c0_72, %c0_73] : memref<2x1x32xf32, #tpu.memory_space<vmem>>, vector<1x1x32xf32>
    %186 = vector.shape_cast %185 : vector<1x1x32xf32> to vector<1x32xf32>
    %187 = vector.broadcast %186 : vector<1x32xf32> to vector<8x32xf32>
    %188 = arith.addf %184, %187 : vector<8x32xf32>
    %189 = arith.addf %188, %159 : vector<8x32xf32>
    %c0_74 = arith.constant 0 : index
    %c0_75 = arith.constant 0 : index
    %c0_76 = arith.constant 0 : index
    %190 = vector.load %arg15[%c0_74, %c0_75, %c0_76] : memref<2x1x32xf32, #tpu.memory_space<vmem>>, vector<1x1x32xf32>
    %191 = vector.shape_cast %190 : vector<1x1x32xf32> to vector<1x32xf32>
    %c0_77 = arith.constant 0 : index
    %c0_78 = arith.constant 0 : index
    %c0_79 = arith.constant 0 : index
    %192 = vector.load %arg16[%c0_77, %c0_78, %c0_79] : memref<2x1x32xf32, #tpu.memory_space<vmem>>, vector<1x1x32xf32>
    %193 = vector.shape_cast %192 : vector<1x1x32xf32> to vector<1x32xf32>
    %cst_80 = arith.constant dense<0.000000e+00> : vector<8xf32>
    %194 = vector.multi_reduction <add>, %189, %cst_80 [1] : vector<8x32xf32> to vector<8xf32>
    %195 = vector.shape_cast %194 : vector<8xf32> to vector<8x1xf32>
    %cst_81 = arith.constant 3.200000e+01 : f32
    %196 = vector.broadcast %cst_81 : f32 to vector<8x1xf32>
    %197 = arith.divf %195, %196 : vector<8x1xf32>
    %198 = vector.broadcast %197 : vector<8x1xf32> to vector<8x32xf32>
    %199 = arith.subf %189, %198 : vector<8x32xf32>
    %200 = arith.mulf %199, %199 : vector<8x32xf32>
    %cst_82 = arith.constant dense<0.000000e+00> : vector<8xf32>
    %201 = vector.multi_reduction <add>, %200, %cst_82 [1] : vector<8x32xf32> to vector<8xf32>
    %202 = vector.shape_cast %201 : vector<8xf32> to vector<8x1xf32>
    %cst_83 = arith.constant 3.200000e+01 : f32
    %203 = vector.broadcast %cst_83 : f32 to vector<8x1xf32>
    %204 = arith.divf %202, %203 : vector<8x1xf32>
    %cst_84 = arith.constant 9.99999996E-13 : f32
    %205 = vector.broadcast %cst_84 : f32 to vector<8x1xf32>
    %206 = arith.addf %204, %205 : vector<8x1xf32>
    %207 = math.rsqrt %206 : vector<8x1xf32>
    %208 = vector.broadcast %207 : vector<8x1xf32> to vector<8x32xf32>
    %209 = arith.mulf %199, %208 : vector<8x32xf32>
    %210 = vector.broadcast %191 : vector<1x32xf32> to vector<8x32xf32>
    %211 = arith.mulf %209, %210 : vector<8x32xf32>
    %212 = vector.broadcast %193 : vector<1x32xf32> to vector<8x32xf32>
    %213 = arith.addf %211, %212 : vector<8x32xf32>
    %214 = arith.truncf %213 : vector<8x32xf32> to vector<8x32xbf16>
    %c1 = arith.constant 1 : index
    %c0_85 = arith.constant 0 : index
    %c0_86 = arith.constant 0 : index
    %215 = vector.load %arg5[%c1, %c0_85, %c0_86] : memref<2x32x96xbf16, #tpu.memory_space<vmem>>, vector<1x32x96xbf16>
    %216 = vector.shape_cast %215 : vector<1x32x96xbf16> to vector<32x96xbf16>
    %cst_87 = arith.constant dense<0.000000e+00> : vector<8x96xf32>
    %217 = tpu.matmul %214, %216, %cst_87 {dimension_numbers = #tpu.dot_dimension_numbers<[1], [0], [0], [1], [0, 0, 1, 1], [], []>} : vector<8x32xbf16>, vector<32x96xbf16>, vector<8x96xf32> -> vector<8x96xf32>
    %c1_88 = arith.constant 1 : index
    %c0_89 = arith.constant 0 : index
    %c0_90 = arith.constant 0 : index
    %218 = vector.load %arg6[%c1_88, %c0_89, %c0_90] : memref<2x1x96xf32, #tpu.memory_space<vmem>>, vector<1x1x96xf32>
    %219 = vector.shape_cast %218 : vector<1x1x96xf32> to vector<1x96xf32>
    %220 = vector.broadcast %219 : vector<1x96xf32> to vector<8x96xf32>
    %221 = arith.addf %217, %220 : vector<8x96xf32>
    %222 = vector.extract_strided_slice %221 {offsets = [0, 0], sizes = [8, 32], strides = [1, 1]} : vector<8x96xf32> to vector<8x32xf32>
    %cst_91 = arith.constant 0.353553385 : f32
    %223 = vector.broadcast %cst_91 : f32 to vector<8x32xf32>
    %224 = arith.mulf %222, %223 : vector<8x32xf32>
    %225 = vector.extract_strided_slice %221 {offsets = [0, 32], sizes = [8, 32], strides = [1, 1]} : vector<8x96xf32> to vector<8x32xf32>
    %226 = vector.extract_strided_slice %221 {offsets = [0, 64], sizes = [8, 32], strides = [1, 1]} : vector<8x96xf32> to vector<8x32xf32>
    %227 = vector.extract_strided_slice %224 {offsets = [0, 0], sizes = [8, 8], strides = [1, 1]} : vector<8x32xf32> to vector<8x8xf32>
    %228 = vector.extract_strided_slice %225 {offsets = [0, 0], sizes = [8, 8], strides = [1, 1]} : vector<8x32xf32> to vector<8x8xf32>
    %229 = vector.extract_strided_slice %226 {offsets = [0, 0], sizes = [8, 8], strides = [1, 1]} : vector<8x32xf32> to vector<8x8xf32>
    %230 = arith.truncf %227 : vector<8x8xf32> to vector<8x8xbf16>
    %231 = arith.truncf %228 : vector<8x8xf32> to vector<8x8xbf16>
    "tpu.trace_start"() <{level = 10 : i32, message = "qd,kd->qk"}> : () -> ()
    %cst_92 = arith.constant dense<0.000000e+00> : vector<8x8xf32>
    %232 = tpu.matmul %230, %231, %cst_92 {dimension_numbers = #tpu.dot_dimension_numbers<[1], [1], [0], [0], [0, 0, 1, 0], [], []>} : vector<8x8xbf16>, vector<8x8xbf16>, vector<8x8xf32> -> vector<8x8xf32>
    "tpu.trace_stop"() : () -> ()
    %233 = vector.broadcast %28 : vector<1x8xf32> to vector<8x8xf32>
    %234 = arith.addf %232, %233 : vector<8x8xf32>
    %cst_93 = arith.constant dense<0xFF800000> : vector<8xf32>
    %235 = vector.multi_reduction <maximumf>, %234, %cst_93 [1] : vector<8x8xf32> to vector<8xf32>
    %236 = vector.shape_cast %235 : vector<8xf32> to vector<8x1xf32>
    %237 = vector.broadcast %236 : vector<8x1xf32> to vector<8x8xf32>
    %238 = arith.subf %234, %237 : vector<8x8xf32>
    %239 = math.exp %238 : vector<8x8xf32>
    %cst_94 = arith.constant dense<0.000000e+00> : vector<8xf32>
    %240 = vector.multi_reduction <add>, %239, %cst_94 [1] : vector<8x8xf32> to vector<8xf32>
    %241 = vector.shape_cast %240 : vector<8xf32> to vector<8x1xf32>
    %242 = tpu.reciprocal %241 {approx = true} : vector<8x1xf32> -> vector<8x1xf32>
    %243 = vector.broadcast %242 : vector<8x1xf32> to vector<8x8xf32>
    %244 = arith.mulf %239, %243 : vector<8x8xf32>
    %245 = arith.truncf %244 : vector<8x8xf32> to vector<8x8xbf16>
    %246 = arith.truncf %229 : vector<8x8xf32> to vector<8x8xbf16>
    %cst_95 = arith.constant dense<0.000000e+00> : vector<8x8xf32>
    %247 = tpu.matmul %245, %246, %cst_95 {dimension_numbers = #tpu.dot_dimension_numbers<[1], [0], [0], [1], [0, 0, 1, 1], [], []>} : vector<8x8xbf16>, vector<8x8xbf16>, vector<8x8xf32> -> vector<8x8xf32>
    %248 = vector.extract_strided_slice %224 {offsets = [0, 8], sizes = [8, 8], strides = [1, 1]} : vector<8x32xf32> to vector<8x8xf32>
    %249 = vector.extract_strided_slice %225 {offsets = [0, 8], sizes = [8, 8], strides = [1, 1]} : vector<8x32xf32> to vector<8x8xf32>
    %250 = vector.extract_strided_slice %226 {offsets = [0, 8], sizes = [8, 8], strides = [1, 1]} : vector<8x32xf32> to vector<8x8xf32>
    %251 = arith.truncf %248 : vector<8x8xf32> to vector<8x8xbf16>
    %252 = arith.truncf %249 : vector<8x8xf32> to vector<8x8xbf16>
    "tpu.trace_start"() <{level = 10 : i32, message = "qd,kd->qk"}> : () -> ()
    %cst_96 = arith.constant dense<0.000000e+00> : vector<8x8xf32>
    %253 = tpu.matmul %251, %252, %cst_96 {dimension_numbers = #tpu.dot_dimension_numbers<[1], [1], [0], [0], [0, 0, 1, 0], [], []>} : vector<8x8xbf16>, vector<8x8xbf16>, vector<8x8xf32> -> vector<8x8xf32>
    "tpu.trace_stop"() : () -> ()
    %254 = vector.broadcast %28 : vector<1x8xf32> to vector<8x8xf32>
    %255 = arith.addf %253, %254 : vector<8x8xf32>
    %cst_97 = arith.constant dense<0xFF800000> : vector<8xf32>
    %256 = vector.multi_reduction <maximumf>, %255, %cst_97 [1] : vector<8x8xf32> to vector<8xf32>
    %257 = vector.shape_cast %256 : vector<8xf32> to vector<8x1xf32>
    %258 = vector.broadcast %257 : vector<8x1xf32> to vector<8x8xf32>
    %259 = arith.subf %255, %258 : vector<8x8xf32>
    %260 = math.exp %259 : vector<8x8xf32>
    %cst_98 = arith.constant dense<0.000000e+00> : vector<8xf32>
    %261 = vector.multi_reduction <add>, %260, %cst_98 [1] : vector<8x8xf32> to vector<8xf32>
    %262 = vector.shape_cast %261 : vector<8xf32> to vector<8x1xf32>
    %263 = tpu.reciprocal %262 {approx = true} : vector<8x1xf32> -> vector<8x1xf32>
    %264 = vector.broadcast %263 : vector<8x1xf32> to vector<8x8xf32>
    %265 = arith.mulf %260, %264 : vector<8x8xf32>
    %266 = arith.truncf %265 : vector<8x8xf32> to vector<8x8xbf16>
    %267 = arith.truncf %250 : vector<8x8xf32> to vector<8x8xbf16>
    %cst_99 = arith.constant dense<0.000000e+00> : vector<8x8xf32>
    %268 = tpu.matmul %266, %267, %cst_99 {dimension_numbers = #tpu.dot_dimension_numbers<[1], [0], [0], [1], [0, 0, 1, 1], [], []>} : vector<8x8xbf16>, vector<8x8xbf16>, vector<8x8xf32> -> vector<8x8xf32>
    %269 = vector.extract_strided_slice %224 {offsets = [0, 16], sizes = [8, 8], strides = [1, 1]} : vector<8x32xf32> to vector<8x8xf32>
    %270 = vector.extract_strided_slice %225 {offsets = [0, 16], sizes = [8, 8], strides = [1, 1]} : vector<8x32xf32> to vector<8x8xf32>
    %271 = vector.extract_strided_slice %226 {offsets = [0, 16], sizes = [8, 8], strides = [1, 1]} : vector<8x32xf32> to vector<8x8xf32>
    %272 = arith.truncf %269 : vector<8x8xf32> to vector<8x8xbf16>
    %273 = arith.truncf %270 : vector<8x8xf32> to vector<8x8xbf16>
    "tpu.trace_start"() <{level = 10 : i32, message = "qd,kd->qk"}> : () -> ()
    %cst_100 = arith.constant dense<0.000000e+00> : vector<8x8xf32>
    %274 = tpu.matmul %272, %273, %cst_100 {dimension_numbers = #tpu.dot_dimension_numbers<[1], [1], [0], [0], [0, 0, 1, 0], [], []>} : vector<8x8xbf16>, vector<8x8xbf16>, vector<8x8xf32> -> vector<8x8xf32>
    "tpu.trace_stop"() : () -> ()
    %275 = vector.broadcast %28 : vector<1x8xf32> to vector<8x8xf32>
    %276 = arith.addf %274, %275 : vector<8x8xf32>
    %cst_101 = arith.constant dense<0xFF800000> : vector<8xf32>
    %277 = vector.multi_reduction <maximumf>, %276, %cst_101 [1] : vector<8x8xf32> to vector<8xf32>
    %278 = vector.shape_cast %277 : vector<8xf32> to vector<8x1xf32>
    %279 = vector.broadcast %278 : vector<8x1xf32> to vector<8x8xf32>
    %280 = arith.subf %276, %279 : vector<8x8xf32>
    %281 = math.exp %280 : vector<8x8xf32>
    %cst_102 = arith.constant dense<0.000000e+00> : vector<8xf32>
    %282 = vector.multi_reduction <add>, %281, %cst_102 [1] : vector<8x8xf32> to vector<8xf32>
    %283 = vector.shape_cast %282 : vector<8xf32> to vector<8x1xf32>
    %284 = tpu.reciprocal %283 {approx = true} : vector<8x1xf32> -> vector<8x1xf32>
    %285 = vector.broadcast %284 : vector<8x1xf32> to vector<8x8xf32>
    %286 = arith.mulf %281, %285 : vector<8x8xf32>
    %287 = arith.truncf %286 : vector<8x8xf32> to vector<8x8xbf16>
    %288 = arith.truncf %271 : vector<8x8xf32> to vector<8x8xbf16>
    %cst_103 = arith.constant dense<0.000000e+00> : vector<8x8xf32>
    %289 = tpu.matmul %287, %288, %cst_103 {dimension_numbers = #tpu.dot_dimension_numbers<[1], [0], [0], [1], [0, 0, 1, 1], [], []>} : vector<8x8xbf16>, vector<8x8xbf16>, vector<8x8xf32> -> vector<8x8xf32>
    %290 = vector.extract_strided_slice %224 {offsets = [0, 24], sizes = [8, 8], strides = [1, 1]} : vector<8x32xf32> to vector<8x8xf32>
    %291 = vector.extract_strided_slice %225 {offsets = [0, 24], sizes = [8, 8], strides = [1, 1]} : vector<8x32xf32> to vector<8x8xf32>
    %292 = vector.extract_strided_slice %226 {offsets = [0, 24], sizes = [8, 8], strides = [1, 1]} : vector<8x32xf32> to vector<8x8xf32>
    %293 = arith.truncf %290 : vector<8x8xf32> to vector<8x8xbf16>
    %294 = arith.truncf %291 : vector<8x8xf32> to vector<8x8xbf16>
    "tpu.trace_start"() <{level = 10 : i32, message = "qd,kd->qk"}> : () -> ()
    %cst_104 = arith.constant dense<0.000000e+00> : vector<8x8xf32>
    %295 = tpu.matmul %293, %294, %cst_104 {dimension_numbers = #tpu.dot_dimension_numbers<[1], [1], [0], [0], [0, 0, 1, 0], [], []>} : vector<8x8xbf16>, vector<8x8xbf16>, vector<8x8xf32> -> vector<8x8xf32>
    "tpu.trace_stop"() : () -> ()
    %296 = vector.broadcast %28 : vector<1x8xf32> to vector<8x8xf32>
    %297 = arith.addf %295, %296 : vector<8x8xf32>
    %cst_105 = arith.constant dense<0xFF800000> : vector<8xf32>
    %298 = vector.multi_reduction <maximumf>, %297, %cst_105 [1] : vector<8x8xf32> to vector<8xf32>
    %299 = vector.shape_cast %298 : vector<8xf32> to vector<8x1xf32>
    %300 = vector.broadcast %299 : vector<8x1xf32> to vector<8x8xf32>
    %301 = arith.subf %297, %300 : vector<8x8xf32>
    %302 = math.exp %301 : vector<8x8xf32>
    %cst_106 = arith.constant dense<0.000000e+00> : vector<8xf32>
    %303 = vector.multi_reduction <add>, %302, %cst_106 [1] : vector<8x8xf32> to vector<8xf32>
    %304 = vector.shape_cast %303 : vector<8xf32> to vector<8x1xf32>
    %305 = tpu.reciprocal %304 {approx = true} : vector<8x1xf32> -> vector<8x1xf32>
    %306 = vector.broadcast %305 : vector<8x1xf32> to vector<8x8xf32>
    %307 = arith.mulf %302, %306 : vector<8x8xf32>
    %308 = arith.truncf %307 : vector<8x8xf32> to vector<8x8xbf16>
    %309 = arith.truncf %292 : vector<8x8xf32> to vector<8x8xbf16>
    %cst_107 = arith.constant dense<0.000000e+00> : vector<8x8xf32>
    %310 = tpu.matmul %308, %309, %cst_107 {dimension_numbers = #tpu.dot_dimension_numbers<[1], [0], [0], [1], [0, 0, 1, 1], [], []>} : vector<8x8xbf16>, vector<8x8xbf16>, vector<8x8xf32> -> vector<8x8xf32>
    %311 = tpu.concatenate %247, %268, %289, %310 in 1 : vector<8x8xf32>, vector<8x8xf32>, vector<8x8xf32>, vector<8x8xf32> -> vector<8x32xf32>
    %312 = arith.truncf %311 : vector<8x32xf32> to vector<8x32xbf16>
    %c1_108 = arith.constant 1 : index
    %c0_109 = arith.constant 0 : index
    %c0_110 = arith.constant 0 : index
    %313 = vector.load %arg7[%c1_108, %c0_109, %c0_110] : memref<2x32x32xbf16, #tpu.memory_space<vmem>>, vector<1x32x32xbf16>
    %314 = vector.shape_cast %313 : vector<1x32x32xbf16> to vector<32x32xbf16>
    %cst_111 = arith.constant dense<0.000000e+00> : vector<8x32xf32>
    %315 = tpu.matmul %312, %314, %cst_111 {dimension_numbers = #tpu.dot_dimension_numbers<[1], [0], [0], [1], [0, 0, 1, 1], [], []>} : vector<8x32xbf16>, vector<32x32xbf16>, vector<8x32xf32> -> vector<8x32xf32>
    %c1_112 = arith.constant 1 : index
    %c0_113 = arith.constant 0 : index
    %c0_114 = arith.constant 0 : index
    %316 = vector.load %arg8[%c1_112, %c0_113, %c0_114] : memref<2x1x32xf32, #tpu.memory_space<vmem>>, vector<1x1x32xf32>
    %317 = vector.shape_cast %316 : vector<1x1x32xf32> to vector<1x32xf32>
    %318 = vector.broadcast %317 : vector<1x32xf32> to vector<8x32xf32>
    %319 = arith.addf %315, %318 : vector<8x32xf32>
    %320 = arith.addf %319, %213 : vector<8x32xf32>
    %c1_115 = arith.constant 1 : index
    %c0_116 = arith.constant 0 : index
    %c0_117 = arith.constant 0 : index
    %321 = vector.load %arg9[%c1_115, %c0_116, %c0_117] : memref<2x1x32xf32, #tpu.memory_space<vmem>>, vector<1x1x32xf32>
    %322 = vector.shape_cast %321 : vector<1x1x32xf32> to vector<1x32xf32>
    %c1_118 = arith.constant 1 : index
    %c0_119 = arith.constant 0 : index
    %c0_120 = arith.constant 0 : index
    %323 = vector.load %arg10[%c1_118, %c0_119, %c0_120] : memref<2x1x32xf32, #tpu.memory_space<vmem>>, vector<1x1x32xf32>
    %324 = vector.shape_cast %323 : vector<1x1x32xf32> to vector<1x32xf32>
    %cst_121 = arith.constant dense<0.000000e+00> : vector<8xf32>
    %325 = vector.multi_reduction <add>, %320, %cst_121 [1] : vector<8x32xf32> to vector<8xf32>
    %326 = vector.shape_cast %325 : vector<8xf32> to vector<8x1xf32>
    %cst_122 = arith.constant 3.200000e+01 : f32
    %327 = vector.broadcast %cst_122 : f32 to vector<8x1xf32>
    %328 = arith.divf %326, %327 : vector<8x1xf32>
    %329 = vector.broadcast %328 : vector<8x1xf32> to vector<8x32xf32>
    %330 = arith.subf %320, %329 : vector<8x32xf32>
    %331 = arith.mulf %330, %330 : vector<8x32xf32>
    %cst_123 = arith.constant dense<0.000000e+00> : vector<8xf32>
    %332 = vector.multi_reduction <add>, %331, %cst_123 [1] : vector<8x32xf32> to vector<8xf32>
    %333 = vector.shape_cast %332 : vector<8xf32> to vector<8x1xf32>
    %cst_124 = arith.constant 3.200000e+01 : f32
    %334 = vector.broadcast %cst_124 : f32 to vector<8x1xf32>
    %335 = arith.divf %333, %334 : vector<8x1xf32>
    %cst_125 = arith.constant 9.99999996E-13 : f32
    %336 = vector.broadcast %cst_125 : f32 to vector<8x1xf32>
    %337 = arith.addf %335, %336 : vector<8x1xf32>
    %338 = math.rsqrt %337 : vector<8x1xf32>
    %339 = vector.broadcast %338 : vector<8x1xf32> to vector<8x32xf32>
    %340 = arith.mulf %330, %339 : vector<8x32xf32>
    %341 = vector.broadcast %322 : vector<1x32xf32> to vector<8x32xf32>
    %342 = arith.mulf %340, %341 : vector<8x32xf32>
    %343 = vector.broadcast %324 : vector<1x32xf32> to vector<8x32xf32>
    %344 = arith.addf %342, %343 : vector<8x32xf32>
    %345 = arith.truncf %344 : vector<8x32xf32> to vector<8x32xbf16>
    %c1_126 = arith.constant 1 : index
    %c0_127 = arith.constant 0 : index
    %c0_128 = arith.constant 0 : index
    %346 = vector.load %arg11[%c1_126, %c0_127, %c0_128] : memref<2x32x64xbf16, #tpu.memory_space<vmem>>, vector<1x32x64xbf16>
    %347 = vector.shape_cast %346 : vector<1x32x64xbf16> to vector<32x64xbf16>
    %cst_129 = arith.constant dense<0.000000e+00> : vector<8x64xf32>
    %348 = tpu.matmul %345, %347, %cst_129 {dimension_numbers = #tpu.dot_dimension_numbers<[1], [0], [0], [1], [0, 0, 1, 1], [], []>} : vector<8x32xbf16>, vector<32x64xbf16>, vector<8x64xf32> -> vector<8x64xf32>
    %c1_130 = arith.constant 1 : index
    %c0_131 = arith.constant 0 : index
    %c0_132 = arith.constant 0 : index
    %349 = vector.load %arg12[%c1_130, %c0_131, %c0_132] : memref<2x1x64xf32, #tpu.memory_space<vmem>>, vector<1x1x64xf32>
    %350 = vector.shape_cast %349 : vector<1x1x64xf32> to vector<1x64xf32>
    %351 = vector.broadcast %350 : vector<1x64xf32> to vector<8x64xf32>
    %352 = arith.addf %348, %351 : vector<8x64xf32>
    %cst_133 = arith.constant 5.000000e-01 : f32
    %353 = vector.broadcast %cst_133 : f32 to vector<8x64xf32>
    %354 = arith.mulf %353, %352 : vector<8x64xf32>
    %cst_134 = arith.constant 4.471500e-02 : f32
    %355 = vector.broadcast %cst_134 : f32 to vector<8x64xf32>
    %356 = arith.mulf %355, %352 : vector<8x64xf32>
    %357 = arith.mulf %356, %352 : vector<8x64xf32>
    %358 = arith.mulf %357, %352 : vector<8x64xf32>
    %359 = arith.addf %352, %358 : vector<8x64xf32>
    %cst_135 = arith.constant 0.797884583 : f32
    %360 = vector.broadcast %cst_135 : f32 to vector<8x64xf32>
    %361 = arith.mulf %360, %359 : vector<8x64xf32>
    %362 = math.tanh %361 : vector<8x64xf32>
    %cst_136 = arith.constant 1.000000e+00 : f32
    %363 = vector.broadcast %cst_136 : f32 to vector<8x64xf32>
    %364 = arith.addf %363, %362 : vector<8x64xf32>
    %365 = arith.mulf %354, %364 : vector<8x64xf32>
    %366 = arith.truncf %365 : vector<8x64xf32> to vector<8x64xbf16>
    %c1_137 = arith.constant 1 : index
    %c0_138 = arith.constant 0 : index
    %c0_139 = arith.constant 0 : index
    %367 = vector.load %arg13[%c1_137, %c0_138, %c0_139] : memref<2x64x32xbf16, #tpu.memory_space<vmem>>, vector<1x64x32xbf16>
    %368 = vector.shape_cast %367 : vector<1x64x32xbf16> to vector<64x32xbf16>
    %cst_140 = arith.constant dense<0.000000e+00> : vector<8x32xf32>
    %369 = tpu.matmul %366, %368, %cst_140 {dimension_numbers = #tpu.dot_dimension_numbers<[1], [0], [0], [1], [0, 0, 1, 1], [], []>} : vector<8x64xbf16>, vector<64x32xbf16>, vector<8x32xf32> -> vector<8x32xf32>
    %c1_141 = arith.constant 1 : index
    %c0_142 = arith.constant 0 : index
    %c0_143 = arith.constant 0 : index
    %370 = vector.load %arg14[%c1_141, %c0_142, %c0_143] : memref<2x1x32xf32, #tpu.memory_space<vmem>>, vector<1x1x32xf32>
    %371 = vector.shape_cast %370 : vector<1x1x32xf32> to vector<1x32xf32>
    %372 = vector.broadcast %371 : vector<1x32xf32> to vector<8x32xf32>
    %373 = arith.addf %369, %372 : vector<8x32xf32>
    %374 = arith.addf %373, %344 : vector<8x32xf32>
    %c1_144 = arith.constant 1 : index
    %c0_145 = arith.constant 0 : index
    %c0_146 = arith.constant 0 : index
    %375 = vector.load %arg15[%c1_144, %c0_145, %c0_146] : memref<2x1x32xf32, #tpu.memory_space<vmem>>, vector<1x1x32xf32>
    %376 = vector.shape_cast %375 : vector<1x1x32xf32> to vector<1x32xf32>
    %c1_147 = arith.constant 1 : index
    %c0_148 = arith.constant 0 : index
    %c0_149 = arith.constant 0 : index
    %377 = vector.load %arg16[%c1_147, %c0_148, %c0_149] : memref<2x1x32xf32, #tpu.memory_space<vmem>>, vector<1x1x32xf32>
    %378 = vector.shape_cast %377 : vector<1x1x32xf32> to vector<1x32xf32>
    %cst_150 = arith.constant dense<0.000000e+00> : vector<8xf32>
    %379 = vector.multi_reduction <add>, %374, %cst_150 [1] : vector<8x32xf32> to vector<8xf32>
    %380 = vector.shape_cast %379 : vector<8xf32> to vector<8x1xf32>
    %cst_151 = arith.constant 3.200000e+01 : f32
    %381 = vector.broadcast %cst_151 : f32 to vector<8x1xf32>
    %382 = arith.divf %380, %381 : vector<8x1xf32>
    %383 = vector.broadcast %382 : vector<8x1xf32> to vector<8x32xf32>
    %384 = arith.subf %374, %383 : vector<8x32xf32>
    %385 = arith.mulf %384, %384 : vector<8x32xf32>
    %cst_152 = arith.constant dense<0.000000e+00> : vector<8xf32>
    %386 = vector.multi_reduction <add>, %385, %cst_152 [1] : vector<8x32xf32> to vector<8xf32>
    %387 = vector.shape_cast %386 : vector<8xf32> to vector<8x1xf32>
    %cst_153 = arith.constant 3.200000e+01 : f32
    %388 = vector.broadcast %cst_153 : f32 to vector<8x1xf32>
    %389 = arith.divf %387, %388 : vector<8x1xf32>
    %cst_154 = arith.constant 9.99999996E-13 : f32
    %390 = vector.broadcast %cst_154 : f32 to vector<8x1xf32>
    %391 = arith.addf %389, %390 : vector<8x1xf32>
    %392 = math.rsqrt %391 : vector<8x1xf32>
    %393 = vector.broadcast %392 : vector<8x1xf32> to vector<8x32xf32>
    %394 = arith.mulf %384, %393 : vector<8x32xf32>
    %395 = vector.broadcast %376 : vector<1x32xf32> to vector<8x32xf32>
    %396 = arith.mulf %394, %395 : vector<8x32xf32>
    %397 = vector.broadcast %378 : vector<1x32xf32> to vector<8x32xf32>
    %398 = arith.addf %396, %397 : vector<8x32xf32>
    %c0_155 = arith.constant 0 : index
    %c0_156 = arith.constant 0 : index
    %399 = vector.load %arg21[%c0_155, %c0_156] : memref<8x32xf32, #tpu.memory_space<vmem>>, vector<8x32xf32>
    tpu.vector_store %arg21[%c0_155, %c0_156], %398 {strides = array<i32>} : memref<8x32xf32, #tpu.memory_space<vmem>>, vector<8x32xf32>,
    %400 = vector.extract_strided_slice %398 {offsets = [0, 0], sizes = [1, 32], strides = [1, 1]} : vector<8x32xf32> to vector<1x32xf32>
    %401 = arith.truncf %400 : vector<1x32xf32> to vector<1x32xbf16>
    %c0_157 = arith.constant 0 : index
    %c0_158 = arith.constant 0 : index
    %402 = vector.load %arg17[%c0_157, %c0_158] : memref<32x32xbf16, #tpu.memory_space<vmem>>, vector<32x32xbf16>
    %cst_159 = arith.constant dense<0.000000e+00> : vector<1x32xf32>
    %403 = tpu.matmul %401, %402, %cst_159 {dimension_numbers = #tpu.dot_dimension_numbers<[1], [0], [0], [1], [0, 0, 1, 1], [], []>} : vector<1x32xbf16>, vector<32x32xbf16>, vector<1x32xf32> -> vector<1x32xf32>
    %c0_160 = arith.constant 0 : index
    %c0_161 = arith.constant 0 : index
    %404 = vector.load %arg18[%c0_160, %c0_161] : memref<1x32xf32, #tpu.memory_space<vmem>>, vector<1x32xf32>
    %405 = arith.addf %403, %404 : vector<1x32xf32>
    %406 = math.tanh %405 : vector<1x32xf32>
    %407 = arith.truncf %406 : vector<1x32xf32> to vector<1x32xbf16>
    %c0_162 = arith.constant 0 : index
    %c0_163 = arith.constant 0 : index
    %408 = vector.load %arg19[%c0_162, %c0_163] : memref<32x128xbf16, #tpu.memory_space<vmem>>, vector<32x128xbf16>
    %cst_164 = arith.constant dense<0.000000e+00> : vector<1x128xf32>
    %409 = tpu.matmul %407, %408, %cst_164 {dimension_numbers = #tpu.dot_dimension_numbers<[1], [0], [0], [1], [0, 0, 1, 1], [], []>} : vector<1x32xbf16>, vector<32x128xbf16>, vector<1x128xf32> -> vector<1x128xf32>
    %c0_165 = arith.constant 0 : index
    %c0_166 = arith.constant 0 : index
    %410 = vector.load %arg20[%c0_165, %c0_166] : memref<1x128xf32, #tpu.memory_space<vmem>>, vector<1x128xf32>
    %411 = arith.addf %409, %410 : vector<1x128xf32>
    %c0_167 = arith.constant 0 : index
    %c0_168 = arith.constant 0 : index
    %c0_169 = arith.constant 0 : index
    %412 = vector.load %arg22[%c0_167, %c0_168, %c0_169] : memref<1x1x128xf32, #tpu.memory_space<vmem>>, vector<1x1x128xf32>
    %413 = vector.shape_cast %412 : vector<1x1x128xf32> to vector<1x128xf32>
    %414 = vector.shape_cast %411 : vector<1x128xf32> to vector<1x1x128xf32>
    tpu.vector_store %arg22[%c0_167, %c0_168, %c0_169], %414 {strides = array<i32>} : memref<1x1x128xf32, #tpu.memory_space<vmem>>, vector<1x1x128xf32>,
    return
  }
  func.func @transform_0(%arg0: i32) -> (i32, i32) {
    %c0_i32 = arith.constant 0 : i32
    %c0_i32_0 = arith.constant 0 : i32
    return %arg0, %c0_i32 : i32, i32
  }
  func.func @transform_1(%arg0: i32) -> (i32, i32, i32) {
    %c0_i32 = arith.constant 0 : i32
    %c0_i32_0 = arith.constant 0 : i32
    %c0_i32_1 = arith.constant 0 : i32
    return %arg0, %c0_i32, %c0_i32_0 : i32, i32, i32
  }
  func.func @transform_2(%arg0: i32) -> (i32, i32) {
    %c0_i32 = arith.constant 0 : i32
    %c0_i32_0 = arith.constant 0 : i32
    %c0_i32_1 = arith.constant 0 : i32
    return %c0_i32, %c0_i32_0 : i32, i32
  }
  func.func @transform_3(%arg0: i32) -> (i32, i32) {
    %c0_i32 = arith.constant 0 : i32
    %c0_i32_0 = arith.constant 0 : i32
    %c0_i32_1 = arith.constant 0 : i32
    return %c0_i32, %c0_i32_0 : i32, i32
  }
  func.func @transform_4(%arg0: i32) -> (i32, i32, i32) {
    %c0_i32 = arith.constant 0 : i32
    %c0_i32_0 = arith.constant 0 : i32
    %c0_i32_1 = arith.constant 0 : i32
    %c0_i32_2 = arith.constant 0 : i32
    return %c0_i32, %c0_i32_0, %c0_i32_1 : i32, i32, i32
  }
  func.func @transform_5(%arg0: i32) -> (i32, i32, i32) {
    %c0_i32 = arith.constant 0 : i32
    %c0_i32_0 = arith.constant 0 : i32
    %c0_i32_1 = arith.constant 0 : i32
    %c0_i32_2 = arith.constant 0 : i32
    return %c0_i32, %c0_i32_0, %c0_i32_1 : i32, i32, i32
  }
  func.func @transform_6(%arg0: i32) -> (i32, i32, i32) {
    %c0_i32 = arith.constant 0 : i32
    %c0_i32_0 = arith.constant 0 : i32
    %c0_i32_1 = arith.constant 0 : i32
    %c0_i32_2 = arith.constant 0 : i32
    return %c0_i32, %c0_i32_0, %c0_i32_1 : i32, i32, i32
  }
  func.func @transform_7(%arg0: i32) -> (i32, i32, i32) {
    %c0_i32 = arith.constant 0 : i32
    %c0_i32_0 = arith.constant 0 : i32
    %c0_i32_1 = arith.constant 0 : i32
    %c0_i32_2 = arith.constant 0 : i32
    return %c0_i32, %c0_i32_0, %c0_i32_1 : i32, i32, i32
  }
  func.func @transform_8(%arg0: i32) -> (i32, i32, i32) {
    %c0_i32 = arith.constant 0 : i32
    %c0_i32_0 = arith.constant 0 : i32
    %c0_i32_1 = arith.constant 0 : i32
    %c0_i32_2 = arith.constant 0 : i32
    return %c0_i32, %c0_i32_0, %c0_i32_1 : i32, i32, i32
  }
  func.func @transform_9(%arg0: i32) -> (i32, i32, i32) {
    %c0_i32 = arith.constant 0 : i32
    %c0_i32_0 = arith.constant 0 : i32
    %c0_i32_1 = arith.constant 0 : i32
    %c0_i32_2 = arith.constant 0 : i32
    return %c0_i32, %c0_i32_0, %c0_i32_1 : i32, i32, i32
  }
  func.func @transform_10(%arg0: i32) -> (i32, i32, i32) {
    %c0_i32 = arith.constant 0 : i32
    %c0_i32_0 = arith.constant 0 : i32
    %c0_i32_1 = arith.constant 0 : i32
    %c0_i32_2 = arith.constant 0 : i32
    return %c0_i32, %c0_i32_0, %c0_i32_1 : i32, i32, i32
  }
  func.func @transform_11(%arg0: i32) -> (i32, i32, i32) {
    %c0_i32 = arith.constant 0 : i32
    %c0_i32_0 = arith.constant 0 : i32
    %c0_i32_1 = arith.constant 0 : i32
    %c0_i32_2 = arith.constant 0 : i32
    return %c0_i32, %c0_i32_0, %c0_i32_1 : i32, i32, i32
  }
  func.func @transform_12(%arg0: i32) -> (i32, i32, i32) {
    %c0_i32 = arith.constant 0 : i32
    %c0_i32_0 = arith.constant 0 : i32
    %c0_i32_1 = arith.constant 0 : i32
    %c0_i32_2 = arith.constant 0 : i32
    return %c0_i32, %c0_i32_0, %c0_i32_1 : i32, i32, i32
  }
  func.func @transform_13(%arg0: i32) -> (i32, i32, i32) {
    %c0_i32 = arith.constant 0 : i32
    %c0_i32_0 = arith.constant 0 : i32
    %c0_i32_1 = arith.constant 0 : i32
    %c0_i32_2 = arith.constant 0 : i32
    return %c0_i32, %c0_i32_0, %c0_i32_1 : i32, i32, i32
  }
  func.func @transform_14(%arg0: i32) -> (i32, i32, i32) {
    %c0_i32 = arith.constant 0 : i32
    %c0_i32_0 = arith.constant 0 : i32
    %c0_i32_1 = arith.constant 0 : i32
    %c0_i32_2 = arith.constant 0 : i32
    return %c0_i32, %c0_i32_0, %c0_i32_1 : i32, i32, i32
  }
  func.func @transform_15(%arg0: i32) -> (i32, i32, i32) {
    %c0_i32 = arith.constant 0 : i32
    %c0_i32_0 = arith.constant 0 : i32
    %c0_i32_1 = arith.constant 0 : i32
    %c0_i32_2 = arith.constant 0 : i32
    return %c0_i32, %c0_i32_0, %c0_i32_1 : i32, i32, i32
  }
  func.func @transform_16(%arg0: i32) -> (i32, i32) {
    %c0_i32 = arith.constant 0 : i32
    %c0_i32_0 = arith.constant 0 : i32
    %c0_i32_1 = arith.constant 0 : i32
    return %c0_i32, %c0_i32_0 : i32, i32
  }
  func.func @transform_17(%arg0: i32) -> (i32, i32) {
    %c0_i32 = arith.constant 0 : i32
    %c0_i32_0 = arith.constant 0 : i32
    %c0_i32_1 = arith.constant 0 : i32
    return %c0_i32, %c0_i32_0 : i32, i32
  }
  func.func @transform_18(%arg0: i32) -> (i32, i32) {
    %c0_i32 = arith.constant 0 : i32
    %c0_i32_0 = arith.constant 0 : i32
    %c0_i32_1 = arith.constant 0 : i32
    return %c0_i32, %c0_i32_0 : i32, i32
  }
  func.func @transform_19(%arg0: i32) -> (i32, i32) {
    %c0_i32 = arith.constant 0 : i32
    %c0_i32_0 = arith.constant 0 : i32
    %c0_i32_1 = arith.constant 0 : i32
    return %c0_i32, %c0_i32_0 : i32, i32
  }
  func.func @transform_20(%arg0: i32) -> (i32, i32) {
    %c0_i32 = arith.constant 0 : i32
    %c0_i32_0 = arith.constant 0 : i32
    return %arg0, %c0_i32 : i32, i32
  }
  func.func @transform_21(%arg0: i32) -> (i32, i32, i32) {
    %c0_i32 = arith.constant 0 : i32
    %c0_i32_0 = arith.constant 0 : i32
    %c0_i32_1 = arith.constant 0 : i32
    return %arg0, %c0_i32, %c0_i32_0 : i32, i32, i32
  }
}

</mosaic_0001>

<llo_original>
// kernel: tpu_custom_call.1
$region0: #{tpu_custom_call.1}
  #allocation0 [shape = 'u32[]', space=smem, size = 0x4, offset = 0x4, fixed_abs, tag = 'smem constant byte address 0x4 - core index']
  #allocation1 [shape = 'u32[144,128]{1,0:T(1,128)}', space=vmem, size = 0x12000, scoped, tag = 'internal scratch']
  %s0 = inlined_call_operand.hbm [shape: f32[16,32], index: 0, kind: input, shape index: {}]
  %s1 = inlined_call_operand.hbm [shape: f32[2,1,8], index: 1, kind: input, shape index: {}]
  %s2 = inlined_call_operand.hbm [shape: f32[1,32], index: 2, kind: input, shape index: {}]
  %s3 = inlined_call_operand.hbm [shape: f32[1,32], index: 3, kind: input, shape index: {}]
  %s4 = inlined_call_operand.vmem [shape: bf16[2,32,96], index: 4, kind: input, shape index: {}]
  %s5 = inlined_call_operand.hbm [shape: f32[2,1,96], index: 5, kind: input, shape index: {}]
  %s6 = inlined_call_operand.vmem [shape: bf16[2,32,32], index: 6, kind: input, shape index: {}]
  %s7 = inlined_call_operand.hbm [shape: f32[2,1,32], index: 7, kind: input, shape index: {}]
  %s8 = inlined_call_operand.hbm [shape: f32[2,1,32], index: 8, kind: input, shape index: {}]
  %s9 = inlined_call_operand.hbm [shape: f32[2,1,32], index: 9, kind: input, shape index: {}]
  %s10 = inlined_call_operand.vmem [shape: bf16[2,32,64], index: 10, kind: input, shape index: {}]
  %s11 = inlined_call_operand.hbm [shape: f32[2,1,64], index: 11, kind: input, shape index: {}]
  %s12 = inlined_call_operand.vmem [shape: bf16[2,64,32], index: 12, kind: input, shape index: {}]
  %s13 = inlined_call_operand.hbm [shape: f32[2,1,32], index: 13, kind: input, shape index: {}]
  %s14 = inlined_call_operand.hbm [shape: f32[2,1,32], index: 14, kind: input, shape index: {}]
  %s15 = inlined_call_operand.hbm [shape: f32[2,1,32], index: 15, kind: input, shape index: {}]
  %s16 = inlined_call_operand.vmem [shape: bf16[32,32], index: 16, kind: input, shape index: {}]
  %s17 = inlined_call_operand.hbm [shape: f32[1,32], index: 17, kind: input, shape index: {}]
  %s18 = inlined_call_operand.vmem [shape: bf16[32,128], index: 18, kind: input, shape index: {}]
  %s19 = inlined_call_operand.vmem [shape: f32[1,128], index: 19, kind: input, shape index: {}]
  %s20 = inlined_call_operand.hbm [shape: f32[16,32], index: 20, kind: output, shape index: {0}]
  %s21 = inlined_call_operand.hbm [shape: f32[2,1,128], index: 21, kind: output, shape index: {1}]
  %22 = xla_tuple %s20, %s21
  %s23 = sld [smem:[#allocation0]]
  $region173: #{tpu_custom_call.1} parent=0
    _
  %s25 = ssub.s32 1, %s23
  %s26 = scalar_select 0, %s25, %s23
  $region1: #{tpu_custom_call.1} parent=0
    #allocation2 [shape = 'u8[8192]{0}', space=vmem, size = 0x2000, scoped, tag = 'input window, operand 0']
    #allocation3 [shape = 's32[2]{0}', space=sflag, size = 0x8, scoped, tag = 'scoped memory for tpu_custom_call.1']
    #allocation4 [shape = 's32[2]{0}', space=sflag, size = 0x8, scoped, tag = 'scoped memory for tpu_custom_call.1']
    #allocation5 [shape = 'u8[1024]{0}', space=vmem, size = 0x400, scoped, tag = 'input window, operand 1']
    #allocation6 [shape = 's32[2]{0}', space=sflag, size = 0x8, scoped, tag = 'scoped memory for tpu_custom_call.1']
    #allocation7 [shape = 'u8[512]{0}', space=vmem, size = 0x400, scoped, tag = 'input window, operand 2, single buffered']
    #allocation8 [shape = 'u8[512]{0}', space=vmem, size = 0x400, scoped, tag = 'input window, operand 3, single buffered']
    #allocation9 [shape = 's32[1]{0}', space=sflag, size = 0x4, scoped, tag = 'scoped memory for tpu_custom_call.1']
    #allocation10 [shape = 'u8[1024]{0}', space=vmem, size = 0x400, scoped, tag = 'input window, operand 5, single buffered']
    #allocation11 [shape = 'u8[1024]{0}', space=vmem, size = 0x400, scoped, tag = 'input window, operand 7, single buffered']
    #allocation12 [shape = 's32[1]{0}', space=sflag, size = 0x4, scoped, tag = 'scoped memory for tpu_custom_call.1']
    #allocation13 [shape = 'u8[1024]{0}', space=vmem, size = 0x400, scoped, tag = 'input window, operand 8, single buffered']
    #allocation14 [shape = 'u8[1024]{0}', space=vmem, size = 0x400, scoped, tag = 'input window, operand 9, single buffered']
    #allocation15 [shape = 's32[1]{0}', space=sflag, size = 0x4, scoped, tag = 'scoped memory for tpu_custom_call.1']
    #allocation16 [shape = 'u8[1024]{0}', space=vmem, size = 0x400, scoped, tag = 'input window, operand 11, single buffered']
    #allocation17 [shape = 'u8[1024]{0}', space=vmem, size = 0x400, scoped, tag = 'input window, operand 13, single buffered']
    #allocation18 [shape = 's32[1]{0}', space=sflag, size = 0x4, scoped, tag = 'scoped memory for tpu_custom_call.1']
    #allocation19 [shape = 'u8[1024]{0}', space=vmem, size = 0x400, scoped, tag = 'input window, operand 14, single buffered']
    #allocation20 [shape = 'u8[1024]{0}', space=vmem, size = 0x400, scoped, tag = 'input window, operand 15, single buffered']
    #allocation21 [shape = 's32[1]{0}', space=sflag, size = 0x4, scoped, tag = 'scoped memory for tpu_custom_call.1']
    #allocation22 [shape = 'u8[512]{0}', space=vmem, size = 0x400, scoped, tag = 'input window, operand 17, single buffered']
    #allocation23 [shape = 'u8[8192]{0}', space=vmem, size = 0x2000, scoped, tag = 'output window, operand 0']
    #allocation24 [shape = 'u8[1024]{0}', space=vmem, size = 0x400, scoped, tag = 'output window, operand 1']
    #allocation25 [shape = 's32[2]{0}', space=sflag, size = 0x8, scoped, tag = 'scoped memory for tpu_custom_call.1']
    %27 = vsyncpa [#allocation3], 0
    %s28 = scalar_lea.sflag [#allocation3], 1
    %29 = vsyncpa %s28, 0
    %30 = vsyncpa [#allocation6], 0
    %s31 = scalar_lea.sflag [#allocation6], 1
    %32 = vsyncpa %s31, 0
    %33 = vsyncpa [#allocation9], 0
    %34 = vsyncpa [#allocation12], 0
    %35 = vsyncpa [#allocation15], 0
    %36 = vsyncpa [#allocation18], 0
    %37 = vsyncpa [#allocation21], 0
    %38 = vsyncpa [#allocation4], 0
    %s39 = scalar_lea.sflag [#allocation4], 1
    %40 = vsyncpa %s39, 0
    %41 = vsyncpa [#allocation25], 0
    %s42 = scalar_lea.sflag [#allocation25], 1
    %43 = vsyncpa %s42, 0
    loop: start=0, step=1, limit=4
    $region2: #{tpu_custom_call.1} parent=1 // loop_pre_header
      _
    $region3: #{tpu_custom_call.1} parent=1 // loop_header
      %s45 = sphi 0, %s49
      %p46 = scmp.ge.s32.totalorder %s45, 4
      %s55 = sphi 0, %s57
      %s58 = sphi 0, %s55
      %s59 = sphi 0, %s58
      %s75 = sphi 0, %s59
      %s81 = sphi 0, %s83
      %s84 = sphi 0, %s81
      %s85 = sphi 0, %s84
      %s101 = sphi 0, %s85
      %s105 = sphi 0, %s105
      %s107 = sphi 0, %s105
      %s108 = sphi 0, %s107
      %s122 = sphi 0, %s108
      %s126 = sphi 0, %s126
      %s128 = sphi 0, %s126
      %s129 = sphi 0, %s128
      %s143 = sphi 0, %s129
      %s147 = sphi 0, %s147
      %s149 = sphi 0, %s147
      %s150 = sphi 0, %s149
      %s164 = sphi 0, %s150
      %s168 = sphi 0, %s168
      %s170 = sphi 0, %s168
      %s171 = sphi 0, %s170
      %s185 = sphi 0, %s171
      %s189 = sphi 0, %s189
      %s191 = sphi 0, %s189
      %s192 = sphi 0, %s191
      %s206 = sphi 0, %s192
      %s210 = sphi 0, %s210
      %s212 = sphi 0, %s210
      %s213 = sphi 0, %s212
      %s227 = sphi 0, %s213
      %s231 = sphi 0, %s231
      %s233 = sphi 0, %s231
      %s234 = sphi 0, %s233
      %s248 = sphi 0, %s234
      %s252 = sphi 0, %s252
      %s254 = sphi 0, %s252
      %s255 = sphi 0, %s254
      %s269 = sphi 0, %s255
      %s273 = sphi 0, %s273
      %s275 = sphi 0, %s273
      %s276 = sphi 0, %s275
      %s290 = sphi 0, %s276
      %s294 = sphi 0, %s294
      %s296 = sphi 0, %s294
      %s297 = sphi 0, %s296
      %s311 = sphi 0, %s297
      %s315 = sphi 0, %s315
      %s317 = sphi 0, %s315
      %s318 = sphi 0, %s317
      %s332 = sphi 0, %s318
      %s336 = sphi 0, %s336
      %s338 = sphi 0, %s336
      %s339 = sphi 0, %s338
      %s353 = sphi 0, %s339
      %s357 = sphi 0, %s357
      %s359 = sphi 0, %s357
      %s360 = sphi 0, %s359
      %s374 = sphi 0, %s360
      %s378 = sphi 0, %s378
      %s380 = sphi 0, %s378
      %s381 = sphi 0, %s380
      %s395 = sphi 0, %s381
      %s399 = sphi 0, %s399
      %s401 = sphi 0, %s399
      %s402 = sphi 0, %s401
      %s416 = sphi 0, %s402
      %s420 = sphi 0, %s420
      %s422 = sphi 0, %s420
      %s423 = sphi 0, %s422
      %s437 = sphi 0, %s423
      %s441 = sphi 0, %s441
      %s443 = sphi 0, %s441
      %s444 = sphi 0, %s443
      %s458 = sphi 0, %s444
      %s462 = sphi 0, %s462
      %s464 = sphi 0, %s462
      %s465 = sphi 0, %s464
      %s479 = sphi 0, %s465
      %s485 = sphi 0, %s487
      %s488 = sphi 0, %s485
      %s489 = sphi 0, %s488
      %s505 = sphi 0, %s489
      %s511 = sphi 0, %s513
      %s514 = sphi 0, %s511
      %s515 = sphi 0, %s514
      %s531 = sphi 0, %s515
    $region4: #{tpu_custom_call.1} parent=1 // loop_header_branch
      %48 = sbr.rel (%p46) target = $region8
    $region5: #{tpu_custom_call.1} parent=1 // loop_body
      %s50 = ssub.s32 %s45, 1
      %s51 = ssub.s32 %s45, 2
      %s52 = sadd.s32 %s45, 1
      %s53 = ssub.s32 %s45, %s52
      %p54 = scmp.eq.s32.totalorder %s53, 0
      %s56 = sadd.s32 %s55, 1
      %s57 = scalar_select %p54, %s55, %s56
      %p60 = pneg %p54
      %p61 = scmp.eq.s32.totalorder %s45, 1
      %p62 = por %p60, %p61
      %p63 = scmp.ne.s32.totalorder %s55, %s58
      %p64 = scmp.eq.s32.totalorder %s45, 0
      %p65 = por %p63, %p64
      %p66 = scmp.ne.s32.totalorder %s55, %s58
      %p67 = scmp.eq.s32.totalorder %s50, 1
      %p68 = por %p66, %p67
      %p69 = scmp.ne.s32.totalorder %s58, %s59
      %p70 = scmp.eq.s32.totalorder %s50, 0
      %p71 = por %p69, %p70
      %p72 = scmp.ne.s32.totalorder %s58, %s59
      %p73 = scmp.eq.s32.totalorder %s51, 1
      %p74 = por %p72, %p73
      %p76 = scmp.ne.s32.totalorder %s59, %s75
      %p77 = scmp.eq.s32.totalorder %s51, 0
      %p78 = por %p76, %p77
      %s79 = ssub.s32 %s45, %s52
      %p80 = scmp.eq.s32.totalorder %s79, 0
      %s82 = sadd.s32 %s81, 1
      %s83 = scalar_select %p80, %s81, %s82
      %p86 = pneg %p80
      %p87 = scmp.eq.s32.totalorder %s45, 1
      %p88 = por %p86, %p87
      %p89 = scmp.ne.s32.totalorder %s81, %s84
      %p90 = scmp.eq.s32.totalorder %s45, 0
      %p91 = por %p89, %p90
      %p92 = scmp.ne.s32.totalorder %s81, %s84
      %p93 = scmp.eq.s32.totalorder %s50, 1
      %p94 = por %p92, %p93
      %p95 = scmp.ne.s32.totalorder %s84, %s85
      %p96 = scmp.eq.s32.totalorder %s50, 0
      %p97 = por %p95, %p96
      %p98 = scmp.ne.s32.totalorder %s84, %s85
      %p99 = scmp.eq.s32.totalorder %s51, 1
      %p100 = por %p98, %p99
      %p102 = scmp.ne.s32.totalorder %s85, %s101
      %p103 = scmp.eq.s32.totalorder %s51, 0
      %p104 = por %p102, %p103
      %s106 = sadd.s32 %s105, 1
      %p109 = scmp.eq.s32.totalorder %s45, 1
      %p110 = scmp.ne.s32.totalorder %s105, %s107
      %p111 = scmp.eq.s32.totalorder %s45, 0
      %p112 = por %p110, %p111
      %p113 = scmp.ne.s32.totalorder %s105, %s107
      %p114 = scmp.eq.s32.totalorder %s50, 1
      %p115 = por %p113, %p114
      %p116 = scmp.ne.s32.totalorder %s107, %s108
      %p117 = scmp.eq.s32.totalorder %s50, 0
      %p118 = por %p116, %p117
      %p119 = scmp.ne.s32.totalorder %s107, %s108
      %p120 = scmp.eq.s32.totalorder %s51, 1
      %p121 = por %p119, %p120
      %p123 = scmp.ne.s32.totalorder %s108, %s122
      %p124 = scmp.eq.s32.totalorder %s51, 0
      %p125 = por %p123, %p124
      %s127 = sadd.s32 %s126, 1
      %p130 = scmp.eq.s32.totalorder %s45, 1
      %p131 = scmp.ne.s32.totalorder %s126, %s128
      %p132 = scmp.eq.s32.totalorder %s45, 0
      %p133 = por %p131, %p132
      %p134 = scmp.ne.s32.totalorder %s126, %s128
      %p135 = scmp.eq.s32.totalorder %s50, 1
      %p136 = por %p134, %p135
      %p137 = scmp.ne.s32.totalorder %s128, %s129
      %p138 = scmp.eq.s32.totalorder %s50, 0
      %p139 = por %p137, %p138
      %p140 = scmp.ne.s32.totalorder %s128, %s129
      %p141 = scmp.eq.s32.totalorder %s51, 1
      %p142 = por %p140, %p141
      %p144 = scmp.ne.s32.totalorder %s129, %s143
      %p145 = scmp.eq.s32.totalorder %s51, 0
      %p146 = por %p144, %p145
      %s148 = sadd.s32 %s147, 1
      %p151 = scmp.eq.s32.totalorder %s45, 1
      %p152 = scmp.ne.s32.totalorder %s147, %s149
      %p153 = scmp.eq.s32.totalorder %s45, 0
      %p154 = por %p152, %p153
      %p155 = scmp.ne.s32.totalorder %s147, %s149
      %p156 = scmp.eq.s32.totalorder %s50, 1
      %p157 = por %p155, %p156
      %p158 = scmp.ne.s32.totalorder %s149, %s150
      %p159 = scmp.eq.s32.totalorder %s50, 0
      %p160 = por %p158, %p159
      %p161 = scmp.ne.s32.totalorder %s149, %s150
      %p162 = scmp.eq.s32.totalorder %s51, 1
      %p163 = por %p161, %p162
      %p165 = scmp.ne.s32.totalorder %s150, %s164
      %p166 = scmp.eq.s32.totalorder %s51, 0
      %p167 = por %p165, %p166
      %s169 = sadd.s32 %s168, 1
      %p172 = scmp.eq.s32.totalorder %s45, 1
      %p173 = scmp.ne.s32.totalorder %s168, %s170
      %p174 = scmp.eq.s32.totalorder %s45, 0
      %p175 = por %p173, %p174
      %p176 = scmp.ne.s32.totalorder %s168, %s170
      %p177 = scmp.eq.s32.totalorder %s50, 1
      %p178 = por %p176, %p177
      %p179 = scmp.ne.s32.totalorder %s170, %s171
      %p180 = scmp.eq.s32.totalorder %s50, 0
      %p181 = por %p179, %p180
      %p182 = scmp.ne.s32.totalorder %s170, %s171
      %p183 = scmp.eq.s32.totalorder %s51, 1
      %p184 = por %p182, %p183
      %p186 = scmp.ne.s32.totalorder %s171, %s185
      %p187 = scmp.eq.s32.totalorder %s51, 0
      %p188 = por %p186, %p187
      %s190 = sadd.s32 %s189, 1
      %p193 = scmp.eq.s32.totalorder %s45, 1
      %p194 = scmp.ne.s32.totalorder %s189, %s191
      %p195 = scmp.eq.s32.totalorder %s45, 0
      %p196 = por %p194, %p195
      %p197 = scmp.ne.s32.totalorder %s189, %s191
      %p198 = scmp.eq.s32.totalorder %s50, 1
      %p199 = por %p197, %p198
      %p200 = scmp.ne.s32.totalorder %s191, %s192
      %p201 = scmp.eq.s32.totalorder %s50, 0
      %p202 = por %p200, %p201
      %p203 = scmp.ne.s32.totalorder %s191, %s192
      %p204 = scmp.eq.s32.totalorder %s51, 1
      %p205 = por %p203, %p204
      %p207 = scmp.ne.s32.totalorder %s192, %s206
      %p208 = scmp.eq.s32.totalorder %s51, 0
      %p209 = por %p207, %p208
      %s211 = sadd.s32 %s210, 1
      %p214 = scmp.eq.s32.totalorder %s45, 1
      %p215 = scmp.ne.s32.totalorder %s210, %s212
      %p216 = scmp.eq.s32.totalorder %s45, 0
      %p217 = por %p215, %p216
      %p218 = scmp.ne.s32.totalorder %s210, %s212
      %p219 = scmp.eq.s32.totalorder %s50, 1
      %p220 = por %p218, %p219
      %p221 = scmp.ne.s32.totalorder %s212, %s213
      %p222 = scmp.eq.s32.totalorder %s50, 0
      %p223 = por %p221, %p222
      %p224 = scmp.ne.s32.totalorder %s212, %s213
      %p225 = scmp.eq.s32.totalorder %s51, 1
      %p226 = por %p224, %p225
      %p228 = scmp.ne.s32.totalorder %s213, %s227
      %p229 = scmp.eq.s32.totalorder %s51, 0
      %p230 = por %p228, %p229
      %s232 = sadd.s32 %s231, 1
      %p235 = scmp.eq.s32.totalorder %s45, 1
      %p236 = scmp.ne.s32.totalorder %s231, %s233
      %p237 = scmp.eq.s32.totalorder %s45, 0
      %p238 = por %p236, %p237
      %p239 = scmp.ne.s32.totalorder %s231, %s233
      %p240 = scmp.eq.s32.totalorder %s50, 1
      %p241 = por %p239, %p240
      %p242 = scmp.ne.s32.totalorder %s233, %s234
      %p243 = scmp.eq.s32.totalorder %s50, 0
      %p244 = por %p242, %p243
      %p245 = scmp.ne.s32.totalorder %s233, %s234
      %p246 = scmp.eq.s32.totalorder %s51, 1
      %p247 = por %p245, %p246
      %p249 = scmp.ne.s32.totalorder %s234, %s248
      %p250 = scmp.eq.s32.totalorder %s51, 0
      %p251 = por %p249, %p250
      %s253 = sadd.s32 %s252, 1
      %p256 = scmp.eq.s32.totalorder %s45, 1
      %p257 = scmp.ne.s32.totalorder %s252, %s254
      %p258 = scmp.eq.s32.totalorder %s45, 0
      %p259 = por %p257, %p258
      %p260 = scmp.ne.s32.totalorder %s252, %s254
      %p261 = scmp.eq.s32.totalorder %s50, 1
      %p262 = por %p260, %p261
      %p263 = scmp.ne.s32.totalorder %s254, %s255
      %p264 = scmp.eq.s32.totalorder %s50, 0
      %p265 = por %p263, %p264
      %p266 = scmp.ne.s32.totalorder %s254, %s255
      %p267 = scmp.eq.s32.totalorder %s51, 1
      %p268 = por %p266, %p267
      %p270 = scmp.ne.s32.totalorder %s255, %s269
      %p271 = scmp.eq.s32.totalorder %s51, 0
      %p272 = por %p270, %p271
      %s274 = sadd.s32 %s273, 1
      %p277 = scmp.eq.s32.totalorder %s45, 1
      %p278 = scmp.ne.s32.totalorder %s273, %s275
      %p279 = scmp.eq.s32.totalorder %s45, 0
      %p280 = por %p278, %p279
      %p281 = scmp.ne.s32.totalorder %s273, %s275
      %p282 = scmp.eq.s32.totalorder %s50, 1
      %p283 = por %p281, %p282
      %p284 = scmp.ne.s32.totalorder %s275, %s276
      %p285 = scmp.eq.s32.totalorder %s50, 0
      %p286 = por %p284, %p285
      %p287 = scmp.ne.s32.totalorder %s275, %s276
      %p288 = scmp.eq.s32.totalorder %s51, 1
      %p289 = por %p287, %p288
      %p291 = scmp.ne.s32.totalorder %s276, %s290
      %p292 = scmp.eq.s32.totalorder %s51, 0
      %p293 = por %p291, %p292
      %s295 = sadd.s32 %s294, 1
      %p298 = scmp.eq.s32.totalorder %s45, 1
      %p299 = scmp.ne.s32.totalorder %s294, %s296
      %p300 = scmp.eq.s32.totalorder %s45, 0
      %p301 = por %p299, %p300
      %p302 = scmp.ne.s32.totalorder %s294, %s296
      %p303 = scmp.eq.s32.totalorder %s50, 1
      %p304 = por %p302, %p303
      %p305 = scmp.ne.s32.totalorder %s296, %s297
      %p306 = scmp.eq.s32.totalorder %s50, 0
      %p307 = por %p305, %p306
      %p308 = scmp.ne.s32.totalorder %s296, %s297
      %p309 = scmp.eq.s32.totalorder %s51, 1
      %p310 = por %p308, %p309
      %p312 = scmp.ne.s32.totalorder %s297, %s311
      %p313 = scmp.eq.s32.totalorder %s51, 0
      %p314 = por %p312, %p313
      %s316 = sadd.s32 %s315, 1
      %p319 = scmp.eq.s32.totalorder %s45, 1
      %p320 = scmp.ne.s32.totalorder %s315, %s317
      %p321 = scmp.eq.s32.totalorder %s45, 0
      %p322 = por %p320, %p321
      %p323 = scmp.ne.s32.totalorder %s315, %s317
      %p324 = scmp.eq.s32.totalorder %s50, 1
      %p325 = por %p323, %p324
      %p326 = scmp.ne.s32.totalorder %s317, %s318
      %p327 = scmp.eq.s32.totalorder %s50, 0
      %p328 = por %p326, %p327
      %p329 = scmp.ne.s32.totalorder %s317, %s318
      %p330 = scmp.eq.s32.totalorder %s51, 1
      %p331 = por %p329, %p330
      %p333 = scmp.ne.s32.totalorder %s318, %s332
      %p334 = scmp.eq.s32.totalorder %s51, 0
      %p335 = por %p333, %p334
      %s337 = sadd.s32 %s336, 1
      %p340 = scmp.eq.s32.totalorder %s45, 1
      %p341 = scmp.ne.s32.totalorder %s336, %s338
      %p342 = scmp.eq.s32.totalorder %s45, 0
      %p343 = por %p341, %p342
      %p344 = scmp.ne.s32.totalorder %s336, %s338
      %p345 = scmp.eq.s32.totalorder %s50, 1
      %p346 = por %p344, %p345
      %p347 = scmp.ne.s32.totalorder %s338, %s339
      %p348 = scmp.eq.s32.totalorder %s50, 0
      %p349 = por %p347, %p348
      %p350 = scmp.ne.s32.totalorder %s338, %s339
      %p351 = scmp.eq.s32.totalorder %s51, 1
      %p352 = por %p350, %p351
      %p354 = scmp.ne.s32.totalorder %s339, %s353
      %p355 = scmp.eq.s32.totalorder %s51, 0
      %p356 = por %p354, %p355
      %s358 = sadd.s32 %s357, 1
      %p361 = scmp.eq.s32.totalorder %s45, 1
      %p362 = scmp.ne.s32.totalorder %s357, %s359
      %p363 = scmp.eq.s32.totalorder %s45, 0
      %p364 = por %p362, %p363
      %p365 = scmp.ne.s32.totalorder %s357, %s359
      %p366 = scmp.eq.s32.totalorder %s50, 1
      %p367 = por %p365, %p366
      %p368 = scmp.ne.s32.totalorder %s359, %s360
      %p369 = scmp.eq.s32.totalorder %s50, 0
      %p370 = por %p368, %p369
      %p371 = scmp.ne.s32.totalorder %s359, %s360
      %p372 = scmp.eq.s32.totalorder %s51, 1
      %p373 = por %p371, %p372
      %p375 = scmp.ne.s32.totalorder %s360, %s374
      %p376 = scmp.eq.s32.totalorder %s51, 0
      %p377 = por %p375, %p376
      %s379 = sadd.s32 %s378, 1
      %p382 = scmp.eq.s32.totalorder %s45, 1
      %p383 = scmp.ne.s32.totalorder %s378, %s380
      %p384 = scmp.eq.s32.totalorder %s45, 0
      %p385 = por %p383, %p384
      %p386 = scmp.ne.s32.totalorder %s378, %s380
      %p387 = scmp.eq.s32.totalorder %s50, 1
      %p388 = por %p386, %p387
      %p389 = scmp.ne.s32.totalorder %s380, %s381
      %p390 = scmp.eq.s32.totalorder %s50, 0
      %p391 = por %p389, %p390
      %p392 = scmp.ne.s32.totalorder %s380, %s381
      %p393 = scmp.eq.s32.totalorder %s51, 1
      %p394 = por %p392, %p393
      %p396 = scmp.ne.s32.totalorder %s381, %s395
      %p397 = scmp.eq.s32.totalorder %s51, 0
      %p398 = por %p396, %p397
      %s400 = sadd.s32 %s399, 1
      %p403 = scmp.eq.s32.totalorder %s45, 1
      %p404 = scmp.ne.s32.totalorder %s399, %s401
      %p405 = scmp.eq.s32.totalorder %s45, 0
      %p406 = por %p404, %p405
      %p407 = scmp.ne.s32.totalorder %s399, %s401
      %p408 = scmp.eq.s32.totalorder %s50, 1
      %p409 = por %p407, %p408
      %p410 = scmp.ne.s32.totalorder %s401, %s402
      %p411 = scmp.eq.s32.totalorder %s50, 0
      %p412 = por %p410, %p411
      %p413 = scmp.ne.s32.totalorder %s401, %s402
      %p414 = scmp.eq.s32.totalorder %s51, 1
      %p415 = por %p413, %p414
      %p417 = scmp.ne.s32.totalorder %s402, %s416
      %p418 = scmp.eq.s32.totalorder %s51, 0
      %p419 = por %p417, %p418
      %s421 = sadd.s32 %s420, 1
      %p424 = scmp.eq.s32.totalorder %s45, 1
      %p425 = scmp.ne.s32.totalorder %s420, %s422
      %p426 = scmp.eq.s32.totalorder %s45, 0
      %p427 = por %p425, %p426
      %p428 = scmp.ne.s32.totalorder %s420, %s422
      %p429 = scmp.eq.s32.totalorder %s50, 1
      %p430 = por %p428, %p429
      %p431 = scmp.ne.s32.totalorder %s422, %s423
      %p432 = scmp.eq.s32.totalorder %s50, 0
      %p433 = por %p431, %p432
      %p434 = scmp.ne.s32.totalorder %s422, %s423
      %p435 = scmp.eq.s32.totalorder %s51, 1
      %p436 = por %p434, %p435
      %p438 = scmp.ne.s32.totalorder %s423, %s437
      %p439 = scmp.eq.s32.totalorder %s51, 0
      %p440 = por %p438, %p439
      %s442 = sadd.s32 %s441, 1
      %p445 = scmp.eq.s32.totalorder %s45, 1
      %p446 = scmp.ne.s32.totalorder %s441, %s443
      %p447 = scmp.eq.s32.totalorder %s45, 0
      %p448 = por %p446, %p447
      %p449 = scmp.ne.s32.totalorder %s441, %s443
      %p450 = scmp.eq.s32.totalorder %s50, 1
      %p451 = por %p449, %p450
      %p452 = scmp.ne.s32.totalorder %s443, %s444
      %p453 = scmp.eq.s32.totalorder %s50, 0
      %p454 = por %p452, %p453
      %p455 = scmp.ne.s32.totalorder %s443, %s444
      %p456 = scmp.eq.s32.totalorder %s51, 1
      %p457 = por %p455, %p456
      %p459 = scmp.ne.s32.totalorder %s444, %s458
      %p460 = scmp.eq.s32.totalorder %s51, 0
      %p461 = por %p459, %p460
      %s463 = sadd.s32 %s462, 1
      %p466 = scmp.eq.s32.totalorder %s45, 1
      %p467 = scmp.ne.s32.totalorder %s462, %s464
      %p468 = scmp.eq.s32.totalorder %s45, 0
      %p469 = por %p467, %p468
      %p470 = scmp.ne.s32.totalorder %s462, %s464
      %p471 = scmp.eq.s32.totalorder %s50, 1
      %p472 = por %p470, %p471
      %p473 = scmp.ne.s32.totalorder %s464, %s465
      %p474 = scmp.eq.s32.totalorder %s50, 0
      %p475 = por %p473, %p474
      %p476 = scmp.ne.s32.totalorder %s464, %s465
      %p477 = scmp.eq.s32.totalorder %s51, 1
      %p478 = por %p476, %p477
      %p480 = scmp.ne.s32.totalorder %s465, %s479
      %p481 = scmp.eq.s32.totalorder %s51, 0
      %p482 = por %p480, %p481
      %s483 = ssub.s32 %s45, %s52
      %p484 = scmp.eq.s32.totalorder %s483, 0
      %s486 = sadd.s32 %s485, 1
      %s487 = scalar_select %p484, %s485, %s486
      %p490 = pneg %p484
      %p491 = scmp.eq.s32.totalorder %s45, 1
      %p492 = por %p490, %p491
      %p493 = scmp.ne.s32.totalorder %s485, %s488
      %p494 = scmp.eq.s32.totalorder %s45, 0
      %p495 = por %p493, %p494
      %p496 = scmp.ne.s32.totalorder %s485, %s488
      %p497 = scmp.eq.s32.totalorder %s50, 1
      %p498 = por %p496, %p497
      %p499 = scmp.ne.s32.totalorder %s488, %s489
      %p500 = scmp.eq.s32.totalorder %s50, 0
      %p501 = por %p499, %p500
      %p502 = scmp.ne.s32.totalorder %s488, %s489
      %p503 = scmp.eq.s32.totalorder %s51, 1
      %p504 = por %p502, %p503
      %p506 = scmp.ne.s32.totalorder %s489, %s505
      %p507 = scmp.eq.s32.totalorder %s51, 0
      %p508 = por %p506, %p507
      %s509 = ssub.s32 %s45, %s52
      %p510 = scmp.eq.s32.totalorder %s509, 0
      %s512 = sadd.s32 %s511, 1
      %s513 = scalar_select %p510, %s511, %s512
      %p516 = pneg %p510
      %p517 = scmp.eq.s32.totalorder %s45, 1
      %p518 = por %p516, %p517
      %p519 = scmp.ne.s32.totalorder %s511, %s514
      %p520 = scmp.eq.s32.totalorder %s45, 0
      %p521 = por %p519, %p520
      %p522 = scmp.ne.s32.totalorder %s511, %s514
      %p523 = scmp.eq.s32.totalorder %s50, 1
      %p524 = por %p522, %p523
      %p525 = scmp.ne.s32.totalorder %s514, %s515
      %p526 = scmp.eq.s32.totalorder %s50, 0
      %p527 = por %p525, %p526
      %p528 = scmp.ne.s32.totalorder %s514, %s515
      %p529 = scmp.eq.s32.totalorder %s51, 1
      %p530 = por %p528, %p529
      %p532 = scmp.ne.s32.totalorder %s515, %s531
      %p533 = scmp.eq.s32.totalorder %s51, 0
      %p534 = por %p532, %p533
      %p535 = scmp.le.s32.totalorder 1, %s45
      %p536 = scmp.lt.s32.totalorder %s45, 3
      %p537 = pnand %p535, %p536
      %p538 = pneg %p537
      // Predicated region
      $region9: #{tpu_custom_call.1} parent=5 // pred_check
        _
      $region10: #{tpu_custom_call.1} parent=5 // pred_check_branch
        %540 = sbr.rel (%p537) target = $region12
      $region11: #{tpu_custom_call.1} parent=5 // pred_region
        %s541 = ssub.s32 %s45, 1
        // Predicated region
        $region13: #{tpu_custom_call.1} parent=11 // pred_check
          %p542 = pneg %p118
        $region14: #{tpu_custom_call.1} parent=11 // pred_check_branch
          %544 = sbr.rel (%p542) target = $region16
        $region15: #{tpu_custom_call.1} parent=11 // pred_region
          %s546 = ssub.s32 16, 16
          %547 = vsyncadd [#allocation6], %s546
          %s549 = sshll.u32 [#allocation7], 4
          %s550 = int_to_ptr.vmem [resolvable:$true] %s549
          %552 = dma.hbm_to_vmem [thread:$0]  %s2, 16, %s550, [#allocation6]
        $region16: #{tpu_custom_call.1} parent=11 // pred_fallthru
          _
        // Predicated region
        $region17: #{tpu_custom_call.1} parent=11 // pred_check
          %p553 = pneg %p139
        $region18: #{tpu_custom_call.1} parent=11 // pred_check_branch
          %555 = sbr.rel (%p553) target = $region20
        $region19: #{tpu_custom_call.1} parent=11 // pred_region
          %s557 = ssub.s32 16, 16
          %558 = vsyncadd [#allocation9], %s557
          %s560 = sshll.u32 [#allocation8], 4
          %s561 = int_to_ptr.vmem [resolvable:$true] %s560
          %563 = dma.hbm_to_vmem [thread:$0]  %s3, 16, %s561, [#allocation9]
        $region20: #{tpu_custom_call.1} parent=11 // pred_fallthru
          _
        // Predicated region
        $region21: #{tpu_custom_call.1} parent=11 // pred_check
          %p564 = pneg %p160
        $region22: #{tpu_custom_call.1} parent=11 // pred_check_branch
          %566 = sbr.rel (%p564) target = $region24
        $region23: #{tpu_custom_call.1} parent=11 // pred_region
          _
        $region24: #{tpu_custom_call.1} parent=11 // pred_fallthru
          _
        // Predicated region
        $region25: #{tpu_custom_call.1} parent=11 // pred_check
          %p567 = pneg %p181
        $region26: #{tpu_custom_call.1} parent=11 // pred_check_branch
          %569 = sbr.rel (%p567) target = $region28
        $region27: #{tpu_custom_call.1} parent=11 // pred_region
          %s571 = ssub.s32 32, 32
          %572 = vsyncadd [#allocation9], %s571
          %s573 = sshll.u32 [#allocation10], 4
          %s574 = int_to_ptr.vmem [resolvable:$true] %s573
          %579 = dma.hbm_to_vmem [thread:$0]  %s5, 32, %s574, [#allocation9], 16, 16, 1
        $region28: #{tpu_custom_call.1} parent=11 // pred_fallthru
          _
        // Predicated region
        $region29: #{tpu_custom_call.1} parent=11 // pred_check
          %p580 = pneg %p202
        $region30: #{tpu_custom_call.1} parent=11 // pred_check_branch
          %582 = sbr.rel (%p580) target = $region32
        $region31: #{tpu_custom_call.1} parent=11 // pred_region
          _
        $region32: #{tpu_custom_call.1} parent=11 // pred_fallthru
          _
        // Predicated region
        $region33: #{tpu_custom_call.1} parent=11 // pred_check
          %p583 = pneg %p223
        $region34: #{tpu_custom_call.1} parent=11 // pred_check_branch
          %585 = sbr.rel (%p583) target = $region36
        $region35: #{tpu_custom_call.1} parent=11 // pred_region
          %s587 = ssub.s32 32, 32
          %588 = vsyncadd [#allocation12], %s587
          %s589 = sshll.u32 [#allocation11], 4
          %s590 = int_to_ptr.vmem [resolvable:$true] %s589
          %595 = dma.hbm_to_vmem [thread:$0]  %s7, 32, %s590, [#allocation12], 16, 16, 1
        $region36: #{tpu_custom_call.1} parent=11 // pred_fallthru
          _
        // Predicated region
        $region37: #{tpu_custom_call.1} parent=11 // pred_check
          %p596 = pneg %p244
        $region38: #{tpu_custom_call.1} parent=11 // pred_check_branch
          %598 = sbr.rel (%p596) target = $region40
        $region39: #{tpu_custom_call.1} parent=11 // pred_region
          %s600 = ssub.s32 32, 32
          %601 = vsyncadd [#allocation12], %s600
          %s602 = sshll.u32 [#allocation13], 4
          %s603 = int_to_ptr.vmem [resolvable:$true] %s602
          %608 = dma.hbm_to_vmem [thread:$0]  %s8, 32, %s603, [#allocation12], 16, 16, 1
        $region40: #{tpu_custom_call.1} parent=11 // pred_fallthru
          _
        // Predicated region
        $region41: #{tpu_custom_call.1} parent=11 // pred_check
          %p609 = pneg %p265
        $region42: #{tpu_custom_call.1} parent=11 // pred_check_branch
          %611 = sbr.rel (%p609) target = $region44
        $region43: #{tpu_custom_call.1} parent=11 // pred_region
          %s613 = ssub.s32 32, 32
          %614 = vsyncadd [#allocation15], %s613
          %s615 = sshll.u32 [#allocation14], 4
          %s616 = int_to_ptr.vmem [resolvable:$true] %s615
          %621 = dma.hbm_to_vmem [thread:$0]  %s9, 32, %s616, [#allocation15], 16, 16, 1
        $region44: #{tpu_custom_call.1} parent=11 // pred_fallthru
          _
        // Predicated region
        $region45: #{tpu_custom_call.1} parent=11 // pred_check
          %p622 = pneg %p286
        $region46: #{tpu_custom_call.1} parent=11 // pred_check_branch
          %624 = sbr.rel (%p622) target = $region48
        $region47: #{tpu_custom_call.1} parent=11 // pred_region
          _
        $region48: #{tpu_custom_call.1} parent=11 // pred_fallthru
          _
        // Predicated region
        $region49: #{tpu_custom_call.1} parent=11 // pred_check
          %p625 = pneg %p307
        $region50: #{tpu_custom_call.1} parent=11 // pred_check_branch
          %627 = sbr.rel (%p625) target = $region52
        $region51: #{tpu_custom_call.1} parent=11 // pred_region
          %s629 = ssub.s32 32, 32
          %630 = vsyncadd [#allocation15], %s629
          %s631 = sshll.u32 [#allocation16], 4
          %s632 = int_to_ptr.vmem [resolvable:$true] %s631
          %637 = dma.hbm_to_vmem [thread:$0]  %s11, 32, %s632, [#allocation15], 16, 16, 1
        $region52: #{tpu_custom_call.1} parent=11 // pred_fallthru
          _
        // Predicated region
        $region53: #{tpu_custom_call.1} parent=11 // pred_check
          %p638 = pneg %p328
        $region54: #{tpu_custom_call.1} parent=11 // pred_check_branch
          %640 = sbr.rel (%p638) target = $region56
        $region55: #{tpu_custom_call.1} parent=11 // pred_region
          _
        $region56: #{tpu_custom_call.1} parent=11 // pred_fallthru
          _
        // Predicated region
        $region57: #{tpu_custom_call.1} parent=11 // pred_check
          %p641 = pneg %p349
        $region58: #{tpu_custom_call.1} parent=11 // pred_check_branch
          %643 = sbr.rel (%p641) target = $region60
        $region59: #{tpu_custom_call.1} parent=11 // pred_region
          %s645 = ssub.s32 32, 32
          %646 = vsyncadd [#allocation18], %s645
          %s647 = sshll.u32 [#allocation17], 4
          %s648 = int_to_ptr.vmem [resolvable:$true] %s647
          %653 = dma.hbm_to_vmem [thread:$0]  %s13, 32, %s648, [#allocation18], 16, 16, 1
        $region60: #{tpu_custom_call.1} parent=11 // pred_fallthru
          _
        // Predicated region
        $region61: #{tpu_custom_call.1} parent=11 // pred_check
          %p654 = pneg %p370
        $region62: #{tpu_custom_call.1} parent=11 // pred_check_branch
          %656 = sbr.rel (%p654) target = $region64
        $region63: #{tpu_custom_call.1} parent=11 // pred_region
          %s658 = ssub.s32 32, 32
          %659 = vsyncadd [#allocation18], %s658
          %s660 = sshll.u32 [#allocation19], 4
          %s661 = int_to_ptr.vmem [resolvable:$true] %s660
          %666 = dma.hbm_to_vmem [thread:$0]  %s14, 32, %s661, [#allocation18], 16, 16, 1
        $region64: #{tpu_custom_call.1} parent=11 // pred_fallthru
          _
        // Predicated region
        $region65: #{tpu_custom_call.1} parent=11 // pred_check
          %p667 = pneg %p391
        $region66: #{tpu_custom_call.1} parent=11 // pred_check_branch
          %669 = sbr.rel (%p667) target = $region68
        $region67: #{tpu_custom_call.1} parent=11 // pred_region
          %s671 = ssub.s32 32, 32
          %672 = vsyncadd [#allocation21], %s671
          %s673 = sshll.u32 [#allocation20], 4
          %s674 = int_to_ptr.vmem [resolvable:$true] %s673
          %679 = dma.hbm_to_vmem [thread:$0]  %s15, 32, %s674, [#allocation21], 16, 16, 1
        $region68: #{tpu_custom_call.1} parent=11 // pred_fallthru
          _
        // Predicated region
        $region69: #{tpu_custom_call.1} parent=11 // pred_check
          %p680 = pneg %p412
        $region70: #{tpu_custom_call.1} parent=11 // pred_check_branch
          %682 = sbr.rel (%p680) target = $region72
        $region71: #{tpu_custom_call.1} parent=11 // pred_region
          _
        $region72: #{tpu_custom_call.1} parent=11 // pred_fallthru
          _
        // Predicated region
        $region73: #{tpu_custom_call.1} parent=11 // pred_check
          %p683 = pneg %p433
        $region74: #{tpu_custom_call.1} parent=11 // pred_check_branch
          %685 = sbr.rel (%p683) target = $region76
        $region75: #{tpu_custom_call.1} parent=11 // pred_region
          %s687 = ssub.s32 16, 16
          %688 = vsyncadd [#allocation21], %s687
          %s690 = sshll.u32 [#allocation22], 4
          %s691 = int_to_ptr.vmem [resolvable:$true] %s690
          %693 = dma.hbm_to_vmem [thread:$0]  %s17, 16, %s691, [#allocation21]
        $region76: #{tpu_custom_call.1} parent=11 // pred_fallthru
          _
        // Predicated region
        $region77: #{tpu_custom_call.1} parent=11 // pred_check
          %p694 = pneg %p454
        $region78: #{tpu_custom_call.1} parent=11 // pred_check_branch
          %696 = sbr.rel (%p694) target = $region80
        $region79: #{tpu_custom_call.1} parent=11 // pred_region
          _
        $region80: #{tpu_custom_call.1} parent=11 // pred_fallthru
          _
        // Predicated region
        $region81: #{tpu_custom_call.1} parent=11 // pred_check
          %p697 = pneg %p475
        $region82: #{tpu_custom_call.1} parent=11 // pred_check_branch
          %699 = sbr.rel (%p697) target = $region84
        $region83: #{tpu_custom_call.1} parent=11 // pred_region
          _
        $region84: #{tpu_custom_call.1} parent=11 // pred_fallthru
          _
      $region12: #{tpu_custom_call.1} parent=5 // pred_fallthru
        _
      %p700 = scmp.lt.s32.totalorder %s45, 2
      // Predicated region
      $region85: #{tpu_custom_call.1} parent=5 // pred_check
        %p701 = pneg %p700
      $region86: #{tpu_custom_call.1} parent=5 // pred_check_branch
        %703 = sbr.rel (%p701) target = $region88
      $region87: #{tpu_custom_call.1} parent=5 // pred_region
        // Predicated region
        $region89: #{tpu_custom_call.1} parent=87 // pred_check
          %p704 = pneg %p65
        $region90: #{tpu_custom_call.1} parent=87 // pred_check_branch
          %706 = sbr.rel (%p704) target = $region92
        $region91: #{tpu_custom_call.1} parent=87 // pred_region
          %s707 = sand.u32 %s55, 1
          %s708 = scalar_lea.sflag [#allocation3], %s707
          %s709 = sand.u32 %s55, 1
          %s710 = smul.addr %s709, 8
          %s711 = scalar_lea.vmem [#allocation2], %s710
          %s713 = ssub.s32 128, 128
          %714 = vsyncadd %s708, %s713
          %s715 = smul.addr %s45, 128
          %s716 = scalar_lea.hbm %s0, %s715
          %s718 = sshll.u32 %s711, 4
          %s719 = int_to_ptr.vmem [resolvable:$true] %s718
          %721 = dma.hbm_to_vmem [thread:$0]  %s716, 128, %s719, %s708
        $region92: #{tpu_custom_call.1} parent=87 // pred_fallthru
          _
        // Predicated region
        $region93: #{tpu_custom_call.1} parent=87 // pred_check
          %p722 = pneg %p91
        $region94: #{tpu_custom_call.1} parent=87 // pred_check_branch
          %724 = sbr.rel (%p722) target = $region96
        $region95: #{tpu_custom_call.1} parent=87 // pred_region
          %s725 = sand.u32 %s45, 1
          %s726 = scalar_lea.sflag [#allocation6], %s725
          %s727 = sand.u32 %s81, 1
          %s728 = scalar_lea.vmem [#allocation5], %s727
          %s730 = ssub.s32 16, 16
          %731 = vsyncadd %s726, %s730
          %s732 = smul.addr %s45, 16
          %s733 = scalar_lea.hbm %s1, %s732
          %s735 = sshll.u32 %s728, 4
          %s736 = int_to_ptr.vmem [resolvable:$true] %s735
          %738 = dma.hbm_to_vmem [thread:$0]  %s733, 16, %s736, %s726
        $region96: #{tpu_custom_call.1} parent=87 // pred_fallthru
          _
      $region88: #{tpu_custom_call.1} parent=5 // pred_fallthru
        _
      %p739 = scmp.le.s32.totalorder 1, %s45
      %p740 = scmp.lt.s32.totalorder %s45, 3
      %p741 = pnand %p739, %p740
      %p742 = pneg %p741
      // Predicated region
      $region97: #{tpu_custom_call.1} parent=5 // pred_check
        _
      $region98: #{tpu_custom_call.1} parent=5 // pred_check_branch
        %744 = sbr.rel (%p741) target = $region100
      $region99: #{tpu_custom_call.1} parent=5 // pred_region
        %s745 = ssub.s32 %s45, 1
        %s746 = sand.u32 %s58, 1
        %s747 = scalar_lea.sflag [#allocation3], %s746
        %s748 = sand.u32 %s58, 1
        %s749 = smul.addr %s748, 8
        %s750 = scalar_lea.vmem [#allocation2], %s749
        // Predicated region
        $region101: #{tpu_custom_call.1} parent=99 // pred_check
          %p751 = pneg %p71
        $region102: #{tpu_custom_call.1} parent=99 // pred_check_branch
          %753 = sbr.rel (%p751) target = $region104
        $region103: #{tpu_custom_call.1} parent=99 // pred_region
          %754 = dma.done %s747, 128
        $region104: #{tpu_custom_call.1} parent=99 // pred_fallthru
          _
        %s755 = sand.u32 %s50, 1
        %s756 = scalar_lea.sflag [#allocation6], %s755
        %s757 = sand.u32 %s84, 1
        %s758 = scalar_lea.vmem [#allocation5], %s757
        // Predicated region
        $region105: #{tpu_custom_call.1} parent=99 // pred_check
          %p759 = pneg %p97
        $region106: #{tpu_custom_call.1} parent=99 // pred_check_branch
          %761 = sbr.rel (%p759) target = $region108
        $region107: #{tpu_custom_call.1} parent=99 // pred_region
          %762 = dma.done %s756, 16
        $region108: #{tpu_custom_call.1} parent=99 // pred_fallthru
          _
        // Predicated region
        $region109: #{tpu_custom_call.1} parent=99 // pred_check
          %p763 = pneg %p118
        $region110: #{tpu_custom_call.1} parent=99 // pred_check_branch
          %765 = sbr.rel (%p763) target = $region112
        $region111: #{tpu_custom_call.1} parent=99 // pred_region
          %766 = dma.done [#allocation6], 16
        $region112: #{tpu_custom_call.1} parent=99 // pred_fallthru
          _
        // Predicated region
        $region113: #{tpu_custom_call.1} parent=99 // pred_check
          %p767 = pneg %p139
        $region114: #{tpu_custom_call.1} parent=99 // pred_check_branch
          %769 = sbr.rel (%p767) target = $region116
        $region115: #{tpu_custom_call.1} parent=99 // pred_region
          %770 = dma.done [#allocation9], 16
        $region116: #{tpu_custom_call.1} parent=99 // pred_fallthru
          _
        // Predicated region
        $region117: #{tpu_custom_call.1} parent=99 // pred_check
          %p771 = pneg %p181
        $region118: #{tpu_custom_call.1} parent=99 // pred_check_branch
          %773 = sbr.rel (%p771) target = $region120
        $region119: #{tpu_custom_call.1} parent=99 // pred_region
          %774 = dma.done [#allocation9], 32
        $region120: #{tpu_custom_call.1} parent=99 // pred_fallthru
          _
        // Predicated region
        $region121: #{tpu_custom_call.1} parent=99 // pred_check
          %p775 = pneg %p223
        $region122: #{tpu_custom_call.1} parent=99 // pred_check_branch
          %777 = sbr.rel (%p775) target = $region124
        $region123: #{tpu_custom_call.1} parent=99 // pred_region
          %778 = dma.done [#allocation12], 32
        $region124: #{tpu_custom_call.1} parent=99 // pred_fallthru
          _
        // Predicated region
        $region125: #{tpu_custom_call.1} parent=99 // pred_check
          %p779 = pneg %p244
        $region126: #{tpu_custom_call.1} parent=99 // pred_check_branch
          %781 = sbr.rel (%p779) target = $region128
        $region127: #{tpu_custom_call.1} parent=99 // pred_region
          %782 = dma.done [#allocation12], 32
        $region128: #{tpu_custom_call.1} parent=99 // pred_fallthru
          _
        // Predicated region
        $region129: #{tpu_custom_call.1} parent=99 // pred_check
          %p783 = pneg %p265
        $region130: #{tpu_custom_call.1} parent=99 // pred_check_branch
          %785 = sbr.rel (%p783) target = $region132
        $region131: #{tpu_custom_call.1} parent=99 // pred_region
          %786 = dma.done [#allocation15], 32
        $region132: #{tpu_custom_call.1} parent=99 // pred_fallthru
          _
        // Predicated region
        $region133: #{tpu_custom_call.1} parent=99 // pred_check
          %p787 = pneg %p307
        $region134: #{tpu_custom_call.1} parent=99 // pred_check_branch
          %789 = sbr.rel (%p787) target = $region136
        $region135: #{tpu_custom_call.1} parent=99 // pred_region
          %790 = dma.done [#allocation15], 32
        $region136: #{tpu_custom_call.1} parent=99 // pred_fallthru
          _
        // Predicated region
        $region137: #{tpu_custom_call.1} parent=99 // pred_check
          %p791 = pneg %p349
        $region138: #{tpu_custom_call.1} parent=99 // pred_check_branch
          %793 = sbr.rel (%p791) target = $region140
        $region139: #{tpu_custom_call.1} parent=99 // pred_region
          %794 = dma.done [#allocation18], 32
        $region140: #{tpu_custom_call.1} parent=99 // pred_fallthru
          _
        // Predicated region
        $region141: #{tpu_custom_call.1} parent=99 // pred_check
          %p795 = pneg %p370
        $region142: #{tpu_custom_call.1} parent=99 // pred_check_branch
          %797 = sbr.rel (%p795) target = $region144
        $region143: #{tpu_custom_call.1} parent=99 // pred_region
          %798 = dma.done [#allocation18], 32
        $region144: #{tpu_custom_call.1} parent=99 // pred_fallthru
          _
        // Predicated region
        $region145: #{tpu_custom_call.1} parent=99 // pred_check
          %p799 = pneg %p391
        $region146: #{tpu_custom_call.1} parent=99 // pred_check_branch
          %801 = sbr.rel (%p799) target = $region148
        $region147: #{tpu_custom_call.1} parent=99 // pred_region
          %802 = dma.done [#allocation21], 32
        $region148: #{tpu_custom_call.1} parent=99 // pred_fallthru
          _
        // Predicated region
        $region149: #{tpu_custom_call.1} parent=99 // pred_check
          %p803 = pneg %p433
        $region150: #{tpu_custom_call.1} parent=99 // pred_check_branch
          %805 = sbr.rel (%p803) target = $region152
        $region151: #{tpu_custom_call.1} parent=99 // pred_region
          %806 = dma.done [#allocation21], 16
        $region152: #{tpu_custom_call.1} parent=99 // pred_fallthru
          _
        %s807 = sand.u32 %s58, 1
        %s808 = scalar_lea.sflag [#allocation3], %s807
        %s809 = sand.u32 %s58, 1
        %s810 = smul.addr %s809, 8
        %s811 = scalar_lea.vmem [#allocation2], %s810
        %p812 = pneg %p71
        %p813 = pneg %p68
        %s814 = sand.u32 %s50, 1
        %s815 = scalar_lea.sflag [#allocation6], %s814
        %s816 = sand.u32 %s84, 1
        %s817 = scalar_lea.vmem [#allocation5], %s816
        %p818 = pneg %p97
        %p819 = pneg %p94
        %p820 = pneg %p118
        %p821 = pneg %p115
        %p822 = pneg %p139
        %p823 = pneg %p136
        %p824 = pneg %p160
        %p825 = pneg %p157
        %p826 = pneg %p181
        %p827 = pneg %p178
        %p828 = pneg %p202
        %p829 = pneg %p199
        %p830 = pneg %p223
        %p831 = pneg %p220
        %p832 = pneg %p244
        %p833 = pneg %p241
        %p834 = pneg %p265
        %p835 = pneg %p262
        %p836 = pneg %p286
        %p837 = pneg %p283
        %p838 = pneg %p307
        %p839 = pneg %p304
        %p840 = pneg %p328
        %p841 = pneg %p325
        %p842 = pneg %p349
        %p843 = pneg %p346
        %p844 = pneg %p370
        %p845 = pneg %p367
        %p846 = pneg %p391
        %p847 = pneg %p388
        %p848 = pneg %p412
        %p849 = pneg %p409
        %p850 = pneg %p433
        %p851 = pneg %p430
        %p852 = pneg %p454
        %p853 = pneg %p451
        %p854 = pneg %p475
        %p855 = pneg %p472
        %p856 = pneg %p501
        %p857 = pneg %p498
        %s858 = sand.u32 %s488, 1
        %s859 = scalar_lea.sflag [#allocation4], %s858
        %s860 = sand.u32 %s488, 1
        %s861 = smul.addr %s860, 8
        %s862 = scalar_lea.vmem [#allocation23], %s861
        %p863 = pneg %p527
        %p864 = pneg %p524
        %s865 = sand.u32 %s514, 1
        %s866 = scalar_lea.sflag [#allocation25], %s865
        %s867 = sand.u32 %s514, 1
        %s868 = scalar_lea.vmem [#allocation24], %s867
        %v870 = vld [vmem:[%s750] sm:$0xff]
        %v871 = vld [vmem:[#allocation7] sm:$0x1]
        %v872 = vld [vmem:[#allocation8] sm:$0x1]
        %vm873 = vcmask 261120
        %v874 = vsel %vm873, %v870, 0.0
        %875 = vadd.xlane.f32.xlu0 %v874
        %v876 = vpop.xlane.xlu0 %875
        %v877 = vrcp.pop 32.0
        %v878 = vmul.f32 %v876, %v877
        %v879 = vsub.f32 %v870, %v878
        %v880 = vmul.f32 %v879, %v879
        %v881 = vsel %vm873, %v880, 0.0
        %882 = vadd.xlane.f32.xlu0 %v881
        %v883 = vpop.xlane.xlu0 %882
        %v884 = vmul.f32 %v883, %v877
        %v885 = vadd.f32 %v884, 1e-12
        %v886 = vrsqrt.pop %v885
        %v887 = vmul.f32 %v879, %v886
        %v889 = vlaneseq
        %v890 = vshrl.u32 %v889, 7
        %v891 = vsub.s32 0, %v890
        %v892 = vrot.slane %v871, %v891
        %v894 = vmul.f32 %v887, %v892
        %v896 = vlaneseq
        %v897 = vshrl.u32 %v896, 7
        %v898 = vsub.s32 0, %v897
        %v899 = vrot.slane %v872, %v898
        %v901 = vadd.f32 %v894, %v899
        %v902 = vld [vmem:[%s758] sm:$0x1]
        %v903 = vsub.f32 1.0, %v902
        %v904 = vmul.f32 %v903, -1e+09
        %v905 = vpack.c.bf16 %v901, %v901
        %v906 = vld [vmem:[%s4] sm:$0xf]
        %v907 = vld [vmem:[%s4 + $0x4] sm:$0xf]
        %v908 = vld [vmem:[%s4 + $0x8] sm:$0xf]
        %v909 = vld [vmem:[%s4 + $0xc] sm:$0xf]
        %v910 = vld [vmem:[#allocation10] sm:$0x1]
        %v912 = vlaneseq
        %v913 = vshrl.u32 %v912, 7
        %v914 = vsub.s32 0, %v913
        %v915 = vrot.slane %v910, %v914
        %v921 = vunpack.c.l.b16 %v906
        %v922 = vunpack.c.l.b16 %v907
        %v923 = vunpack.c.l.b16 %v908
        %v924 = vunpack.c.l.b16 %v909
        %v925 = vpack.c.b16 %v922, %v921
        %v926 = vpack.c.b16 %v924, %v923
        %v930 = vsel %vm873, %v905, 0
        %932 = vmatprep.subr.bf16.mxu0 0
        %933 = vmatpush1.bf16.msra.mxu0 %v925
        %934 = vmatprep.subr.bf16.mxu0 0
        %935 = vmatpush1.bf16.msra.mxu0 %v926
        %936 = vmatprep.subr.bf16.mxu0 0
        %937 = vmatpush1.bf16.msra.mxu0 0
        %938 = vmatprep.subr.bf16.mxu0 0
        %939 = vmatpush1.bf16.msra.mxu0 0
        %940 = vmatprep.subr.bf16.mxu0 0
        %941 = vmatpush1.bf16.msra.mxu0 0
        %942 = vmatprep.subr.bf16.mxu0 0
        %943 = vmatpush1.bf16.msra.mxu0 0
        %944 = vmatprep.subr.bf16.mxu0 0
        %945 = vmatpush1.bf16.msra.mxu0 0
        %946 = vmatprep.subr.bf16.mxu0 0
        %947 = vmatpush1.bf16.msra.mxu0 0
        %948 = vmatprep.subr.bf16.mxu0 0
        %949 = vmatpush1.bf16.msra.mxu0 0
        %950 = vmatprep.subr.bf16.mxu0 0
        %951 = vmatpush1.bf16.msra.mxu0 0
        %952 = vmatprep.subr.bf16.mxu0 0
        %953 = vmatpush1.bf16.msra.mxu0 0
        %954 = vmatprep.subr.bf16.mxu0 0
        %955 = vmatpush1.bf16.msra.mxu0 0
        %956 = vmatprep.subr.bf16.mxu0 0
        %957 = vmatpush1.bf16.msra.mxu0 0
        %958 = vmatprep.subr.bf16.mxu0 0
        %959 = vmatpush1.bf16.msra.mxu0 0
        %960 = vmatprep.subr.bf16.mxu0 0
        %961 = vmatpush1.bf16.msra.mxu0 0
        %962 = vmatprep.subr.bf16.mxu0 0
        %963 = vmatpush1.bf16.msra.mxu0 0
        %964 = vmatprep.mubr.bf16.mxu0 0
        %965 = vmatmul.mubr.bf16.gmra.mrb[0].mxu0 %v930
        %v966 = vpop.f32.mrb[0].mxu0
        %v967 = vadd.f32 %v915, %v966
        %v968 = vpop.f32.mrb[0].mxu0
        %v969 = vpop.f32.mrb[0].mxu0
        %v970 = vpop.f32.mrb[0].mxu0
        %971 = vdwg.mxu0
        %v972 = vmul.f32 %v967, 0.35355338
        %v973 = vpack.c.bf16 %v972, %v972
        %v974 = vpack.c.bf16 %v967, %v967
        %v976 = vlaneseq
        %v977 = vshrl.u32 %v976, 7
        %v978 = vsub.s32 0, %v977
        %v979 = vrot.slane %v904, %v978
        %982 = vrot.lane.b32.xlu0 %v974, 96
        %v983 = vpop.permute.xlu0 %982
        %vm984 = vcmask 64512
        %v986 = vsel %vm984, %v973, 0
        %v989 = vsel %vm984, %v983, 0
        %991 = vmatprep.subr.bf16.mxu0 0
        %992 = vmatpush1.bf16.xpose.msra.mxu0 %v989
        %993 = vmatprep.subr.bf16.mxu0 0
        %994 = vmatpush1.bf16.xpose.msra.mxu0 0
        %995 = vmatprep.subr.bf16.mxu0 0
        %996 = vmatpush1.bf16.xpose.msra.mxu0 0
        %997 = vmatprep.subr.bf16.mxu0 0
        %998 = vmatpush1.bf16.xpose.msra.mxu0 0
        %999 = vmatprep.subr.bf16.mxu0 0
        %1000 = vmatpush1.bf16.xpose.msra.mxu0 0
        %1001 = vmatprep.subr.bf16.mxu0 0
        %1002 = vmatpush1.bf16.xpose.msra.mxu0 0
        %1003 = vmatprep.subr.bf16.mxu0 0
        %1004 = vmatpush1.bf16.xpose.msra.mxu0 0
        %1005 = vmatprep.subr.bf16.mxu0 0
        %1006 = vmatpush1.bf16.xpose.msra.mxu0 0
        %1007 = vmatprep.subr.bf16.mxu0 0
        %1008 = vmatpush1.bf16.xpose.msra.mxu0 0
        %1009 = vmatprep.subr.bf16.mxu0 0
        %1010 = vmatpush1.bf16.xpose.msra.mxu0 0
        %1011 = vmatprep.subr.bf16.mxu0 0
        %1012 = vmatpush1.bf16.xpose.msra.mxu0 0
        %1013 = vmatprep.subr.bf16.mxu0 0
        %1014 = vmatpush1.bf16.xpose.msra.mxu0 0
        %1015 = vmatprep.subr.bf16.mxu0 0
        %1016 = vmatpush1.bf16.xpose.msra.mxu0 0
        %1017 = vmatprep.subr.bf16.mxu0 0
        %1018 = vmatpush1.bf16.xpose.msra.mxu0 0
        %1019 = vmatprep.subr.bf16.mxu0 0
        %1020 = vmatpush1.bf16.xpose.msra.mxu0 0
        %1021 = vmatprep.subr.bf16.mxu0 0
        %1022 = vmatpush1.bf16.xpose.msra.mxu0 0
        %1023 = vmatprep.mubr.bf16.mxu0 0
        %1024 = vmatmul.mubr.bf16.gmra.mrb[0].mxu0 %v986
        %v1025 = vpop.f32.mrb[0].mxu0
        %v1026 = vadd.f32 %v979, %v1025
        %v1027 = vpop.f32.mrb[0].mxu0
        %v1028 = vpop.f32.mrb[0].mxu0
        %v1029 = vpop.f32.mrb[0].mxu0
        %1030 = vdwg.mxu0
        %v1031 = vsel %vm984, %v1026, -inf
        %1032 = vmax.xlane.f32.xlu0 %v1031
        %v1033 = vpop.xlane.xlu0 %1032
        %v1034 = vsub.f32 %v1026, %v1033
        %v1035 = vmul.f32 %v1034, 1.442695
        %v1036 = vpow.pop %v1035
        %v1037 = vsel %vm984, %v1036, 0.0
        %1038 = vadd.xlane.f32.xlu0 %v1037
        %v1039 = vpop.xlane.xlu0 %1038
        %v1040 = vrcp.pop %v1039
        %v1041 = vmul.f32 %v1036, %v1040
        %v1042 = vpack.c.bf16 %v1041, %v1041
        %1043 = vrot.lane.b32.xlu0 %v974, 64
        %v1044 = vpop.permute.xlu0 %1043
        %v1046 = vsel %vm984, %v1042, 0
        %vm1048 = vcmask 1043456
        %v1050 = vsel %vm1048, %v1044, 0
        %1052 = vmatprep.subr.bf16.mxu0 0
        %1053 = vmatpush1.bf16.msra.mxu0 %v1050
        %1054 = vmatprep.subr.bf16.mxu0 0
        %1055 = vmatpush1.bf16.msra.mxu0 0
        %1056 = vmatprep.subr.bf16.mxu0 0
        %1057 = vmatpush1.bf16.msra.mxu0 0
        %1058 = vmatprep.subr.bf16.mxu0 0
        %1059 = vmatpush1.bf16.msra.mxu0 0
        %1060 = vmatprep.subr.bf16.mxu0 0
        %1061 = vmatpush1.bf16.msra.mxu0 0
        %1062 = vmatprep.subr.bf16.mxu0 0
        %1063 = vmatpush1.bf16.msra.mxu0 0
        %1064 = vmatprep.subr.bf16.mxu0 0
        %1065 = vmatpush1.bf16.msra.mxu0 0
        %1066 = vmatprep.subr.bf16.mxu0 0
        %1067 = vmatpush1.bf16.msra.mxu0 0
        %1068 = vmatprep.subr.bf16.mxu0 0
        %1069 = vmatpush1.bf16.msra.mxu0 0
        %1070 = vmatprep.subr.bf16.mxu0 0
        %1071 = vmatpush1.bf16.msra.mxu0 0
        %1072 = vmatprep.subr.bf16.mxu0 0
        %1073 = vmatpush1.bf16.msra.mxu0 0
        %1074 = vmatprep.subr.bf16.mxu0 0
        %1075 = vmatpush1.bf16.msra.mxu0 0
        %1076 = vmatprep.subr.bf16.mxu0 0
        %1077 = vmatpush1.bf16.msra.mxu0 0
        %1078 = vmatprep.subr.bf16.mxu0 0
        %1079 = vmatpush1.bf16.msra.mxu0 0
        %1080 = vmatprep.subr.bf16.mxu0 0
        %1081 = vmatpush1.bf16.msra.mxu0 0
        %1082 = vmatprep.subr.bf16.mxu0 0
        %1083 = vmatpush1.bf16.msra.mxu0 0
        %1084 = vmatprep.mubr.bf16.mxu0 0
        %1085 = vmatmul.mubr.bf16.gmra.mrb[0].mxu0 %v1046
        %v1086 = vpop.f32.mrb[0].mxu0
        %v1087 = vadd.f32 0.0, %v1086
        %v1088 = vpop.f32.mrb[0].mxu0
        %v1089 = vpop.f32.mrb[0].mxu0
        %v1090 = vpop.f32.mrb[0].mxu0
        %1091 = vdwg.mxu0
        %1093 = vrot.lane.b32.xlu0 %v973, 120
        %v1094 = vpop.permute.xlu0 %1093
        %1095 = vrot.lane.b32.xlu0 %v974, 88
        %v1096 = vpop.permute.xlu0 %1095
        %v1098 = vsel %vm984, %v1094, 0
        %v1101 = vsel %vm984, %v1096, 0
        %1103 = vmatprep.subr.bf16.mxu0 0
        %1104 = vmatpush1.bf16.xpose.msra.mxu0 %v1101
        %1105 = vmatprep.subr.bf16.mxu0 0
        %1106 = vmatpush1.bf16.xpose.msra.mxu0 0
        %1107 = vmatprep.subr.bf16.mxu0 0
        %1108 = vmatpush1.bf16.xpose.msra.mxu0 0
        %1109 = vmatprep.subr.bf16.mxu0 0
        %1110 = vmatpush1.bf16.xpose.msra.mxu0 0
        %1111 = vmatprep.subr.bf16.mxu0 0
        %1112 = vmatpush1.bf16.xpose.msra.mxu0 0
        %1113 = vmatprep.subr.bf16.mxu0 0
        %1114 = vmatpush1.bf16.xpose.msra.mxu0 0
        %1115 = vmatprep.subr.bf16.mxu0 0
        %1116 = vmatpush1.bf16.xpose.msra.mxu0 0
        %1117 = vmatprep.subr.bf16.mxu0 0
        %1118 = vmatpush1.bf16.xpose.msra.mxu0 0
        %1119 = vmatprep.subr.bf16.mxu0 0
        %1120 = vmatpush1.bf16.xpose.msra.mxu0 0
        %1121 = vmatprep.subr.bf16.mxu0 0
        %1122 = vmatpush1.bf16.xpose.msra.mxu0 0
        %1123 = vmatprep.subr.bf16.mxu0 0
        %1124 = vmatpush1.bf16.xpose.msra.mxu0 0
        %1125 = vmatprep.subr.bf16.mxu0 0
        %1126 = vmatpush1.bf16.xpose.msra.mxu0 0
        %1127 = vmatprep.subr.bf16.mxu0 0
        %1128 = vmatpush1.bf16.xpose.msra.mxu0 0
        %1129 = vmatprep.subr.bf16.mxu0 0
        %1130 = vmatpush1.bf16.xpose.msra.mxu0 0
        %1131 = vmatprep.subr.bf16.mxu0 0
        %1132 = vmatpush1.bf16.xpose.msra.mxu0 0
        %1133 = vmatprep.subr.bf16.mxu0 0
        %1134 = vmatpush1.bf16.xpose.msra.mxu0 0
        %1135 = vmatprep.mubr.bf16.mxu0 0
        %1136 = vmatmul.mubr.bf16.gmra.mrb[0].mxu0 %v1098
        %v1137 = vpop.f32.mrb[0].mxu0
        %v1138 = vadd.f32 %v979, %v1137
        %v1139 = vpop.f32.mrb[0].mxu0
        %v1140 = vpop.f32.mrb[0].mxu0
        %v1141 = vpop.f32.mrb[0].mxu0
        %1142 = vdwg.mxu0
        %v1143 = vsel %vm984, %v1138, -inf
        %1144 = vmax.xlane.f32.xlu0 %v1143
        %v1145 = vpop.xlane.xlu0 %1144
        %v1146 = vsub.f32 %v1138, %v1145
        %v1147 = vmul.f32 %v1146, 1.442695
        %v1148 = vpow.pop %v1147
        %v1149 = vsel %vm984, %v1148, 0.0
        %1150 = vadd.xlane.f32.xlu0 %v1149
        %v1151 = vpop.xlane.xlu0 %1150
        %v1152 = vrcp.pop %v1151
        %v1153 = vmul.f32 %v1148, %v1152
        %v1154 = vpack.c.bf16 %v1153, %v1153
        %1155 = vrot.lane.b32.xlu0 %v974, 56
        %v1156 = vpop.permute.xlu0 %1155
        %v1158 = vsel %vm984, %v1154, 0
        %v1161 = vsel %vm1048, %v1156, 0
        %1163 = vmatprep.subr.bf16.mxu0 0
        %1164 = vmatpush1.bf16.msra.mxu0 %v1161
        %1165 = vmatprep.subr.bf16.mxu0 0
        %1166 = vmatpush1.bf16.msra.mxu0 0
        %1167 = vmatprep.subr.bf16.mxu0 0
        %1168 = vmatpush1.bf16.msra.mxu0 0
        %1169 = vmatprep.subr.bf16.mxu0 0
        %1170 = vmatpush1.bf16.msra.mxu0 0
        %1171 = vmatprep.subr.bf16.mxu0 0
        %1172 = vmatpush1.bf16.msra.mxu0 0
        %1173 = vmatprep.subr.bf16.mxu0 0
        %1174 = vmatpush1.bf16.msra.mxu0 0
        %1175 = vmatprep.subr.bf16.mxu0 0
        %1176 = vmatpush1.bf16.msra.mxu0 0
        %1177 = vmatprep.subr.bf16.mxu0 0
        %1178 = vmatpush1.bf16.msra.mxu0 0
        %1179 = vmatprep.subr.bf16.mxu0 0
        %1180 = vmatpush1.bf16.msra.mxu0 0
        %1181 = vmatprep.subr.bf16.mxu0 0
        %1182 = vmatpush1.bf16.msra.mxu0 0
        %1183 = vmatprep.subr.bf16.mxu0 0
        %1184 = vmatpush1.bf16.msra.mxu0 0
        %1185 = vmatprep.subr.bf16.mxu0 0
        %1186 = vmatpush1.bf16.msra.mxu0 0
        %1187 = vmatprep.subr.bf16.mxu0 0
        %1188 = vmatpush1.bf16.msra.mxu0 0
        %1189 = vmatprep.subr.bf16.mxu0 0
        %1190 = vmatpush1.bf16.msra.mxu0 0
        %1191 = vmatprep.subr.bf16.mxu0 0
        %1192 = vmatpush1.bf16.msra.mxu0 0
        %1193 = vmatprep.subr.bf16.mxu0 0
        %1194 = vmatpush1.bf16.msra.mxu0 0
        %1195 = vmatprep.mubr.bf16.mxu0 0
        %1196 = vmatmul.mubr.bf16.gmra.mrb[0].mxu0 %v1158
        %v1197 = vpop.f32.mrb[0].mxu0
        %v1198 = vadd.f32 0.0, %v1197
        %v1199 = vpop.f32.mrb[0].mxu0
        %v1200 = vpop.f32.mrb[0].mxu0
        %v1201 = vpop.f32.mrb[0].mxu0
        %1202 = vdwg.mxu0
        %1203 = vrot.lane.b32.xlu0 %v973, 112
        %v1204 = vpop.permute.xlu0 %1203
        %1205 = vrot.lane.b32.xlu0 %v974, 80
        %v1206 = vpop.permute.xlu0 %1205
        %v1208 = vsel %vm984, %v1204, 0
        %v1211 = vsel %vm984, %v1206, 0
        %1213 = vmatprep.subr.bf16.mxu0 0
        %1214 = vmatpush1.bf16.xpose.msra.mxu0 %v1211
        %1215 = vmatprep.subr.bf16.mxu0 0
        %1216 = vmatpush1.bf16.xpose.msra.mxu0 0
        %1217 = vmatprep.subr.bf16.mxu0 0
        %1218 = vmatpush1.bf16.xpose.msra.mxu0 0
        %1219 = vmatprep.subr.bf16.mxu0 0
        %1220 = vmatpush1.bf16.xpose.msra.mxu0 0
        %1221 = vmatprep.subr.bf16.mxu0 0
        %1222 = vmatpush1.bf16.xpose.msra.mxu0 0
        %1223 = vmatprep.subr.bf16.mxu0 0
        %1224 = vmatpush1.bf16.xpose.msra.mxu0 0
        %1225 = vmatprep.subr.bf16.mxu0 0
        %1226 = vmatpush1.bf16.xpose.msra.mxu0 0
        %1227 = vmatprep.subr.bf16.mxu0 0
        %1228 = vmatpush1.bf16.xpose.msra.mxu0 0
        %1229 = vmatprep.subr.bf16.mxu0 0
        %1230 = vmatpush1.bf16.xpose.msra.mxu0 0
        %1231 = vmatprep.subr.bf16.mxu0 0
        %1232 = vmatpush1.bf16.xpose.msra.mxu0 0
        %1233 = vmatprep.subr.bf16.mxu0 0
        %1234 = vmatpush1.bf16.xpose.msra.mxu0 0
        %1235 = vmatprep.subr.bf16.mxu0 0
        %1236 = vmatpush1.bf16.xpose.msra.mxu0 0
        %1237 = vmatprep.subr.bf16.mxu0 0
        %1238 = vmatpush1.bf16.xpose.msra.mxu0 0
        %1239 = vmatprep.subr.bf16.mxu0 0
        %1240 = vmatpush1.bf16.xpose.msra.mxu0 0
        %1241 = vmatprep.subr.bf16.mxu0 0
        %1242 = vmatpush1.bf16.xpose.msra.mxu0 0
        %1243 = vmatprep.subr.bf16.mxu0 0
        %1244 = vmatpush1.bf16.xpose.msra.mxu0 0
        %1245 = vmatprep.mubr.bf16.mxu0 0
        %1246 = vmatmul.mubr.bf16.gmra.mrb[0].mxu0 %v1208
        %v1247 = vpop.f32.mrb[0].mxu0
        %v1248 = vadd.f32 %v979, %v1247
        %v1249 = vpop.f32.mrb[0].mxu0
        %v1250 = vpop.f32.mrb[0].mxu0
        %v1251 = vpop.f32.mrb[0].mxu0
        %1252 = vdwg.mxu0
        %v1253 = vsel %vm984, %v1248, -inf
        %1254 = vmax.xlane.f32.xlu0 %v1253
        %v1255 = vpop.xlane.xlu0 %1254
        %v1256 = vsub.f32 %v1248, %v1255
        %v1257 = vmul.f32 %v1256, 1.442695
        %v1258 = vpow.pop %v1257
        %v1259 = vsel %vm984, %v1258, 0.0
        %1260 = vadd.xlane.f32.xlu0 %v1259
        %v1261 = vpop.xlane.xlu0 %1260
        %v1262 = vrcp.pop %v1261
        %v1263 = vmul.f32 %v1258, %v1262
        %v1264 = vpack.c.bf16 %v1263, %v1263
        %1265 = vrot.lane.b32.xlu0 %v974, 48
        %v1266 = vpop.permute.xlu0 %1265
        %v1268 = vsel %vm984, %v1264, 0
        %v1271 = vsel %vm1048, %v1266, 0
        %1273 = vmatprep.subr.bf16.mxu0 0
        %1274 = vmatpush1.bf16.msra.mxu0 %v1271
        %1275 = vmatprep.subr.bf16.mxu0 0
        %1276 = vmatpush1.bf16.msra.mxu0 0
        %1277 = vmatprep.subr.bf16.mxu0 0
        %1278 = vmatpush1.bf16.msra.mxu0 0
        %1279 = vmatprep.subr.bf16.mxu0 0
        %1280 = vmatpush1.bf16.msra.mxu0 0
        %1281 = vmatprep.subr.bf16.mxu0 0
        %1282 = vmatpush1.bf16.msra.mxu0 0
        %1283 = vmatprep.subr.bf16.mxu0 0
        %1284 = vmatpush1.bf16.msra.mxu0 0
        %1285 = vmatprep.subr.bf16.mxu0 0
        %1286 = vmatpush1.bf16.msra.mxu0 0
        %1287 = vmatprep.subr.bf16.mxu0 0
        %1288 = vmatpush1.bf16.msra.mxu0 0
        %1289 = vmatprep.subr.bf16.mxu0 0
        %1290 = vmatpush1.bf16.msra.mxu0 0
        %1291 = vmatprep.subr.bf16.mxu0 0
        %1292 = vmatpush1.bf16.msra.mxu0 0
        %1293 = vmatprep.subr.bf16.mxu0 0
        %1294 = vmatpush1.bf16.msra.mxu0 0
        %1295 = vmatprep.subr.bf16.mxu0 0
        %1296 = vmatpush1.bf16.msra.mxu0 0
        %1297 = vmatprep.subr.bf16.mxu0 0
        %1298 = vmatpush1.bf16.msra.mxu0 0
        %1299 = vmatprep.subr.bf16.mxu0 0
        %1300 = vmatpush1.bf16.msra.mxu0 0
        %1301 = vmatprep.subr.bf16.mxu0 0
        %1302 = vmatpush1.bf16.msra.mxu0 0
        %1303 = vmatprep.subr.bf16.mxu0 0
        %1304 = vmatpush1.bf16.msra.mxu0 0
        %1305 = vmatprep.mubr.bf16.mxu0 0
        %1306 = vmatmul.mubr.bf16.gmra.mrb[0].mxu0 %v1268
        %v1307 = vpop.f32.mrb[0].mxu0
        %v1308 = vadd.f32 0.0, %v1307
        %v1309 = vpop.f32.mrb[0].mxu0
        %v1310 = vpop.f32.mrb[0].mxu0
        %v1311 = vpop.f32.mrb[0].mxu0
        %1312 = vdwg.mxu0
        %1313 = vrot.lane.b32.xlu0 %v973, 104
        %v1314 = vpop.permute.xlu0 %1313
        %1315 = vrot.lane.b32.xlu0 %v974, 72
        %v1316 = vpop.permute.xlu0 %1315
        %v1318 = vsel %vm984, %v1314, 0
        %v1321 = vsel %vm984, %v1316, 0
        %1323 = vmatprep.subr.bf16.mxu0 0
        %1324 = vmatpush1.bf16.xpose.msra.mxu0 %v1321
        %1325 = vmatprep.subr.bf16.mxu0 0
        %1326 = vmatpush1.bf16.xpose.msra.mxu0 0
        %1327 = vmatprep.subr.bf16.mxu0 0
        %1328 = vmatpush1.bf16.xpose.msra.mxu0 0
        %1329 = vmatprep.subr.bf16.mxu0 0
        %1330 = vmatpush1.bf16.xpose.msra.mxu0 0
        %1331 = vmatprep.subr.bf16.mxu0 0
        %1332 = vmatpush1.bf16.xpose.msra.mxu0 0
        %1333 = vmatprep.subr.bf16.mxu0 0
        %1334 = vmatpush1.bf16.xpose.msra.mxu0 0
        %1335 = vmatprep.subr.bf16.mxu0 0
        %1336 = vmatpush1.bf16.xpose.msra.mxu0 0
        %1337 = vmatprep.subr.bf16.mxu0 0
        %1338 = vmatpush1.bf16.xpose.msra.mxu0 0
        %1339 = vmatprep.subr.bf16.mxu0 0
        %1340 = vmatpush1.bf16.xpose.msra.mxu0 0
        %1341 = vmatprep.subr.bf16.mxu0 0
        %1342 = vmatpush1.bf16.xpose.msra.mxu0 0
        %1343 = vmatprep.subr.bf16.mxu0 0
        %1344 = vmatpush1.bf16.xpose.msra.mxu0 0
        %1345 = vmatprep.subr.bf16.mxu0 0
        %1346 = vmatpush1.bf16.xpose.msra.mxu0 0
        %1347 = vmatprep.subr.bf16.mxu0 0
        %1348 = vmatpush1.bf16.xpose.msra.mxu0 0
        %1349 = vmatprep.subr.bf16.mxu0 0
        %1350 = vmatpush1.bf16.xpose.msra.mxu0 0
        %1351 = vmatprep.subr.bf16.mxu0 0
        %1352 = vmatpush1.bf16.xpose.msra.mxu0 0
        %1353 = vmatprep.subr.bf16.mxu0 0
        %1354 = vmatpush1.bf16.xpose.msra.mxu0 0
        %1355 = vmatprep.mubr.bf16.mxu0 0
        %1356 = vmatmul.mubr.bf16.gmra.mrb[0].mxu0 %v1318
        %v1357 = vpop.f32.mrb[0].mxu0
        %v1358 = vadd.f32 %v979, %v1357
        %v1359 = vpop.f32.mrb[0].mxu0
        %v1360 = vpop.f32.mrb[0].mxu0
        %v1361 = vpop.f32.mrb[0].mxu0
        %1362 = vdwg.mxu0
        %v1363 = vsel %vm984, %v1358, -inf
        %1364 = vmax.xlane.f32.xlu0 %v1363
        %v1365 = vpop.xlane.xlu0 %1364
        %v1366 = vsub.f32 %v1358, %v1365
        %v1367 = vmul.f32 %v1366, 1.442695
        %v1368 = vpow.pop %v1367
        %v1369 = vsel %vm984, %v1368, 0.0
        %1370 = vadd.xlane.f32.xlu0 %v1369
        %v1371 = vpop.xlane.xlu0 %1370
        %v1372 = vrcp.pop %v1371
        %v1373 = vmul.f32 %v1368, %v1372
        %v1374 = vpack.c.bf16 %v1373, %v1373
        %1375 = vrot.lane.b32.xlu0 %v974, 40
        %v1376 = vpop.permute.xlu0 %1375
        %v1378 = vsel %vm984, %v1374, 0
        %v1381 = vsel %vm1048, %v1376, 0
        %1383 = vmatprep.subr.bf16.mxu0 0
        %1384 = vmatpush1.bf16.msra.mxu0 %v1381
        %1385 = vmatprep.subr.bf16.mxu0 0
        %1386 = vmatpush1.bf16.msra.mxu0 0
        %1387 = vmatprep.subr.bf16.mxu0 0
        %1388 = vmatpush1.bf16.msra.mxu0 0
        %1389 = vmatprep.subr.bf16.mxu0 0
        %1390 = vmatpush1.bf16.msra.mxu0 0
        %1391 = vmatprep.subr.bf16.mxu0 0
        %1392 = vmatpush1.bf16.msra.mxu0 0
        %1393 = vmatprep.subr.bf16.mxu0 0
        %1394 = vmatpush1.bf16.msra.mxu0 0
        %1395 = vmatprep.subr.bf16.mxu0 0
        %1396 = vmatpush1.bf16.msra.mxu0 0
        %1397 = vmatprep.subr.bf16.mxu0 0
        %1398 = vmatpush1.bf16.msra.mxu0 0
        %1399 = vmatprep.subr.bf16.mxu0 0
        %1400 = vmatpush1.bf16.msra.mxu0 0
        %1401 = vmatprep.subr.bf16.mxu0 0
        %1402 = vmatpush1.bf16.msra.mxu0 0
        %1403 = vmatprep.subr.bf16.mxu0 0
        %1404 = vmatpush1.bf16.msra.mxu0 0
        %1405 = vmatprep.subr.bf16.mxu0 0
        %1406 = vmatpush1.bf16.msra.mxu0 0
        %1407 = vmatprep.subr.bf16.mxu0 0
        %1408 = vmatpush1.bf16.msra.mxu0 0
        %1409 = vmatprep.subr.bf16.mxu0 0
        %1410 = vmatpush1.bf16.msra.mxu0 0
        %1411 = vmatprep.subr.bf16.mxu0 0
        %1412 = vmatpush1.bf16.msra.mxu0 0
        %1413 = vmatprep.subr.bf16.mxu0 0
        %1414 = vmatpush1.bf16.msra.mxu0 0
        %1415 = vmatprep.mubr.bf16.mxu0 0
        %1416 = vmatmul.mubr.bf16.gmra.mrb[0].mxu0 %v1378
        %v1417 = vpop.f32.mrb[0].mxu0
        %v1418 = vadd.f32 0.0, %v1417
        %v1419 = vpop.f32.mrb[0].mxu0
        %v1420 = vpop.f32.mrb[0].mxu0
        %v1421 = vpop.f32.mrb[0].mxu0
        %1422 = vdwg.mxu0
        %1424 = vrot.lane.b32.xlu0 %v1198, 8
        %v1425 = vpop.permute.xlu0 %1424
        %1428 = vrot.lane.b32.xlu0 %v1308, 16
        %v1429 = vpop.permute.xlu0 %1428
        %1432 = vrot.lane.b32.xlu0 %v1418, 24
        %v1433 = vpop.permute.xlu0 %1432
        %v1435 = vsel %vm984, %v1087, %v1425
        %vm1436 = vcmask 130048
        %v1437 = vsel %vm1436, %v1435, %v1429
        %vm1438 = vcmask 195584
        %v1439 = vsel %vm1438, %v1437, %v1433
        %v1440 = vpack.c.bf16 %v1439, %v1439
        %v1441 = vld [vmem:[%s6] sm:$0xf]
        %v1442 = vld [vmem:[%s6 + $0x4] sm:$0xf]
        %v1443 = vld [vmem:[%s6 + $0x8] sm:$0xf]
        %v1444 = vld [vmem:[%s6 + $0xc] sm:$0xf]
        %v1445 = vld [vmem:[#allocation11] sm:$0x1]
        %v1447 = vlaneseq
        %v1448 = vshrl.u32 %v1447, 7
        %v1449 = vsub.s32 0, %v1448
        %v1450 = vrot.slane %v1445, %v1449
        %v1456 = vunpack.c.l.b16 %v1441
        %v1457 = vunpack.c.l.b16 %v1442
        %v1458 = vunpack.c.l.b16 %v1443
        %v1459 = vunpack.c.l.b16 %v1444
        %v1460 = vpack.c.b16 %v1457, %v1456
        %v1461 = vpack.c.b16 %v1459, %v1458
        %v1465 = vsel %vm873, %v1440, 0
        %1467 = vmatprep.subr.bf16.mxu0 0
        %1468 = vmatpush1.bf16.msra.mxu0 %v1460
        %1469 = vmatprep.subr.bf16.mxu0 0
        %1470 = vmatpush1.bf16.msra.mxu0 %v1461
        %1471 = vmatprep.subr.bf16.mxu0 0
        %1472 = vmatpush1.bf16.msra.mxu0 0
        %1473 = vmatprep.subr.bf16.mxu0 0
        %1474 = vmatpush1.bf16.msra.mxu0 0
        %1475 = vmatprep.subr.bf16.mxu0 0
        %1476 = vmatpush1.bf16.msra.mxu0 0
        %1477 = vmatprep.subr.bf16.mxu0 0
        %1478 = vmatpush1.bf16.msra.mxu0 0
        %1479 = vmatprep.subr.bf16.mxu0 0
        %1480 = vmatpush1.bf16.msra.mxu0 0
        %1481 = vmatprep.subr.bf16.mxu0 0
        %1482 = vmatpush1.bf16.msra.mxu0 0
        %1483 = vmatprep.subr.bf16.mxu0 0
        %1484 = vmatpush1.bf16.msra.mxu0 0
        %1485 = vmatprep.subr.bf16.mxu0 0
        %1486 = vmatpush1.bf16.msra.mxu0 0
        %1487 = vmatprep.subr.bf16.mxu0 0
        %1488 = vmatpush1.bf16.msra.mxu0 0
        %1489 = vmatprep.subr.bf16.mxu0 0
        %1490 = vmatpush1.bf16.msra.mxu0 0
        %1491 = vmatprep.subr.bf16.mxu0 0
        %1492 = vmatpush1.bf16.msra.mxu0 0
        %1493 = vmatprep.subr.bf16.mxu0 0
        %1494 = vmatpush1.bf16.msra.mxu0 0
        %1495 = vmatprep.subr.bf16.mxu0 0
        %1496 = vmatpush1.bf16.msra.mxu0 0
        %1497 = vmatprep.subr.bf16.mxu0 0
        %1498 = vmatpush1.bf16.msra.mxu0 0
        %1499 = vmatprep.mubr.bf16.mxu0 0
        %1500 = vmatmul.mubr.bf16.gmra.mrb[0].mxu0 %v1465
        %v1501 = vpop.f32.mrb[0].mxu0
        %v1502 = vadd.f32 %v1450, %v1501
        %v1503 = vpop.f32.mrb[0].mxu0
        %v1504 = vpop.f32.mrb[0].mxu0
        %v1505 = vpop.f32.mrb[0].mxu0
        %1506 = vdwg.mxu0
        %v1507 = vadd.f32 %v1502, %v901
        %v1508 = vld [vmem:[#allocation13] sm:$0x1]
        %v1509 = vld [vmem:[#allocation14] sm:$0x1]
        %v1510 = vsel %vm873, %v1507, 0.0
        %1511 = vadd.xlane.f32.xlu0 %v1510
        %v1512 = vpop.xlane.xlu0 %1511
        %v1513 = vmul.f32 %v1512, %v877
        %v1514 = vsub.f32 %v1507, %v1513
        %v1515 = vmul.f32 %v1514, %v1514
        %v1516 = vsel %vm873, %v1515, 0.0
        %1517 = vadd.xlane.f32.xlu0 %v1516
        %v1518 = vpop.xlane.xlu0 %1517
        %v1519 = vmul.f32 %v1518, %v877
        %v1520 = vadd.f32 %v1519, 1e-12
        %v1521 = vrsqrt.pop %v1520
        %v1522 = vmul.f32 %v1514, %v1521
        %v1524 = vlaneseq
        %v1525 = vshrl.u32 %v1524, 7
        %v1526 = vsub.s32 0, %v1525
        %v1527 = vrot.slane %v1508, %v1526
        %v1529 = vmul.f32 %v1522, %v1527
        %v1531 = vlaneseq
        %v1532 = vshrl.u32 %v1531, 7
        %v1533 = vsub.s32 0, %v1532
        %v1534 = vrot.slane %v1509, %v1533
        %v1536 = vadd.f32 %v1529, %v1534
        %v1537 = vpack.c.bf16 %v1536, %v1536
        %v1538 = vld [vmem:[%s10] sm:$0xf]
        %v1539 = vld [vmem:[%s10 + $0x4] sm:$0xf]
        %v1540 = vld [vmem:[%s10 + $0x8] sm:$0xf]
        %v1541 = vld [vmem:[%s10 + $0xc] sm:$0xf]
        %v1542 = vld [vmem:[#allocation16] sm:$0x1]
        %v1544 = vlaneseq
        %v1545 = vshrl.u32 %v1544, 7
        %v1546 = vsub.s32 0, %v1545
        %v1547 = vrot.slane %v1542, %v1546
        %v1553 = vunpack.c.l.b16 %v1538
        %v1554 = vunpack.c.l.b16 %v1539
        %v1555 = vunpack.c.l.b16 %v1540
        %v1556 = vunpack.c.l.b16 %v1541
        %v1557 = vpack.c.b16 %v1554, %v1553
        %v1558 = vpack.c.b16 %v1556, %v1555
        %v1562 = vsel %vm873, %v1537, 0
        %1564 = vmatprep.subr.bf16.mxu0 0
        %1565 = vmatpush1.bf16.msra.mxu0 %v1557
        %1566 = vmatprep.subr.bf16.mxu0 0
        %1567 = vmatpush1.bf16.msra.mxu0 %v1558
        %1568 = vmatprep.subr.bf16.mxu0 0
        %1569 = vmatpush1.bf16.msra.mxu0 0
        %1570 = vmatprep.subr.bf16.mxu0 0
        %1571 = vmatpush1.bf16.msra.mxu0 0
        %1572 = vmatprep.subr.bf16.mxu0 0
        %1573 = vmatpush1.bf16.msra.mxu0 0
        %1574 = vmatprep.subr.bf16.mxu0 0
        %1575 = vmatpush1.bf16.msra.mxu0 0
        %1576 = vmatprep.subr.bf16.mxu0 0
        %1577 = vmatpush1.bf16.msra.mxu0 0
        %1578 = vmatprep.subr.bf16.mxu0 0
        %1579 = vmatpush1.bf16.msra.mxu0 0
        %1580 = vmatprep.subr.bf16.mxu0 0
        %1581 = vmatpush1.bf16.msra.mxu0 0
        %1582 = vmatprep.subr.bf16.mxu0 0
        %1583 = vmatpush1.bf16.msra.mxu0 0
        %1584 = vmatprep.subr.bf16.mxu0 0
        %1585 = vmatpush1.bf16.msra.mxu0 0
        %1586 = vmatprep.subr.bf16.mxu0 0
        %1587 = vmatpush1.bf16.msra.mxu0 0
        %1588 = vmatprep.subr.bf16.mxu0 0
        %1589 = vmatpush1.bf16.msra.mxu0 0
        %1590 = vmatprep.subr.bf16.mxu0 0
        %1591 = vmatpush1.bf16.msra.mxu0 0
        %1592 = vmatprep.subr.bf16.mxu0 0
        %1593 = vmatpush1.bf16.msra.mxu0 0
        %1594 = vmatprep.subr.bf16.mxu0 0
        %1595 = vmatpush1.bf16.msra.mxu0 0
        %1596 = vmatprep.mubr.bf16.mxu0 0
        %1597 = vmatmul.mubr.bf16.gmra.mrb[0].mxu0 %v1562
        %v1598 = vpop.f32.mrb[0].mxu0
        %v1599 = vadd.f32 %v1547, %v1598
        %v1600 = vpop.f32.mrb[0].mxu0
        %v1601 = vpop.f32.mrb[0].mxu0
        %v1602 = vpop.f32.mrb[0].mxu0
        %1603 = vdwg.mxu0
        %v1604 = vmul.f32 %v1599, 0.5
        %v1605 = vmul.f32 %v1599, 0.044715
        %v1606 = vmul.f32 %v1605, %v1599
        %v1607 = vmul.f32 %v1606, %v1599
        %v1608 = vadd.f32 %v1599, %v1607
        %v1609 = vmul.f32 %v1608, 0.7978846
        %v1610 = vtanh.pop %v1609
        %v1611 = vadd.f32 %v1610, 1.0
        %v1612 = vmul.f32 %v1604, %v1611
        %v1613 = vpack.c.bf16 %v1612, %v1612
        %v1614 = vld [vmem:[%s12] sm:$0xf]
        %v1615 = vld [vmem:[%s12 + $0x4] sm:$0xf]
        %v1616 = vld [vmem:[%s12 + $0x8] sm:$0xf]
        %v1617 = vld [vmem:[%s12 + $0xc] sm:$0xf]
        %v1618 = vld [vmem:[%s12 + $0x10] sm:$0xf]
        %v1619 = vld [vmem:[%s12 + $0x14] sm:$0xf]
        %v1620 = vld [vmem:[%s12 + $0x18] sm:$0xf]
        %v1621 = vld [vmem:[%s12 + $0x1c] sm:$0xf]
        %v1622 = vld [vmem:[#allocation17] sm:$0x1]
        %v1624 = vlaneseq
        %v1625 = vshrl.u32 %v1624, 7
        %v1626 = vsub.s32 0, %v1625
        %v1627 = vrot.slane %v1622, %v1626
        %v1637 = vunpack.c.l.b16 %v1614
        %v1638 = vunpack.c.l.b16 %v1615
        %v1639 = vunpack.c.l.b16 %v1616
        %v1640 = vunpack.c.l.b16 %v1617
        %v1641 = vunpack.c.l.b16 %v1618
        %v1642 = vunpack.c.l.b16 %v1619
        %v1643 = vunpack.c.l.b16 %v1620
        %v1644 = vunpack.c.l.b16 %v1621
        %v1645 = vpack.c.b16 %v1638, %v1637
        %v1646 = vpack.c.b16 %v1640, %v1639
        %v1647 = vpack.c.b16 %v1642, %v1641
        %v1648 = vpack.c.b16 %v1644, %v1643
        %vm1653 = vcmask 523264
        %v1655 = vsel %vm1653, %v1613, 0
        %1657 = vmatprep.subr.bf16.mxu0 0
        %1658 = vmatpush1.bf16.msra.mxu0 %v1645
        %1659 = vmatprep.subr.bf16.mxu0 0
        %1660 = vmatpush1.bf16.msra.mxu0 %v1646
        %1661 = vmatprep.subr.bf16.mxu0 0
        %1662 = vmatpush1.bf16.msra.mxu0 %v1647
        %1663 = vmatprep.subr.bf16.mxu0 0
        %1664 = vmatpush1.bf16.msra.mxu0 %v1648
        %1665 = vmatprep.subr.bf16.mxu0 0
        %1666 = vmatpush1.bf16.msra.mxu0 0
        %1667 = vmatprep.subr.bf16.mxu0 0
        %1668 = vmatpush1.bf16.msra.mxu0 0
        %1669 = vmatprep.subr.bf16.mxu0 0
        %1670 = vmatpush1.bf16.msra.mxu0 0
        %1671 = vmatprep.subr.bf16.mxu0 0
        %1672 = vmatpush1.bf16.msra.mxu0 0
        %1673 = vmatprep.subr.bf16.mxu0 0
        %1674 = vmatpush1.bf16.msra.mxu0 0
        %1675 = vmatprep.subr.bf16.mxu0 0
        %1676 = vmatpush1.bf16.msra.mxu0 0
        %1677 = vmatprep.subr.bf16.mxu0 0
        %1678 = vmatpush1.bf16.msra.mxu0 0
        %1679 = vmatprep.subr.bf16.mxu0 0
        %1680 = vmatpush1.bf16.msra.mxu0 0
        %1681 = vmatprep.subr.bf16.mxu0 0
        %1682 = vmatpush1.bf16.msra.mxu0 0
        %1683 = vmatprep.subr.bf16.mxu0 0
        %1684 = vmatpush1.bf16.msra.mxu0 0
        %1685 = vmatprep.subr.bf16.mxu0 0
        %1686 = vmatpush1.bf16.msra.mxu0 0
        %1687 = vmatprep.subr.bf16.mxu0 0
        %1688 = vmatpush1.bf16.msra.mxu0 0
        %1689 = vmatprep.mubr.bf16.mxu0 0
        %1690 = vmatmul.mubr.bf16.gmra.mrb[0].mxu0 %v1655
        %v1691 = vpop.f32.mrb[0].mxu0
        %v1692 = vadd.f32 %v1627, %v1691
        %v1693 = vpop.f32.mrb[0].mxu0
        %v1694 = vpop.f32.mrb[0].mxu0
        %v1695 = vpop.f32.mrb[0].mxu0
        %1696 = vdwg.mxu0
        %v1697 = vadd.f32 %v1692, %v1536
        %v1698 = vld [vmem:[#allocation19] sm:$0x1]
        %v1699 = vld [vmem:[#allocation20] sm:$0x1]
        %v1700 = vsel %vm873, %v1697, 0.0
        %1701 = vadd.xlane.f32.xlu0 %v1700
        %v1702 = vpop.xlane.xlu0 %1701
        %v1703 = vmul.f32 %v1702, %v877
        %v1704 = vsub.f32 %v1697, %v1703
        %v1705 = vmul.f32 %v1704, %v1704
        %v1706 = vsel %vm873, %v1705, 0.0
        %1707 = vadd.xlane.f32.xlu0 %v1706
        %v1708 = vpop.xlane.xlu0 %1707
        %v1709 = vmul.f32 %v1708, %v877
        %v1710 = vadd.f32 %v1709, 1e-12
        %v1711 = vrsqrt.pop %v1710
        %v1712 = vmul.f32 %v1704, %v1711
        %v1714 = vlaneseq
        %v1715 = vshrl.u32 %v1714, 7
        %v1716 = vsub.s32 0, %v1715
        %v1717 = vrot.slane %v1698, %v1716
        %v1719 = vmul.f32 %v1712, %v1717
        %v1721 = vlaneseq
        %v1722 = vshrl.u32 %v1721, 7
        %v1723 = vsub.s32 0, %v1722
        %v1724 = vrot.slane %v1699, %v1723
        %v1726 = vadd.f32 %v1719, %v1724
        %v1727 = vpack.c.bf16 %v1726, %v1726
        %s1728 = scalar_lea.vmem %s4, 16
        %v1729 = vld [vmem:[%s1728] sm:$0xf]
        %v1730 = vld [vmem:[%s1728 + $0x4] sm:$0xf]
        %v1731 = vld [vmem:[%s1728 + $0x8] sm:$0xf]
        %v1732 = vld [vmem:[%s1728 + $0xc] sm:$0xf]
        %s1733 = scalar_lea.vmem [#allocation10], 1
        %v1734 = vld [vmem:[%s1733] sm:$0x1]
        %v1736 = vlaneseq
        %v1737 = vshrl.u32 %v1736, 7
        %v1738 = vsub.s32 0, %v1737
        %v1739 = vrot.slane %v1734, %v1738
        %v1745 = vunpack.c.l.b16 %v1729
        %v1746 = vunpack.c.l.b16 %v1730
        %v1747 = vunpack.c.l.b16 %v1731
        %v1748 = vunpack.c.l.b16 %v1732
        %v1749 = vpack.c.b16 %v1746, %v1745
        %v1750 = vpack.c.b16 %v1748, %v1747
        %v1754 = vsel %vm873, %v1727, 0
        %1756 = vmatprep.subr.bf16.mxu0 0
        %1757 = vmatpush1.bf16.msra.mxu0 %v1749
        %1758 = vmatprep.subr.bf16.mxu0 0
        %1759 = vmatpush1.bf16.msra.mxu0 %v1750
        %1760 = vmatprep.subr.bf16.mxu0 0
        %1761 = vmatpush1.bf16.msra.mxu0 0
        %1762 = vmatprep.subr.bf16.mxu0 0
        %1763 = vmatpush1.bf16.msra.mxu0 0
        %1764 = vmatprep.subr.bf16.mxu0 0
        %1765 = vmatpush1.bf16.msra.mxu0 0
        %1766 = vmatprep.subr.bf16.mxu0 0
        %1767 = vmatpush1.bf16.msra.mxu0 0
        %1768 = vmatprep.subr.bf16.mxu0 0
        %1769 = vmatpush1.bf16.msra.mxu0 0
        %1770 = vmatprep.subr.bf16.mxu0 0
        %1771 = vmatpush1.bf16.msra.mxu0 0
        %1772 = vmatprep.subr.bf16.mxu0 0
        %1773 = vmatpush1.bf16.msra.mxu0 0
        %1774 = vmatprep.subr.bf16.mxu0 0
        %1775 = vmatpush1.bf16.msra.mxu0 0
        %1776 = vmatprep.subr.bf16.mxu0 0
        %1777 = vmatpush1.bf16.msra.mxu0 0
        %1778 = vmatprep.subr.bf16.mxu0 0
        %1779 = vmatpush1.bf16.msra.mxu0 0
        %1780 = vmatprep.subr.bf16.mxu0 0
        %1781 = vmatpush1.bf16.msra.mxu0 0
        %1782 = vmatprep.subr.bf16.mxu0 0
        %1783 = vmatpush1.bf16.msra.mxu0 0
        %1784 = vmatprep.subr.bf16.mxu0 0
        %1785 = vmatpush1.bf16.msra.mxu0 0
        %1786 = vmatprep.subr.bf16.mxu0 0
        %1787 = vmatpush1.bf16.msra.mxu0 0
        %1788 = vmatprep.mubr.bf16.mxu0 0
        %1789 = vmatmul.mubr.bf16.gmra.mrb[0].mxu0 %v1754
        %v1790 = vpop.f32.mrb[0].mxu0
        %v1791 = vadd.f32 %v1739, %v1790
        %v1792 = vpop.f32.mrb[0].mxu0
        %v1793 = vpop.f32.mrb[0].mxu0
        %v1794 = vpop.f32.mrb[0].mxu0
        %1795 = vdwg.mxu0
        %v1796 = vmul.f32 %v1791, 0.35355338
        %v1797 = vpack.c.bf16 %v1796, %v1796
        %v1798 = vpack.c.bf16 %v1791, %v1791
        %1800 = vrot.lane.b32.xlu0 %v1798, 96
        %v1801 = vpop.permute.xlu0 %1800
        %v1803 = vsel %vm984, %v1797, 0
        %v1806 = vsel %vm984, %v1801, 0
        %1808 = vmatprep.subr.bf16.mxu0 0
        %1809 = vmatpush1.bf16.xpose.msra.mxu0 %v1806
        %1810 = vmatprep.subr.bf16.mxu0 0
        %1811 = vmatpush1.bf16.xpose.msra.mxu0 0
        %1812 = vmatprep.subr.bf16.mxu0 0
        %1813 = vmatpush1.bf16.xpose.msra.mxu0 0
        %1814 = vmatprep.subr.bf16.mxu0 0
        %1815 = vmatpush1.bf16.xpose.msra.mxu0 0
        %1816 = vmatprep.subr.bf16.mxu0 0
        %1817 = vmatpush1.bf16.xpose.msra.mxu0 0
        %1818 = vmatprep.subr.bf16.mxu0 0
        %1819 = vmatpush1.bf16.xpose.msra.mxu0 0
        %1820 = vmatprep.subr.bf16.mxu0 0
        %1821 = vmatpush1.bf16.xpose.msra.mxu0 0
        %1822 = vmatprep.subr.bf16.mxu0 0
        %1823 = vmatpush1.bf16.xpose.msra.mxu0 0
        %1824 = vmatprep.subr.bf16.mxu0 0
        %1825 = vmatpush1.bf16.xpose.msra.mxu0 0
        %1826 = vmatprep.subr.bf16.mxu0 0
        %1827 = vmatpush1.bf16.xpose.msra.mxu0 0
        %1828 = vmatprep.subr.bf16.mxu0 0
        %1829 = vmatpush1.bf16.xpose.msra.mxu0 0
        %1830 = vmatprep.subr.bf16.mxu0 0
        %1831 = vmatpush1.bf16.xpose.msra.mxu0 0
        %1832 = vmatprep.subr.bf16.mxu0 0
        %1833 = vmatpush1.bf16.xpose.msra.mxu0 0
        %1834 = vmatprep.subr.bf16.mxu0 0
        %1835 = vmatpush1.bf16.xpose.msra.mxu0 0
        %1836 = vmatprep.subr.bf16.mxu0 0
        %1837 = vmatpush1.bf16.xpose.msra.mxu0 0
        %1838 = vmatprep.subr.bf16.mxu0 0
        %1839 = vmatpush1.bf16.xpose.msra.mxu0 0
        %1840 = vmatprep.mubr.bf16.mxu0 0
        %1841 = vmatmul.mubr.bf16.gmra.mrb[0].mxu0 %v1803
        %v1842 = vpop.f32.mrb[0].mxu0
        %v1843 = vadd.f32 %v979, %v1842
        %v1844 = vpop.f32.mrb[0].mxu0
        %v1845 = vpop.f32.mrb[0].mxu0
        %v1846 = vpop.f32.mrb[0].mxu0
        %1847 = vdwg.mxu0
        %v1848 = vsel %vm984, %v1843, -inf
        %1849 = vmax.xlane.f32.xlu0 %v1848
        %v1850 = vpop.xlane.xlu0 %1849
        %v1851 = vsub.f32 %v1843, %v1850
        %v1852 = vmul.f32 %v1851, 1.442695
        %v1853 = vpow.pop %v1852
        %v1854 = vsel %vm984, %v1853, 0.0
        %1855 = vadd.xlane.f32.xlu0 %v1854
        %v1856 = vpop.xlane.xlu0 %1855
        %v1857 = vrcp.pop %v1856
        %v1858 = vmul.f32 %v1853, %v1857
        %v1859 = vpack.c.bf16 %v1858, %v1858
        %1860 = vrot.lane.b32.xlu0 %v1798, 64
        %v1861 = vpop.permute.xlu0 %1860
        %v1863 = vsel %vm984, %v1859, 0
        %v1866 = vsel %vm1048, %v1861, 0
        %1868 = vmatprep.subr.bf16.mxu0 0
        %1869 = vmatpush1.bf16.msra.mxu0 %v1866
        %1870 = vmatprep.subr.bf16.mxu0 0
        %1871 = vmatpush1.bf16.msra.mxu0 0
        %1872 = vmatprep.subr.bf16.mxu0 0
        %1873 = vmatpush1.bf16.msra.mxu0 0
        %1874 = vmatprep.subr.bf16.mxu0 0
        %1875 = vmatpush1.bf16.msra.mxu0 0
        %1876 = vmatprep.subr.bf16.mxu0 0
        %1877 = vmatpush1.bf16.msra.mxu0 0
        %1878 = vmatprep.subr.bf16.mxu0 0
        %1879 = vmatpush1.bf16.msra.mxu0 0
        %1880 = vmatprep.subr.bf16.mxu0 0
        %1881 = vmatpush1.bf16.msra.mxu0 0
        %1882 = vmatprep.subr.bf16.mxu0 0
        %1883 = vmatpush1.bf16.msra.mxu0 0
        %1884 = vmatprep.subr.bf16.mxu0 0
        %1885 = vmatpush1.bf16.msra.mxu0 0
        %1886 = vmatprep.subr.bf16.mxu0 0
        %1887 = vmatpush1.bf16.msra.mxu0 0
        %1888 = vmatprep.subr.bf16.mxu0 0
        %1889 = vmatpush1.bf16.msra.mxu0 0
        %1890 = vmatprep.subr.bf16.mxu0 0
        %1891 = vmatpush1.bf16.msra.mxu0 0
        %1892 = vmatprep.subr.bf16.mxu0 0
        %1893 = vmatpush1.bf16.msra.mxu0 0
        %1894 = vmatprep.subr.bf16.mxu0 0
        %1895 = vmatpush1.bf16.msra.mxu0 0
        %1896 = vmatprep.subr.bf16.mxu0 0
        %1897 = vmatpush1.bf16.msra.mxu0 0
        %1898 = vmatprep.subr.bf16.mxu0 0
        %1899 = vmatpush1.bf16.msra.mxu0 0
        %1900 = vmatprep.mubr.bf16.mxu0 0
        %1901 = vmatmul.mubr.bf16.gmra.mrb[0].mxu0 %v1863
        %v1902 = vpop.f32.mrb[0].mxu0
        %v1903 = vadd.f32 0.0, %v1902
        %v1904 = vpop.f32.mrb[0].mxu0
        %v1905 = vpop.f32.mrb[0].mxu0
        %v1906 = vpop.f32.mrb[0].mxu0
        %1907 = vdwg.mxu0
        %1909 = vrot.lane.b32.xlu0 %v1797, 120
        %v1910 = vpop.permute.xlu0 %1909
        %1911 = vrot.lane.b32.xlu0 %v1798, 88
        %v1912 = vpop.permute.xlu0 %1911
        %v1914 = vsel %vm984, %v1910, 0
        %v1917 = vsel %vm984, %v1912, 0
        %1919 = vmatprep.subr.bf16.mxu0 0
        %1920 = vmatpush1.bf16.xpose.msra.mxu0 %v1917
        %1921 = vmatprep.subr.bf16.mxu0 0
        %1922 = vmatpush1.bf16.xpose.msra.mxu0 0
        %1923 = vmatprep.subr.bf16.mxu0 0
        %1924 = vmatpush1.bf16.xpose.msra.mxu0 0
        %1925 = vmatprep.subr.bf16.mxu0 0
        %1926 = vmatpush1.bf16.xpose.msra.mxu0 0
        %1927 = vmatprep.subr.bf16.mxu0 0
        %1928 = vmatpush1.bf16.xpose.msra.mxu0 0
        %1929 = vmatprep.subr.bf16.mxu0 0
        %1930 = vmatpush1.bf16.xpose.msra.mxu0 0
        %1931 = vmatprep.subr.bf16.mxu0 0
        %1932 = vmatpush1.bf16.xpose.msra.mxu0 0
        %1933 = vmatprep.subr.bf16.mxu0 0
        %1934 = vmatpush1.bf16.xpose.msra.mxu0 0
        %1935 = vmatprep.subr.bf16.mxu0 0
        %1936 = vmatpush1.bf16.xpose.msra.mxu0 0
        %1937 = vmatprep.subr.bf16.mxu0 0
        %1938 = vmatpush1.bf16.xpose.msra.mxu0 0
        %1939 = vmatprep.subr.bf16.mxu0 0
        %1940 = vmatpush1.bf16.xpose.msra.mxu0 0
        %1941 = vmatprep.subr.bf16.mxu0 0
        %1942 = vmatpush1.bf16.xpose.msra.mxu0 0
        %1943 = vmatprep.subr.bf16.mxu0 0
        %1944 = vmatpush1.bf16.xpose.msra.mxu0 0
        %1945 = vmatprep.subr.bf16.mxu0 0
        %1946 = vmatpush1.bf16.xpose.msra.mxu0 0
        %1947 = vmatprep.subr.bf16.mxu0 0
        %1948 = vmatpush1.bf16.xpose.msra.mxu0 0
        %1949 = vmatprep.subr.bf16.mxu0 0
        %1950 = vmatpush1.bf16.xpose.msra.mxu0 0
        %1951 = vmatprep.mubr.bf16.mxu0 0
        %1952 = vmatmul.mubr.bf16.gmra.mrb[0].mxu0 %v1914
        %v1953 = vpop.f32.mrb[0].mxu0
        %v1954 = vadd.f32 %v979, %v1953
        %v1955 = vpop.f32.mrb[0].mxu0
        %v1956 = vpop.f32.mrb[0].mxu0
        %v1957 = vpop.f32.mrb[0].mxu0
        %1958 = vdwg.mxu0
        %v1959 = vsel %vm984, %v1954, -inf
        %1960 = vmax.xlane.f32.xlu0 %v1959
        %v1961 = vpop.xlane.xlu0 %1960
        %v1962 = vsub.f32 %v1954, %v1961
        %v1963 = vmul.f32 %v1962, 1.442695
        %v1964 = vpow.pop %v1963
        %v1965 = vsel %vm984, %v1964, 0.0
        %1966 = vadd.xlane.f32.xlu0 %v1965
        %v1967 = vpop.xlane.xlu0 %1966
        %v1968 = vrcp.pop %v1967
        %v1969 = vmul.f32 %v1964, %v1968
        %v1970 = vpack.c.bf16 %v1969, %v1969
        %1971 = vrot.lane.b32.xlu0 %v1798, 56
        %v1972 = vpop.permute.xlu0 %1971
        %v1974 = vsel %vm984, %v1970, 0
        %v1977 = vsel %vm1048, %v1972, 0
        %1979 = vmatprep.subr.bf16.mxu0 0
        %1980 = vmatpush1.bf16.msra.mxu0 %v1977
        %1981 = vmatprep.subr.bf16.mxu0 0
        %1982 = vmatpush1.bf16.msra.mxu0 0
        %1983 = vmatprep.subr.bf16.mxu0 0
        %1984 = vmatpush1.bf16.msra.mxu0 0
        %1985 = vmatprep.subr.bf16.mxu0 0
        %1986 = vmatpush1.bf16.msra.mxu0 0
        %1987 = vmatprep.subr.bf16.mxu0 0
        %1988 = vmatpush1.bf16.msra.mxu0 0
        %1989 = vmatprep.subr.bf16.mxu0 0
        %1990 = vmatpush1.bf16.msra.mxu0 0
        %1991 = vmatprep.subr.bf16.mxu0 0
        %1992 = vmatpush1.bf16.msra.mxu0 0
        %1993 = vmatprep.subr.bf16.mxu0 0
        %1994 = vmatpush1.bf16.msra.mxu0 0
        %1995 = vmatprep.subr.bf16.mxu0 0
        %1996 = vmatpush1.bf16.msra.mxu0 0
        %1997 = vmatprep.subr.bf16.mxu0 0
        %1998 = vmatpush1.bf16.msra.mxu0 0
        %1999 = vmatprep.subr.bf16.mxu0 0
        %2000 = vmatpush1.bf16.msra.mxu0 0
        %2001 = vmatprep.subr.bf16.mxu0 0
        %2002 = vmatpush1.bf16.msra.mxu0 0
        %2003 = vmatprep.subr.bf16.mxu0 0
        %2004 = vmatpush1.bf16.msra.mxu0 0
        %2005 = vmatprep.subr.bf16.mxu0 0
        %2006 = vmatpush1.bf16.msra.mxu0 0
        %2007 = vmatprep.subr.bf16.mxu0 0
        %2008 = vmatpush1.bf16.msra.mxu0 0
        %2009 = vmatprep.subr.bf16.mxu0 0
        %2010 = vmatpush1.bf16.msra.mxu0 0
        %2011 = vmatprep.mubr.bf16.mxu0 0
        %2012 = vmatmul.mubr.bf16.gmra.mrb[0].mxu0 %v1974
        %v2013 = vpop.f32.mrb[0].mxu0
        %v2014 = vadd.f32 0.0, %v2013
        %v2015 = vpop.f32.mrb[0].mxu0
        %v2016 = vpop.f32.mrb[0].mxu0
        %v2017 = vpop.f32.mrb[0].mxu0
        %2018 = vdwg.mxu0
        %2019 = vrot.lane.b32.xlu0 %v1797, 112
        %v2020 = vpop.permute.xlu0 %2019
        %2021 = vrot.lane.b32.xlu0 %v1798, 80
        %v2022 = vpop.permute.xlu0 %2021
        %v2024 = vsel %vm984, %v2020, 0
        %v2027 = vsel %vm984, %v2022, 0
        %2029 = vmatprep.subr.bf16.mxu0 0
        %2030 = vmatpush1.bf16.xpose.msra.mxu0 %v2027
        %2031 = vmatprep.subr.bf16.mxu0 0
        %2032 = vmatpush1.bf16.xpose.msra.mxu0 0
        %2033 = vmatprep.subr.bf16.mxu0 0
        %2034 = vmatpush1.bf16.xpose.msra.mxu0 0
        %2035 = vmatprep.subr.bf16.mxu0 0
        %2036 = vmatpush1.bf16.xpose.msra.mxu0 0
        %2037 = vmatprep.subr.bf16.mxu0 0
        %2038 = vmatpush1.bf16.xpose.msra.mxu0 0
        %2039 = vmatprep.subr.bf16.mxu0 0
        %2040 = vmatpush1.bf16.xpose.msra.mxu0 0
        %2041 = vmatprep.subr.bf16.mxu0 0
        %2042 = vmatpush1.bf16.xpose.msra.mxu0 0
        %2043 = vmatprep.subr.bf16.mxu0 0
        %2044 = vmatpush1.bf16.xpose.msra.mxu0 0
        %2045 = vmatprep.subr.bf16.mxu0 0
        %2046 = vmatpush1.bf16.xpose.msra.mxu0 0
        %2047 = vmatprep.subr.bf16.mxu0 0
        %2048 = vmatpush1.bf16.xpose.msra.mxu0 0
        %2049 = vmatprep.subr.bf16.mxu0 0
        %2050 = vmatpush1.bf16.xpose.msra.mxu0 0
        %2051 = vmatprep.subr.bf16.mxu0 0
        %2052 = vmatpush1.bf16.xpose.msra.mxu0 0
        %2053 = vmatprep.subr.bf16.mxu0 0
        %2054 = vmatpush1.bf16.xpose.msra.mxu0 0
        %2055 = vmatprep.subr.bf16.mxu0 0
        %2056 = vmatpush1.bf16.xpose.msra.mxu0 0
        %2057 = vmatprep.subr.bf16.mxu0 0
        %2058 = vmatpush1.bf16.xpose.msra.mxu0 0
        %2059 = vmatprep.subr.bf16.mxu0 0
        %2060 = vmatpush1.bf16.xpose.msra.mxu0 0
        %2061 = vmatprep.mubr.bf16.mxu0 0
        %2062 = vmatmul.mubr.bf16.gmra.mrb[0].mxu0 %v2024
        %v2063 = vpop.f32.mrb[0].mxu0
        %v2064 = vadd.f32 %v979, %v2063
        %v2065 = vpop.f32.mrb[0].mxu0
        %v2066 = vpop.f32.mrb[0].mxu0
        %v2067 = vpop.f32.mrb[0].mxu0
        %2068 = vdwg.mxu0
        %v2069 = vsel %vm984, %v2064, -inf
        %2070 = vmax.xlane.f32.xlu0 %v2069
        %v2071 = vpop.xlane.xlu0 %2070
        %v2072 = vsub.f32 %v2064, %v2071
        %v2073 = vmul.f32 %v2072, 1.442695
        %v2074 = vpow.pop %v2073
        %v2075 = vsel %vm984, %v2074, 0.0
        %2076 = vadd.xlane.f32.xlu0 %v2075
        %v2077 = vpop.xlane.xlu0 %2076
        %v2078 = vrcp.pop %v2077
        %v2079 = vmul.f32 %v2074, %v2078
        %v2080 = vpack.c.bf16 %v2079, %v2079
        %2081 = vrot.lane.b32.xlu0 %v1798, 48
        %v2082 = vpop.permute.xlu0 %2081
        %v2084 = vsel %vm984, %v2080, 0
        %v2087 = vsel %vm1048, %v2082, 0
        %2089 = vmatprep.subr.bf16.mxu0 0
        %2090 = vmatpush1.bf16.msra.mxu0 %v2087
        %2091 = vmatprep.subr.bf16.mxu0 0
        %2092 = vmatpush1.bf16.msra.mxu0 0
        %2093 = vmatprep.subr.bf16.mxu0 0
        %2094 = vmatpush1.bf16.msra.mxu0 0
        %2095 = vmatprep.subr.bf16.mxu0 0
        %2096 = vmatpush1.bf16.msra.mxu0 0
        %2097 = vmatprep.subr.bf16.mxu0 0
        %2098 = vmatpush1.bf16.msra.mxu0 0
        %2099 = vmatprep.subr.bf16.mxu0 0
        %2100 = vmatpush1.bf16.msra.mxu0 0
        %2101 = vmatprep.subr.bf16.mxu0 0
        %2102 = vmatpush1.bf16.msra.mxu0 0
        %2103 = vmatprep.subr.bf16.mxu0 0
        %2104 = vmatpush1.bf16.msra.mxu0 0
        %2105 = vmatprep.subr.bf16.mxu0 0
        %2106 = vmatpush1.bf16.msra.mxu0 0
        %2107 = vmatprep.subr.bf16.mxu0 0
        %2108 = vmatpush1.bf16.msra.mxu0 0
        %2109 = vmatprep.subr.bf16.mxu0 0
        %2110 = vmatpush1.bf16.msra.mxu0 0
        %2111 = vmatprep.subr.bf16.mxu0 0
        %2112 = vmatpush1.bf16.msra.mxu0 0
        %2113 = vmatprep.subr.bf16.mxu0 0
        %2114 = vmatpush1.bf16.msra.mxu0 0
        %2115 = vmatprep.subr.bf16.mxu0 0
        %2116 = vmatpush1.bf16.msra.mxu0 0
        %2117 = vmatprep.subr.bf16.mxu0 0
        %2118 = vmatpush1.bf16.msra.mxu0 0
        %2119 = vmatprep.subr.bf16.mxu0 0
        %2120 = vmatpush1.bf16.msra.mxu0 0
        %2121 = vmatprep.mubr.bf16.mxu0 0
        %2122 = vmatmul.mubr.bf16.gmra.mrb[0].mxu0 %v2084
        %v2123 = vpop.f32.mrb[0].mxu0
        %v2124 = vadd.f32 0.0, %v2123
        %v2125 = vpop.f32.mrb[0].mxu0
        %v2126 = vpop.f32.mrb[0].mxu0
        %v2127 = vpop.f32.mrb[0].mxu0
        %2128 = vdwg.mxu0
        %2129 = vrot.lane.b32.xlu0 %v1797, 104
        %v2130 = vpop.permute.xlu0 %2129
        %2131 = vrot.lane.b32.xlu0 %v1798, 72
        %v2132 = vpop.permute.xlu0 %2131
        %v2134 = vsel %vm984, %v2130, 0
        %v2137 = vsel %vm984, %v2132, 0
        %2139 = vmatprep.subr.bf16.mxu0 0
        %2140 = vmatpush1.bf16.xpose.msra.mxu0 %v2137
        %2141 = vmatprep.subr.bf16.mxu0 0
        %2142 = vmatpush1.bf16.xpose.msra.mxu0 0
        %2143 = vmatprep.subr.bf16.mxu0 0
        %2144 = vmatpush1.bf16.xpose.msra.mxu0 0
        %2145 = vmatprep.subr.bf16.mxu0 0
        %2146 = vmatpush1.bf16.xpose.msra.mxu0 0
        %2147 = vmatprep.subr.bf16.mxu0 0
        %2148 = vmatpush1.bf16.xpose.msra.mxu0 0
        %2149 = vmatprep.subr.bf16.mxu0 0
        %2150 = vmatpush1.bf16.xpose.msra.mxu0 0
        %2151 = vmatprep.subr.bf16.mxu0 0
        %2152 = vmatpush1.bf16.xpose.msra.mxu0 0
        %2153 = vmatprep.subr.bf16.mxu0 0
        %2154 = vmatpush1.bf16.xpose.msra.mxu0 0
        %2155 = vmatprep.subr.bf16.mxu0 0
        %2156 = vmatpush1.bf16.xpose.msra.mxu0 0
        %2157 = vmatprep.subr.bf16.mxu0 0
        %2158 = vmatpush1.bf16.xpose.msra.mxu0 0
        %2159 = vmatprep.subr.bf16.mxu0 0
        %2160 = vmatpush1.bf16.xpose.msra.mxu0 0
        %2161 = vmatprep.subr.bf16.mxu0 0
        %2162 = vmatpush1.bf16.xpose.msra.mxu0 0
        %2163 = vmatprep.subr.bf16.mxu0 0
        %2164 = vmatpush1.bf16.xpose.msra.mxu0 0
        %2165 = vmatprep.subr.bf16.mxu0 0
        %2166 = vmatpush1.bf16.xpose.msra.mxu0 0
        %2167 = vmatprep.subr.bf16.mxu0 0
        %2168 = vmatpush1.bf16.xpose.msra.mxu0 0
        %2169 = vmatprep.subr.bf16.mxu0 0
        %2170 = vmatpush1.bf16.xpose.msra.mxu0 0
        %2171 = vmatprep.mubr.bf16.mxu0 0
        %2172 = vmatmul.mubr.bf16.gmra.mrb[0].mxu0 %v2134
        %v2173 = vpop.f32.mrb[0].mxu0
        %v2174 = vadd.f32 %v979, %v2173
        %v2175 = vpop.f32.mrb[0].mxu0
        %v2176 = vpop.f32.mrb[0].mxu0
        %v2177 = vpop.f32.mrb[0].mxu0
        %2178 = vdwg.mxu0
        %v2179 = vsel %vm984, %v2174, -inf
        %2180 = vmax.xlane.f32.xlu0 %v2179
        %v2181 = vpop.xlane.xlu0 %2180
        %v2182 = vsub.f32 %v2174, %v2181
        %v2183 = vmul.f32 %v2182, 1.442695
        %v2184 = vpow.pop %v2183
        %v2185 = vsel %vm984, %v2184, 0.0
        %2186 = vadd.xlane.f32.xlu0 %v2185
        %v2187 = vpop.xlane.xlu0 %2186
        %v2188 = vrcp.pop %v2187
        %v2189 = vmul.f32 %v2184, %v2188
        %v2190 = vpack.c.bf16 %v2189, %v2189
        %2191 = vrot.lane.b32.xlu0 %v1798, 40
        %v2192 = vpop.permute.xlu0 %2191
        %v2194 = vsel %vm984, %v2190, 0
        %v2197 = vsel %vm1048, %v2192, 0
        %2199 = vmatprep.subr.bf16.mxu0 0
        %2200 = vmatpush1.bf16.msra.mxu0 %v2197
        %2201 = vmatprep.subr.bf16.mxu0 0
        %2202 = vmatpush1.bf16.msra.mxu0 0
        %2203 = vmatprep.subr.bf16.mxu0 0
        %2204 = vmatpush1.bf16.msra.mxu0 0
        %2205 = vmatprep.subr.bf16.mxu0 0
        %2206 = vmatpush1.bf16.msra.mxu0 0
        %2207 = vmatprep.subr.bf16.mxu0 0
        %2208 = vmatpush1.bf16.msra.mxu0 0
        %2209 = vmatprep.subr.bf16.mxu0 0
        %2210 = vmatpush1.bf16.msra.mxu0 0
        %2211 = vmatprep.subr.bf16.mxu0 0
        %2212 = vmatpush1.bf16.msra.mxu0 0
        %2213 = vmatprep.subr.bf16.mxu0 0
        %2214 = vmatpush1.bf16.msra.mxu0 0
        %2215 = vmatprep.subr.bf16.mxu0 0
        %2216 = vmatpush1.bf16.msra.mxu0 0
        %2217 = vmatprep.subr.bf16.mxu0 0
        %2218 = vmatpush1.bf16.msra.mxu0 0
        %2219 = vmatprep.subr.bf16.mxu0 0
        %2220 = vmatpush1.bf16.msra.mxu0 0
        %2221 = vmatprep.subr.bf16.mxu0 0
        %2222 = vmatpush1.bf16.msra.mxu0 0
        %2223 = vmatprep.subr.bf16.mxu0 0
        %2224 = vmatpush1.bf16.msra.mxu0 0
        %2225 = vmatprep.subr.bf16.mxu0 0
        %2226 = vmatpush1.bf16.msra.mxu0 0
        %2227 = vmatprep.subr.bf16.mxu0 0
        %2228 = vmatpush1.bf16.msra.mxu0 0
        %2229 = vmatprep.subr.bf16.mxu0 0
        %2230 = vmatpush1.bf16.msra.mxu0 0
        %2231 = vmatprep.mubr.bf16.mxu0 0
        %2232 = vmatmul.mubr.bf16.gmra.mrb[0].mxu0 %v2194
        %v2233 = vpop.f32.mrb[0].mxu0
        %v2234 = vadd.f32 0.0, %v2233
        %v2235 = vpop.f32.mrb[0].mxu0
        %v2236 = vpop.f32.mrb[0].mxu0
        %v2237 = vpop.f32.mrb[0].mxu0
        %2238 = vdwg.mxu0
        %2240 = vrot.lane.b32.xlu0 %v2014, 8
        %v2241 = vpop.permute.xlu0 %2240
        %2244 = vrot.lane.b32.xlu0 %v2124, 16
        %v2245 = vpop.permute.xlu0 %2244
        %2248 = vrot.lane.b32.xlu0 %v2234, 24
        %v2249 = vpop.permute.xlu0 %2248
        %v2251 = vsel %vm984, %v1903, %v2241
        %v2252 = vsel %vm1436, %v2251, %v2245
        %v2253 = vsel %vm1438, %v2252, %v2249
        %v2254 = vpack.c.bf16 %v2253, %v2253
        %s2255 = scalar_lea.vmem %s6, 16
        %v2256 = vld [vmem:[%s2255] sm:$0xf]
        %v2257 = vld [vmem:[%s2255 + $0x4] sm:$0xf]
        %v2258 = vld [vmem:[%s2255 + $0x8] sm:$0xf]
        %v2259 = vld [vmem:[%s2255 + $0xc] sm:$0xf]
        %s2260 = scalar_lea.vmem [#allocation11], 1
        %v2261 = vld [vmem:[%s2260] sm:$0x1]
        %v2263 = vlaneseq
        %v2264 = vshrl.u32 %v2263, 7
        %v2265 = vsub.s32 0, %v2264
        %v2266 = vrot.slane %v2261, %v2265
        %v2272 = vunpack.c.l.b16 %v2256
        %v2273 = vunpack.c.l.b16 %v2257
        %v2274 = vunpack.c.l.b16 %v2258
        %v2275 = vunpack.c.l.b16 %v2259
        %v2276 = vpack.c.b16 %v2273, %v2272
        %v2277 = vpack.c.b16 %v2275, %v2274
        %v2281 = vsel %vm873, %v2254, 0
        %2283 = vmatprep.subr.bf16.mxu0 0
        %2284 = vmatpush1.bf16.msra.mxu0 %v2276
        %2285 = vmatprep.subr.bf16.mxu0 0
        %2286 = vmatpush1.bf16.msra.mxu0 %v2277
        %2287 = vmatprep.subr.bf16.mxu0 0
        %2288 = vmatpush1.bf16.msra.mxu0 0
        %2289 = vmatprep.subr.bf16.mxu0 0
        %2290 = vmatpush1.bf16.msra.mxu0 0
        %2291 = vmatprep.subr.bf16.mxu0 0
        %2292 = vmatpush1.bf16.msra.mxu0 0
        %2293 = vmatprep.subr.bf16.mxu0 0
        %2294 = vmatpush1.bf16.msra.mxu0 0
        %2295 = vmatprep.subr.bf16.mxu0 0
        %2296 = vmatpush1.bf16.msra.mxu0 0
        %2297 = vmatprep.subr.bf16.mxu0 0
        %2298 = vmatpush1.bf16.msra.mxu0 0
        %2299 = vmatprep.subr.bf16.mxu0 0
        %2300 = vmatpush1.bf16.msra.mxu0 0
        %2301 = vmatprep.subr.bf16.mxu0 0
        %2302 = vmatpush1.bf16.msra.mxu0 0
        %2303 = vmatprep.subr.bf16.mxu0 0
        %2304 = vmatpush1.bf16.msra.mxu0 0
        %2305 = vmatprep.subr.bf16.mxu0 0
        %2306 = vmatpush1.bf16.msra.mxu0 0
        %2307 = vmatprep.subr.bf16.mxu0 0
        %2308 = vmatpush1.bf16.msra.mxu0 0
        %2309 = vmatprep.subr.bf16.mxu0 0
        %2310 = vmatpush1.bf16.msra.mxu0 0
        %2311 = vmatprep.subr.bf16.mxu0 0
        %2312 = vmatpush1.bf16.msra.mxu0 0
        %2313 = vmatprep.subr.bf16.mxu0 0
        %2314 = vmatpush1.bf16.msra.mxu0 0
        %2315 = vmatprep.mubr.bf16.mxu0 0
        %2316 = vmatmul.mubr.bf16.gmra.mrb[0].mxu0 %v2281
        %v2317 = vpop.f32.mrb[0].mxu0
        %v2318 = vadd.f32 %v2266, %v2317
        %v2319 = vpop.f32.mrb[0].mxu0
        %v2320 = vpop.f32.mrb[0].mxu0
        %v2321 = vpop.f32.mrb[0].mxu0
        %2322 = vdwg.mxu0
        %v2323 = vadd.f32 %v2318, %v1726
        %s2324 = scalar_lea.vmem [#allocation13], 1
        %v2325 = vld [vmem:[%s2324] sm:$0x1]
        %s2326 = scalar_lea.vmem [#allocation14], 1
        %v2327 = vld [vmem:[%s2326] sm:$0x1]
        %v2328 = vsel %vm873, %v2323, 0.0
        %2329 = vadd.xlane.f32.xlu0 %v2328
        %v2330 = vpop.xlane.xlu0 %2329
        %v2331 = vmul.f32 %v2330, %v877
        %v2332 = vsub.f32 %v2323, %v2331
        %v2333 = vmul.f32 %v2332, %v2332
        %v2334 = vsel %vm873, %v2333, 0.0
        %2335 = vadd.xlane.f32.xlu0 %v2334
        %v2336 = vpop.xlane.xlu0 %2335
        %v2337 = vmul.f32 %v2336, %v877
        %v2338 = vadd.f32 %v2337, 1e-12
        %v2339 = vrsqrt.pop %v2338
        %v2340 = vmul.f32 %v2332, %v2339
        %v2342 = vlaneseq
        %v2343 = vshrl.u32 %v2342, 7
        %v2344 = vsub.s32 0, %v2343
        %v2345 = vrot.slane %v2325, %v2344
        %v2347 = vmul.f32 %v2340, %v2345
        %v2349 = vlaneseq
        %v2350 = vshrl.u32 %v2349, 7
        %v2351 = vsub.s32 0, %v2350
        %v2352 = vrot.slane %v2327, %v2351
        %v2354 = vadd.f32 %v2347, %v2352
        %v2355 = vpack.c.bf16 %v2354, %v2354
        %s2356 = scalar_lea.vmem %s10, 16
        %v2357 = vld [vmem:[%s2356] sm:$0xf]
        %v2358 = vld [vmem:[%s2356 + $0x4] sm:$0xf]
        %v2359 = vld [vmem:[%s2356 + $0x8] sm:$0xf]
        %v2360 = vld [vmem:[%s2356 + $0xc] sm:$0xf]
        %s2361 = scalar_lea.vmem [#allocation16], 1
        %v2362 = vld [vmem:[%s2361] sm:$0x1]
        %v2364 = vlaneseq
        %v2365 = vshrl.u32 %v2364, 7
        %v2366 = vsub.s32 0, %v2365
        %v2367 = vrot.slane %v2362, %v2366
        %v2373 = vunpack.c.l.b16 %v2357
        %v2374 = vunpack.c.l.b16 %v2358
        %v2375 = vunpack.c.l.b16 %v2359
        %v2376 = vunpack.c.l.b16 %v2360
        %v2377 = vpack.c.b16 %v2374, %v2373
        %v2378 = vpack.c.b16 %v2376, %v2375
        %v2382 = vsel %vm873, %v2355, 0
        %2384 = vmatprep.subr.bf16.mxu0 0
        %2385 = vmatpush1.bf16.msra.mxu0 %v2377
        %2386 = vmatprep.subr.bf16.mxu0 0
        %2387 = vmatpush1.bf16.msra.mxu0 %v2378
        %2388 = vmatprep.subr.bf16.mxu0 0
        %2389 = vmatpush1.bf16.msra.mxu0 0
        %2390 = vmatprep.subr.bf16.mxu0 0
        %2391 = vmatpush1.bf16.msra.mxu0 0
        %2392 = vmatprep.subr.bf16.mxu0 0
        %2393 = vmatpush1.bf16.msra.mxu0 0
        %2394 = vmatprep.subr.bf16.mxu0 0
        %2395 = vmatpush1.bf16.msra.mxu0 0
        %2396 = vmatprep.subr.bf16.mxu0 0
        %2397 = vmatpush1.bf16.msra.mxu0 0
        %2398 = vmatprep.subr.bf16.mxu0 0
        %2399 = vmatpush1.bf16.msra.mxu0 0
        %2400 = vmatprep.subr.bf16.mxu0 0
        %2401 = vmatpush1.bf16.msra.mxu0 0
        %2402 = vmatprep.subr.bf16.mxu0 0
        %2403 = vmatpush1.bf16.msra.mxu0 0
        %2404 = vmatprep.subr.bf16.mxu0 0
        %2405 = vmatpush1.bf16.msra.mxu0 0
        %2406 = vmatprep.subr.bf16.mxu0 0
        %2407 = vmatpush1.bf16.msra.mxu0 0
        %2408 = vmatprep.subr.bf16.mxu0 0
        %2409 = vmatpush1.bf16.msra.mxu0 0
        %2410 = vmatprep.subr.bf16.mxu0 0
        %2411 = vmatpush1.bf16.msra.mxu0 0
        %2412 = vmatprep.subr.bf16.mxu0 0
        %2413 = vmatpush1.bf16.msra.mxu0 0
        %2414 = vmatprep.subr.bf16.mxu0 0
        %2415 = vmatpush1.bf16.msra.mxu0 0
        %2416 = vmatprep.mubr.bf16.mxu0 0
        %2417 = vmatmul.mubr.bf16.gmra.mrb[0].mxu0 %v2382
        %v2418 = vpop.f32.mrb[0].mxu0
        %v2419 = vadd.f32 %v2367, %v2418
        %v2420 = vpop.f32.mrb[0].mxu0
        %v2421 = vpop.f32.mrb[0].mxu0
        %v2422 = vpop.f32.mrb[0].mxu0
        %2423 = vdwg.mxu0
        %v2424 = vmul.f32 %v2419, 0.5
        %v2425 = vmul.f32 %v2419, 0.044715
        %v2426 = vmul.f32 %v2425, %v2419
        %v2427 = vmul.f32 %v2426, %v2419
        %v2428 = vadd.f32 %v2419, %v2427
        %v2429 = vmul.f32 %v2428, 0.7978846
        %v2430 = vtanh.pop %v2429
        %v2431 = vadd.f32 %v2430, 1.0
        %v2432 = vmul.f32 %v2424, %v2431
        %v2433 = vpack.c.bf16 %v2432, %v2432
        %s2434 = scalar_lea.vmem %s12, 32
        %v2435 = vld [vmem:[%s2434] sm:$0xf]
        %v2436 = vld [vmem:[%s2434 + $0x4] sm:$0xf]
        %v2437 = vld [vmem:[%s2434 + $0x8] sm:$0xf]
        %v2438 = vld [vmem:[%s2434 + $0xc] sm:$0xf]
        %v2439 = vld [vmem:[%s2434 + $0x10] sm:$0xf]
        %v2440 = vld [vmem:[%s2434 + $0x14] sm:$0xf]
        %v2441 = vld [vmem:[%s2434 + $0x18] sm:$0xf]
        %v2442 = vld [vmem:[%s2434 + $0x1c] sm:$0xf]
        %s2443 = scalar_lea.vmem [#allocation17], 1
        %v2444 = vld [vmem:[%s2443] sm:$0x1]
        %v2446 = vlaneseq
        %v2447 = vshrl.u32 %v2446, 7
        %v2448 = vsub.s32 0, %v2447
        %v2449 = vrot.slane %v2444, %v2448
        %v2459 = vunpack.c.l.b16 %v2435
        %v2460 = vunpack.c.l.b16 %v2436
        %v2461 = vunpack.c.l.b16 %v2437
        %v2462 = vunpack.c.l.b16 %v2438
        %v2463 = vunpack.c.l.b16 %v2439
        %v2464 = vunpack.c.l.b16 %v2440
        %v2465 = vunpack.c.l.b16 %v2441
        %v2466 = vunpack.c.l.b16 %v2442
        %v2467 = vpack.c.b16 %v2460, %v2459
        %v2468 = vpack.c.b16 %v2462, %v2461
        %v2469 = vpack.c.b16 %v2464, %v2463
        %v2470 = vpack.c.b16 %v2466, %v2465
        %v2476 = vsel %vm1653, %v2433, 0
        %2478 = vmatprep.subr.bf16.mxu0 0
        %2479 = vmatpush1.bf16.msra.mxu0 %v2467
        %2480 = vmatprep.subr.bf16.mxu0 0
        %2481 = vmatpush1.bf16.msra.mxu0 %v2468
        %2482 = vmatprep.subr.bf16.mxu0 0
        %2483 = vmatpush1.bf16.msra.mxu0 %v2469
        %2484 = vmatprep.subr.bf16.mxu0 0
        %2485 = vmatpush1.bf16.msra.mxu0 %v2470
        %2486 = vmatprep.subr.bf16.mxu0 0
        %2487 = vmatpush1.bf16.msra.mxu0 0
        %2488 = vmatprep.subr.bf16.mxu0 0
        %2489 = vmatpush1.bf16.msra.mxu0 0
        %2490 = vmatprep.subr.bf16.mxu0 0
        %2491 = vmatpush1.bf16.msra.mxu0 0
        %2492 = vmatprep.subr.bf16.mxu0 0
        %2493 = vmatpush1.bf16.msra.mxu0 0
        %2494 = vmatprep.subr.bf16.mxu0 0
        %2495 = vmatpush1.bf16.msra.mxu0 0
        %2496 = vmatprep.subr.bf16.mxu0 0
        %2497 = vmatpush1.bf16.msra.mxu0 0
        %2498 = vmatprep.subr.bf16.mxu0 0
        %2499 = vmatpush1.bf16.msra.mxu0 0
        %2500 = vmatprep.subr.bf16.mxu0 0
        %2501 = vmatpush1.bf16.msra.mxu0 0
        %2502 = vmatprep.subr.bf16.mxu0 0
        %2503 = vmatpush1.bf16.msra.mxu0 0
        %2504 = vmatprep.subr.bf16.mxu0 0
        %2505 = vmatpush1.bf16.msra.mxu0 0
        %2506 = vmatprep.subr.bf16.mxu0 0
        %2507 = vmatpush1.bf16.msra.mxu0 0
        %2508 = vmatprep.subr.bf16.mxu0 0
        %2509 = vmatpush1.bf16.msra.mxu0 0
        %2510 = vmatprep.mubr.bf16.mxu0 0
        %2511 = vmatmul.mubr.bf16.gmra.mrb[0].mxu0 %v2476
        %v2512 = vpop.f32.mrb[0].mxu0
        %v2513 = vadd.f32 %v2449, %v2512
        %v2514 = vpop.f32.mrb[0].mxu0
        %v2515 = vpop.f32.mrb[0].mxu0
        %v2516 = vpop.f32.mrb[0].mxu0
        %2517 = vdwg.mxu0
        %v2518 = vadd.f32 %v2513, %v2354
        %s2519 = scalar_lea.vmem [#allocation19], 1
        %v2520 = vld [vmem:[%s2519] sm:$0x1]
        %s2521 = scalar_lea.vmem [#allocation20], 1
        %v2522 = vld [vmem:[%s2521] sm:$0x1]
        %v2523 = vsel %vm873, %v2518, 0.0
        %2524 = vadd.xlane.f32.xlu0 %v2523
        %v2525 = vpop.xlane.xlu0 %2524
        %v2526 = vmul.f32 %v2525, %v877
        %v2527 = vsub.f32 %v2518, %v2526
        %v2528 = vmul.f32 %v2527, %v2527
        %v2529 = vsel %vm873, %v2528, 0.0
        %2530 = vadd.xlane.f32.xlu0 %v2529
        %v2531 = vpop.xlane.xlu0 %2530
        %v2532 = vmul.f32 %v2531, %v877
        %v2533 = vadd.f32 %v2532, 1e-12
        %v2534 = vrsqrt.pop %v2533
        %v2535 = vmul.f32 %v2527, %v2534
        %v2537 = vlaneseq
        %v2538 = vshrl.u32 %v2537, 7
        %v2539 = vsub.s32 0, %v2538
        %v2540 = vrot.slane %v2520, %v2539
        %v2542 = vmul.f32 %v2535, %v2540
        %v2544 = vlaneseq
        %v2545 = vshrl.u32 %v2544, 7
        %v2546 = vsub.s32 0, %v2545
        %v2547 = vrot.slane %v2522, %v2546
        %v2549 = vadd.f32 %v2542, %v2547
        %2550 = vst.msk [vmem:[%s862] sm:$0xff] %vm873, %v2549
        %v2551 = vpack.c.bf16 %v2549, %v2549
        %v2552 = vld [vmem:[%s16] sm:$0xf]
        %v2553 = vld [vmem:[%s16 + $0x4] sm:$0xf]
        %v2554 = vld [vmem:[%s16 + $0x8] sm:$0xf]
        %v2555 = vld [vmem:[%s16 + $0xc] sm:$0xf]
        %v2556 = vld [vmem:[#allocation22] sm:$0x1]
        %v2561 = vunpack.c.l.b16 %v2552
        %v2562 = vunpack.c.l.b16 %v2553
        %v2563 = vunpack.c.l.b16 %v2554
        %v2564 = vunpack.c.l.b16 %v2555
        %v2565 = vpack.c.b16 %v2562, %v2561
        %v2566 = vpack.c.b16 %v2564, %v2563
        %v2570 = vsel %vm873, %v2551, 0
        %2572 = vmatprep.subr.bf16.mxu0 0
        %2573 = vmatpush1.bf16.msra.mxu0 %v2565
        %2574 = vmatprep.subr.bf16.mxu0 0
        %2575 = vmatpush1.bf16.msra.mxu0 %v2566
        %2576 = vmatprep.subr.bf16.mxu0 0
        %2577 = vmatpush1.bf16.msra.mxu0 0
        %2578 = vmatprep.subr.bf16.mxu0 0
        %2579 = vmatpush1.bf16.msra.mxu0 0
        %2580 = vmatprep.subr.bf16.mxu0 0
        %2581 = vmatpush1.bf16.msra.mxu0 0
        %2582 = vmatprep.subr.bf16.mxu0 0
        %2583 = vmatpush1.bf16.msra.mxu0 0
        %2584 = vmatprep.subr.bf16.mxu0 0
        %2585 = vmatpush1.bf16.msra.mxu0 0
        %2586 = vmatprep.subr.bf16.mxu0 0
        %2587 = vmatpush1.bf16.msra.mxu0 0
        %2588 = vmatprep.subr.bf16.mxu0 0
        %2589 = vmatpush1.bf16.msra.mxu0 0
        %2590 = vmatprep.subr.bf16.mxu0 0
        %2591 = vmatpush1.bf16.msra.mxu0 0
        %2592 = vmatprep.subr.bf16.mxu0 0
        %2593 = vmatpush1.bf16.msra.mxu0 0
        %2594 = vmatprep.subr.bf16.mxu0 0
        %2595 = vmatpush1.bf16.msra.mxu0 0
        %2596 = vmatprep.subr.bf16.mxu0 0
        %2597 = vmatpush1.bf16.msra.mxu0 0
        %2598 = vmatprep.subr.bf16.mxu0 0
        %2599 = vmatpush1.bf16.msra.mxu0 0
        %2600 = vmatprep.subr.bf16.mxu0 0
        %2601 = vmatpush1.bf16.msra.mxu0 0
        %2602 = vmatprep.subr.bf16.mxu0 0
        %2603 = vmatpush1.bf16.msra.mxu0 0
        %2604 = vmatprep.mubr.bf16.mxu0 0
        %2605 = vmatmul.mubr.bf16.gmra.mrb[0].mxu0 %v2570
        %v2606 = vpop.f32.mrb[0].mxu0
        %v2607 = vadd.f32 %v2556, %v2606
        %v2608 = vpop.f32.mrb[0].mxu0
        %v2609 = vpop.f32.mrb[0].mxu0
        %v2610 = vpop.f32.mrb[0].mxu0
        %2611 = vdwg.mxu0
        %v2612 = vtanh.pop %v2607
        %v2613 = vpack.c.bf16 %v2612, %v2612
        %v2614 = vld [vmem:[%s18] sm:$0xf]
        %v2615 = vld [vmem:[%s18 + $0x4] sm:$0xf]
        %v2616 = vld [vmem:[%s18 + $0x8] sm:$0xf]
        %v2617 = vld [vmem:[%s18 + $0xc] sm:$0xf]
        %v2618 = vld [vmem:[%s19] sm:$0x1]
        %v2623 = vunpack.c.l.b16 %v2614
        %v2624 = vunpack.c.l.b16 %v2615
        %v2625 = vunpack.c.l.b16 %v2616
        %v2626 = vunpack.c.l.b16 %v2617
        %v2627 = vpack.c.b16 %v2624, %v2623
        %v2628 = vpack.c.b16 %v2626, %v2625
        %v2632 = vsel %vm873, %v2613, 0
        %2634 = vmatprep.subr.bf16.mxu0 0
        %2635 = vmatpush1.bf16.msra.mxu0 %v2627
        %2636 = vmatprep.subr.bf16.mxu0 0
        %2637 = vmatpush1.bf16.msra.mxu0 %v2628
        %2638 = vmatprep.subr.bf16.mxu0 0
        %2639 = vmatpush1.bf16.msra.mxu0 0
        %2640 = vmatprep.subr.bf16.mxu0 0
        %2641 = vmatpush1.bf16.msra.mxu0 0
        %2642 = vmatprep.subr.bf16.mxu0 0
        %2643 = vmatpush1.bf16.msra.mxu0 0
        %2644 = vmatprep.subr.bf16.mxu0 0
        %2645 = vmatpush1.bf16.msra.mxu0 0
        %2646 = vmatprep.subr.bf16.mxu0 0
        %2647 = vmatpush1.bf16.msra.mxu0 0
        %2648 = vmatprep.subr.bf16.mxu0 0
        %2649 = vmatpush1.bf16.msra.mxu0 0
        %2650 = vmatprep.subr.bf16.mxu0 0
        %2651 = vmatpush1.bf16.msra.mxu0 0
        %2652 = vmatprep.subr.bf16.mxu0 0
        %2653 = vmatpush1.bf16.msra.mxu0 0
        %2654 = vmatprep.subr.bf16.mxu0 0
        %2655 = vmatpush1.bf16.msra.mxu0 0
        %2656 = vmatprep.subr.bf16.mxu0 0
        %2657 = vmatpush1.bf16.msra.mxu0 0
        %2658 = vmatprep.subr.bf16.mxu0 0
        %2659 = vmatpush1.bf16.msra.mxu0 0
        %2660 = vmatprep.subr.bf16.mxu0 0
        %2661 = vmatpush1.bf16.msra.mxu0 0
        %2662 = vmatprep.subr.bf16.mxu0 0
        %2663 = vmatpush1.bf16.msra.mxu0 0
        %2664 = vmatprep.subr.bf16.mxu0 0
        %2665 = vmatpush1.bf16.msra.mxu0 0
        %2666 = vmatprep.mubr.bf16.mxu0 0
        %2667 = vmatmul.mubr.bf16.gmra.mrb[0].mxu0 %v2632
        %v2668 = vpop.f32.mrb[0].mxu0
        %v2669 = vadd.f32 %v2618, %v2668
        %v2670 = vpop.f32.mrb[0].mxu0
        %v2671 = vpop.f32.mrb[0].mxu0
        %v2672 = vpop.f32.mrb[0].mxu0
        %2673 = vdwg.mxu0
        %2674 = vst [vmem:[%s868] sm:$0x1] %v2669
        %s2675 = sand.u32 %s488, 1
        %s2676 = scalar_lea.sflag [#allocation4], %s2675
        %s2677 = sand.u32 %s488, 1
        %s2678 = smul.addr %s2677, 8
        %s2679 = scalar_lea.vmem [#allocation23], %s2678
        %s2680 = sand.u32 %s514, 1
        %s2681 = scalar_lea.sflag [#allocation25], %s2680
        %s2682 = sand.u32 %s514, 1
        %s2683 = scalar_lea.vmem [#allocation24], %s2682
        // Predicated region
        $region153: #{tpu_custom_call.1} parent=99 // pred_check
          %p2684 = pneg %p498
        $region154: #{tpu_custom_call.1} parent=99 // pred_check_branch
          %2686 = sbr.rel (%p2684) target = $region156
        $region155: #{tpu_custom_call.1} parent=99 // pred_region
          %s2688 = ssub.s32 128, 128
          %2689 = vsyncadd %s2676, %s2688
          %s2690 = smul.addr %s50, 128
          %s2691 = scalar_lea.hbm %s20, %s2690
          %s2693 = sshll.u32 %s2679, 4
          %s2694 = int_to_ptr.vmem [resolvable:$true] %s2693
          %2696 = dma.vmem_to_hbm [thread:$0]  %s2694, 128, %s2691, %s2676
        $region156: #{tpu_custom_call.1} parent=99 // pred_fallthru
          _
        // Predicated region
        $region157: #{tpu_custom_call.1} parent=99 // pred_check
          %p2697 = pneg %p524
        $region158: #{tpu_custom_call.1} parent=99 // pred_check_branch
          %2699 = sbr.rel (%p2697) target = $region160
        $region159: #{tpu_custom_call.1} parent=99 // pred_region
          %s2701 = ssub.s32 16, 16
          %2702 = vsyncadd %s2681, %s2701
          %s2703 = smul.addr %s50, 16
          %s2704 = scalar_lea.hbm %s21, %s2703
          %s2706 = sshll.u32 %s2683, 4
          %s2707 = int_to_ptr.vmem [resolvable:$true] %s2706
          %2709 = dma.vmem_to_hbm [thread:$0]  %s2707, 16, %s2704, %s2681
        $region160: #{tpu_custom_call.1} parent=99 // pred_fallthru
          _
      $region100: #{tpu_custom_call.1} parent=5 // pred_fallthru
        _
      %p2710 = scmp.le.s32.totalorder 2, %s45
      // Predicated region
      $region161: #{tpu_custom_call.1} parent=5 // pred_check
        %p2711 = pneg %p2710
      $region162: #{tpu_custom_call.1} parent=5 // pred_check_branch
        %2713 = sbr.rel (%p2711) target = $region164
      $region163: #{tpu_custom_call.1} parent=5 // pred_region
        %s2714 = ssub.s32 %s45, 2
        // Predicated region
        $region165: #{tpu_custom_call.1} parent=163 // pred_check
          %p2715 = pneg %p504
        $region166: #{tpu_custom_call.1} parent=163 // pred_check_branch
          %2717 = sbr.rel (%p2715) target = $region168
        $region167: #{tpu_custom_call.1} parent=163 // pred_region
          %s2718 = sand.u32 %s489, 1
          %s2719 = scalar_lea.sflag [#allocation4], %s2718
          %s2720 = sand.u32 %s489, 1
          %s2721 = smul.addr %s2720, 8
          %s2722 = scalar_lea.vmem [#allocation23], %s2721
          %2723 = dma.done %s2719, 128
        $region168: #{tpu_custom_call.1} parent=163 // pred_fallthru
          _
        // Predicated region
        $region169: #{tpu_custom_call.1} parent=163 // pred_check
          %p2724 = pneg %p530
        $region170: #{tpu_custom_call.1} parent=163 // pred_check_branch
          %2726 = sbr.rel (%p2724) target = $region172
        $region171: #{tpu_custom_call.1} parent=163 // pred_region
          %s2727 = sand.u32 %s515, 1
          %s2728 = scalar_lea.sflag [#allocation25], %s2727
          %s2729 = sand.u32 %s515, 1
          %s2730 = scalar_lea.vmem [#allocation24], %s2729
          %2731 = dma.done %s2728, 16
        $region172: #{tpu_custom_call.1} parent=163 // pred_fallthru
          _
      $region164: #{tpu_custom_call.1} parent=5 // pred_fallthru
        _
    $region6: #{tpu_custom_call.1} parent=1 // loop_footer
      %s49 = sadd.s32 1, %s45
    $region7: #{tpu_custom_call.1} parent=1 // loop_footer_branch
      %44 = sbr.rel target = $region3
    $region8: #{tpu_custom_call.1} parent=1 // loop_exit
      _
    %2732 = vsyncpa [#allocation3], 1
    %s2733 = scalar_lea.sflag [#allocation3], 1
    %2734 = vsyncpa %s2733, 1
    %2735 = vsyncpa [#allocation6], 1
    %s2736 = scalar_lea.sflag [#allocation6], 1
    %2737 = vsyncpa %s2736, 1
    %2738 = vsyncpa [#allocation9], 1
    %2739 = vsyncpa [#allocation12], 1
    %2740 = vsyncpa [#allocation15], 1
    %2741 = vsyncpa [#allocation18], 1
    %2742 = vsyncpa [#allocation21], 1
    %2743 = vsyncpa [#allocation4], 1
    %s2744 = scalar_lea.sflag [#allocation4], 1
    %2745 = vsyncpa %s2744, 1
    %2746 = vsyncpa [#allocation25], 1
    %s2747 = scalar_lea.sflag [#allocation25], 1
    %2748 = vsyncpa %s2747, 1

</llo_original>
